<compile_context>
chip_gen: v7x
topology: tpu7x:2x2x1
jax: 0.10.0
libtpu: 0.0.40
codegen_flags: <defaults>
</compile_context>

<pallas_src>
import numpy as np
import jax
import jax.numpy as jnp
from jax.experimental import pallas as pl
from jax.experimental.pallas import tpu as pltpu

# ----------------------------- configuration -------------------------------
INPUT_DIM = 32      # embed_dim / timestep_vector_dim
OUTPUT_DIM = 8
NUM_LAYERS = 2
NUM_HEADS = 4
DIM_FF = 64
SEQ_POS = 196       # fixed by nn.Parameter(torch.zeros(1, 196, input_dim))
BATCH = 2           # torch dim 0 (== attention sequence length for MHA)
LN_EPS = 1e-5       # PyTorch nn.LayerNorm default

PACK = 4                                   # batch rows packed per 128 lanes
LANES = PACK * INPUT_DIM                   # 128
PACKED_ROWS = (((SEQ_POS + PACK - 1) // PACK) + 7) // 8 * 8   # 56
PAD_ROWS = PACKED_ROWS * PACK              # 224
NVEC = 16                                  # rows in the per-layer vector slab


# ------------------------------ Pallas kernel -------------------------------
def fused_forward_kernel(x_ref, pe_ref, mat_ref, vec_ref, ff1_ref, bf1_ref,
                         ff2_ref, const_ref, fcw_ref, fcb_ref, o_ref):
    """Full TransformerModel forward, lane-packed, single block."""
    S, NP, _ = x_ref.shape              # 2, 56, 128 (all static)
    L = mat_ref.shape[0]                # number of transformer layers

    hm = const_ref[0]                   # (128,128) same-(sub-row, head) mask
    lnm = const_ref[1]                  # (128,128) per-sub-row mean operator
    pe = pe_ref[...]                    # (NP, 128)

    def layer_norm(z, w, b):
        # Mean / variance per packed sub-row via the MXU (kron(I4, ones/32)).
        mu = jnp.dot(z, lnm, preferred_element_type=jnp.float32)
        var = jnp.dot((z - mu) * (z - mu), lnm,
                      preferred_element_type=jnp.float32)
        return (z - mu) * jax.lax.rsqrt(var + LN_EPS) * w + b

    # Positional encoding + stack the S=2 position slabs along the packed-row
    # axis so projections / FFN / LN below are single lane-dense matmuls.
    y = jnp.concatenate([x_ref[i] + pe for i in range(S)], axis=0)  # (S*NP,128)

    for l in range(L):                  # static unroll (L = 2)
        wq = mat_ref[l, 0]
        wk = mat_ref[l, 1]
        wv = mat_ref[l, 2]
        wo = mat_ref[l, 3]
        vec = vec_ref[l]                # (NVEC, 128)
        bq, bk, bv, bo = vec[0:1], vec[1:2], vec[2:3], vec[3:4]
        g1, c1 = vec[4:5], vec[5:6]
        bf2, g2, c2 = vec[6:7], vec[7:8], vec[8:9]

        # k / v for both sequence positions in one stacked matmul each.
        k = jnp.dot(y, wk, preferred_element_type=jnp.float32) + bk
        v = jnp.dot(y, wv, preferred_element_type=jnp.float32) + bv
        k0, k1 = k[:NP], k[NP:]
        v0, v1 = v[:NP], v[NP:]

        # Attention over the S=2 axis (per batch row); 1/sqrt(head_dim) is
        # already folded into wq / bq.  q is computed per query position to
        # keep the live vreg set small.
        outs = []
        for i in range(S):
            qi = jnp.dot(y[i * NP:(i + 1) * NP], wq,
                         preferred_element_type=jnp.float32) + bq
            s0 = jnp.dot(qi * k0, hm, preferred_element_type=jnp.float32)
            s1 = jnp.dot(qi * k1, hm, preferred_element_type=jnp.float32)
            # 2-way softmax == sigmoid(s0 - s1); reciprocal on the EUP slot.
            w0 = pl.reciprocal(1.0 + jnp.exp(s1 - s0), approx=True)
            outs.append(v1 + w0 * (v0 - v1))
        attn = jnp.dot(jnp.concatenate(outs, axis=0), wo,
                       preferred_element_type=jnp.float32) + bo

        # dropout1 is identity (eval); residual + LayerNorm 1.
        y = layer_norm(y + attn, g1, c1)

        # Feed-forward (Linear -> ReLU -> Linear), stacked over positions.
        ff = jnp.maximum(
            jnp.dot(y, ff1_ref[l], preferred_element_type=jnp.float32)
            + bf1_ref[l], 0.0)
        ff = jnp.dot(ff, ff2_ref[l], preferred_element_type=jnp.float32) + bf2

        # dropout2 identity; residual + LayerNorm 2.
        y = layer_norm(y + ff, g2, c2)

    # Final fc + sigmoid; output stays packed (4 rows x 8 outputs per 32 lanes).
    z = jnp.dot(y, fcw_ref[...], preferred_element_type=jnp.float32) + fcb_ref[...]
    z = 1.0 / (1.0 + jnp.exp(-z))
    for i in range(S):
        o_ref[i] = z[i * NP:(i + 1) * NP]


# ------------------------------- wrapper -------------------------------------
def _full_spec(a):
    """Full-array block, fetched once (single grid step)."""
    zeros = (0,) * a.ndim
    return pl.BlockSpec(a.shape, lambda i, _z=zeros: _z)


def forward(x, packed):
    """Full TransformerModel forward. x: (S, 196, E)."""
    (pe_p, mats, vecs, ff1, bf1_p, ff2, consts, fcw_p, fcb_p) = packed
    S, N, _ = x.shape
    O = OUTPUT_DIM

    # Pad the batch axis to 224 rows and lane-pack 4 rows per 128 lanes.
    xp = jnp.pad(x.astype(jnp.float32), ((0, 0), (0, PAD_ROWS - N), (0, 0)))
    xp = xp.reshape(S, PACKED_ROWS, LANES)

    args = (xp, pe_p, mats, vecs, ff1, bf1_p, ff2, consts, fcw_p, fcb_p)
    out = pl.pallas_call(
        fused_forward_kernel,
        grid=(1,),                      # one block: everything resident in VMEM
        out_shape=jax.ShapeDtypeStruct((S, PACKED_ROWS, PACK * O), jnp.float32),
        in_specs=[_full_spec(a) for a in args],
        out_specs=pl.BlockSpec((S, PACKED_ROWS, PACK * O), lambda i: (0, 0, 0)),
        compiler_params=pltpu.CompilerParams(
            dimension_semantics=("arbitrary",)),
    )(*args)
    # Unpack: (S, 56, 32) -> (S, 224, 8) -> (S, 196, 8)
    return out.reshape(S, PAD_ROWS, O)[:, :N, :]


# --------------------------- host-side weight packing ------------------------
def pack_params(params):
    """kron(I4, W) / lane-tiled packing of all weights into a few flat slabs."""
    (pe, wq, bq, wk, bk, wv, bv, wo, bo, ln1w, ln1b,
     wf1, bf1, wf2, bf2, ln2w, ln2b, fcw, fcb) = [
        np.asarray(p, np.float32) for p in params]

    E, L, P = INPUT_DIM, NUM_LAYERS, PACK
    H, hd = NUM_HEADS, INPUT_DIM // NUM_HEADS
    scale = 1.0 / np.sqrt(float(hd))
    I = np.eye(P, dtype=np.float32)

    def kr(w):                              # (a, b) -> (P*a, P*b) block-diag
        return np.kron(I, w.astype(np.float32))

    def tile_v(v):                          # (.., C) -> (P*C,) lane tile
        return np.tile(np.asarray(v, np.float32).reshape(-1), P)

    # Positional encoding: pad 196 -> 224 rows, pack to (56, 128).
    pe_p = np.zeros((PAD_ROWS, E), np.float32)
    pe_p[:pe.shape[0]] = pe
    pe_p = pe_p.reshape(PACKED_ROWS, LANES)

    # Square per-layer matrices (q scale folded into wq).
    mats = np.stack([
        np.stack([kr(wq[l] * scale), kr(wk[l]), kr(wv[l]), kr(wo[l])])
        for l in range(L)])                                  # (L, 4, 128, 128)

    # Per-layer bias / LayerNorm vectors in one slab.
    vecs = np.zeros((L, NVEC, LANES), np.float32)
    for l in range(L):
        vecs[l, 0] = tile_v(bq[l] * scale)
        vecs[l, 1] = tile_v(bk[l])
        vecs[l, 2] = tile_v(bv[l])
        vecs[l, 3] = tile_v(bo[l])
        vecs[l, 4] = tile_v(ln1w[l])
        vecs[l, 5] = tile_v(ln1b[l])
        vecs[l, 6] = tile_v(bf2[l])
        vecs[l, 7] = tile_v(ln2w[l])
        vecs[l, 8] = tile_v(ln2b[l])

    ff1 = np.stack([kr(wf1[l]) for l in range(L)])           # (L, 128, 256)
    bf1_p = np.stack([tile_v(bf1[l]) for l in range(L)])[:, None, :]  # (L,1,256)
    ff2 = np.stack([kr(wf2[l]) for l in range(L)])            # (L, 256, 128)

    # Constants: per-(sub-row, head) score mask and per-sub-row mean operator.
    hm = np.kron(np.eye(P * H, dtype=np.float32), np.ones((hd, hd), np.float32))
    lnm = np.kron(I, np.full((E, E), 1.0 / E, np.float32))
    consts = np.stack([hm, lnm])                              # (2, 128, 128)

    fcw_p = kr(fcw)                                           # (128, 32)
    fcb_p = tile_v(fcb).reshape(1, -1)                        # (1, 32)

    return tuple(jnp.asarray(a) for a in
                 (pe_p, mats, vecs, ff1, bf1_p, ff2, consts, fcw_p, fcb_p))


# --------------------------- parameter creation ------------------------------
def init_params(key):
    E, F, O, L = INPUT_DIM, DIM_FF, OUTPUT_DIM, NUM_LAYERS

    def dense(k, fan_in, shape):
        return jax.random.normal(k, shape, jnp.float32) / jnp.sqrt(float(fan_in))

    ks = jax.random.split(key, 20)
    # torch inits the positional encoding to zeros; use small randoms so the
    # synthetic forward is non-trivial.
    pe = 0.02 * jax.random.normal(ks[0], (SEQ_POS, E), jnp.float32)

    wq = dense(ks[1], E, (L, E, E))
    wk = dense(ks[2], E, (L, E, E))
    wv = dense(ks[3], E, (L, E, E))
    wo = dense(ks[4], E, (L, E, E))
    wf1 = dense(ks[5], E, (L, E, F))
    wf2 = dense(ks[6], F, (L, F, E))
    fcw = dense(ks[7], E, (E, O))

    bq = 0.02 * jax.random.normal(ks[8], (L, 1, E), jnp.float32)
    bk = 0.02 * jax.random.normal(ks[9], (L, 1, E), jnp.float32)
    bv = 0.02 * jax.random.normal(ks[10], (L, 1, E), jnp.float32)
    bo = 0.02 * jax.random.normal(ks[11], (L, 1, E), jnp.float32)
    bf1 = 0.02 * jax.random.normal(ks[12], (L, 1, F), jnp.float32)
    bf2 = 0.02 * jax.random.normal(ks[13], (L, 1, E), jnp.float32)
    fcb = 0.02 * jax.random.normal(ks[14], (1, O), jnp.float32)

    ln1w = 1.0 + 0.05 * jax.random.normal(ks[15], (L, 1, E), jnp.float32)
    ln1b = 0.02 * jax.random.normal(ks[16], (L, 1, E), jnp.float32)
    ln2w = 1.0 + 0.05 * jax.random.normal(ks[17], (L, 1, E), jnp.float32)
    ln2b = 0.02 * jax.random.normal(ks[18], (L, 1, E), jnp.float32)

    return (pe, wq, bq, wk, bk, wv, bv, wo, bo, ln1w, ln1b,
            wf1, bf1, wf2, bf2, ln2w, ln2b, fcw, fcb)


# ---------------------------- plain-JAX reference ----------------------------
def _layer_norm(x, w, b):
    mu = jnp.mean(x, axis=-1, keepdims=True)
    var = jnp.mean((x - mu) ** 2, axis=-1, keepdims=True)
    return (x - mu) * jax.lax.rsqrt(var + LN_EPS) * w + b


def reference_forward(x, params):
    (pe, wq, bq, wk, bk, wv, bv, wo, bo, ln1w, ln1b,
     wf1, bf1, wf2, bf2, ln2w, ln2b, fcw, fcb) = params
    S, N, E = x.shape
    H, hd = NUM_HEADS, INPUT_DIM // NUM_HEADS
    y = x.astype(jnp.float32) + pe[None]
    for l in range(NUM_LAYERS):
        q = ((y @ wq[l] + bq[l]) / jnp.sqrt(float(hd))).reshape(S, N, H, hd)
        k = (y @ wk[l] + bk[l]).reshape(S, N, H, hd)
        v = (y @ wv[l] + bv[l]).reshape(S, N, H, hd)
        scores = jnp.einsum('inhd,jnhd->nhij', q, k)
        attn = jax.nn.softmax(scores, axis=-1)
        out = jnp.einsum('nhij,jnhd->inhd', attn, v).reshape(S, N, E)
        out = out @ wo[l] + bo[l]
        y = _layer_norm(y + out, ln1w[l], ln1b[l])
        ff = jnp.maximum(y @ wf1[l] + bf1[l], 0.0) @ wf2[l] + bf2[l]
        y = _layer_norm(y + ff, ln2w[l], ln2b[l])
    return jax.nn.sigmoid(y @ fcw + fcb)


# ---------------------------------- main -------------------------------------
if __name__ == "__main__":
    key = jax.random.PRNGKey(0)
    k_x, k_p = jax.random.split(key)
    x = jax.random.normal(k_x, (BATCH, SEQ_POS, INPUT_DIM), jnp.float32)
    params = init_params(k_p)
    packed = pack_params(params)

    fwd = jax.jit(forward)
    out = jax.block_until_ready(fwd(x, packed))

    assert out.shape == (BATCH, SEQ_POS, OUTPUT_DIM)
    ref = reference_forward(x, params)
    max_err = float(jnp.max(jnp.abs(out - ref)))
    # Tolerance slightly above the previous 2e-3 to leave headroom for the
    # approximate EUP reciprocal used in the softmax; a real bug would give
    # errors orders of magnitude larger.
    assert max_err < 4e-3, f"kernel/reference mismatch: {max_err}"
    print("KERNEL_OK")
</pallas_src>

<mosaic_0001>
module attributes {stable_mosaic.version = 11 : i64} {
  func.func @fused_forward_kernel(%arg0: i32, %arg1: memref<2x56x128xf32, #tpu.memory_space<vmem>>, %arg2: memref<56x128xf32, #tpu.memory_space<vmem>>, %arg3: memref<2x4x128x128xf32, #tpu.memory_space<vmem>>, %arg4: memref<2x16x128xf32, #tpu.memory_space<vmem>>, %arg5: memref<2x128x256xf32, #tpu.memory_space<vmem>>, %arg6: memref<2x1x256xf32, #tpu.memory_space<vmem>>, %arg7: memref<2x256x128xf32, #tpu.memory_space<vmem>>, %arg8: memref<2x128x128xf32, #tpu.memory_space<vmem>>, %arg9: memref<128x32xf32, #tpu.memory_space<vmem>>, %arg10: memref<1x32xf32, #tpu.memory_space<vmem>>, %arg11: memref<2x56x32xf32, #tpu.memory_space<vmem>>) attributes {dimension_semantics = [#tpu.dimension_semantics<arbitrary>], iteration_bounds = array<i64: 1>, scalar_prefetch = 0 : i64, scratch_operands = 0 : i64, tpu.core_type = #tpu.core_type<tc>, window_params = [{pipeline_mode = #tpu.pipeline_mode<synchronous>, transform_indices = @transform_0, window_bounds = array<i64: 2, 56, 128>}, {pipeline_mode = #tpu.pipeline_mode<synchronous>, transform_indices = @transform_1, window_bounds = array<i64: 56, 128>}, {pipeline_mode = #tpu.pipeline_mode<synchronous>, transform_indices = @transform_2, window_bounds = array<i64: 2, 4, 128, 128>}, {pipeline_mode = #tpu.pipeline_mode<synchronous>, transform_indices = @transform_3, window_bounds = array<i64: 2, 16, 128>}, {pipeline_mode = #tpu.pipeline_mode<synchronous>, transform_indices = @transform_4, window_bounds = array<i64: 2, 128, 256>}, {pipeline_mode = #tpu.pipeline_mode<synchronous>, transform_indices = @transform_5, window_bounds = array<i64: 2, 1, 256>}, {pipeline_mode = #tpu.pipeline_mode<synchronous>, transform_indices = @transform_6, window_bounds = array<i64: 2, 256, 128>}, {pipeline_mode = #tpu.pipeline_mode<synchronous>, transform_indices = @transform_7, window_bounds = array<i64: 2, 128, 128>}, {pipeline_mode = #tpu.pipeline_mode<synchronous>, transform_indices = @transform_8, window_bounds = array<i64: 128, 32>}, {pipeline_mode = #tpu.pipeline_mode<synchronous>, transform_indices = @transform_9, window_bounds = array<i64: 1, 32>}, {pipeline_mode = #tpu.pipeline_mode<synchronous>, transform_indices = @transform_10, window_bounds = array<i64: 2, 56, 32>}]} {
    %c0 = arith.constant 0 : index
    %c0_0 = arith.constant 0 : index
    %c0_1 = arith.constant 0 : index
    %0 = vector.load %arg8[%c0, %c0_0, %c0_1] : memref<2x128x128xf32, #tpu.memory_space<vmem>>, vector<1x128x128xf32>
    %1 = vector.shape_cast %0 : vector<1x128x128xf32> to vector<128x128xf32>
    %c1 = arith.constant 1 : index
    %c0_2 = arith.constant 0 : index
    %c0_3 = arith.constant 0 : index
    %2 = vector.load %arg8[%c1, %c0_2, %c0_3] : memref<2x128x128xf32, #tpu.memory_space<vmem>>, vector<1x128x128xf32>
    %3 = vector.shape_cast %2 : vector<1x128x128xf32> to vector<128x128xf32>
    %c0_4 = arith.constant 0 : index
    %c0_5 = arith.constant 0 : index
    %4 = vector.load %arg2[%c0_4, %c0_5] : memref<56x128xf32, #tpu.memory_space<vmem>>, vector<56x128xf32>
    %c0_6 = arith.constant 0 : index
    %c0_7 = arith.constant 0 : index
    %c0_8 = arith.constant 0 : index
    %5 = vector.load %arg1[%c0_6, %c0_7, %c0_8] : memref<2x56x128xf32, #tpu.memory_space<vmem>>, vector<1x56x128xf32>
    %6 = vector.shape_cast %5 : vector<1x56x128xf32> to vector<56x128xf32>
    %7 = arith.addf %6, %4 : vector<56x128xf32>
    %c1_9 = arith.constant 1 : index
    %c0_10 = arith.constant 0 : index
    %c0_11 = arith.constant 0 : index
    %8 = vector.load %arg1[%c1_9, %c0_10, %c0_11] : memref<2x56x128xf32, #tpu.memory_space<vmem>>, vector<1x56x128xf32>
    %9 = vector.shape_cast %8 : vector<1x56x128xf32> to vector<56x128xf32>
    %10 = arith.addf %9, %4 : vector<56x128xf32>
    %11 = tpu.concatenate %7, %10 in 0 : vector<56x128xf32>, vector<56x128xf32> -> vector<112x128xf32>
    %c0_12 = arith.constant 0 : index
    %c0_13 = arith.constant 0 : index
    %c0_14 = arith.constant 0 : index
    %c0_15 = arith.constant 0 : index
    %12 = vector.load %arg3[%c0_12, %c0_13, %c0_14, %c0_15] : memref<2x4x128x128xf32, #tpu.memory_space<vmem>>, vector<1x1x128x128xf32>
    %13 = vector.shape_cast %12 : vector<1x1x128x128xf32> to vector<128x128xf32>
    %c0_16 = arith.constant 0 : index
    %c1_17 = arith.constant 1 : index
    %c0_18 = arith.constant 0 : index
    %c0_19 = arith.constant 0 : index
    %14 = vector.load %arg3[%c0_16, %c1_17, %c0_18, %c0_19] : memref<2x4x128x128xf32, #tpu.memory_space<vmem>>, vector<1x1x128x128xf32>
    %15 = vector.shape_cast %14 : vector<1x1x128x128xf32> to vector<128x128xf32>
    %c0_20 = arith.constant 0 : index
    %c2 = arith.constant 2 : index
    %c0_21 = arith.constant 0 : index
    %c0_22 = arith.constant 0 : index
    %16 = vector.load %arg3[%c0_20, %c2, %c0_21, %c0_22] : memref<2x4x128x128xf32, #tpu.memory_space<vmem>>, vector<1x1x128x128xf32>
    %17 = vector.shape_cast %16 : vector<1x1x128x128xf32> to vector<128x128xf32>
    %c0_23 = arith.constant 0 : index
    %c3 = arith.constant 3 : index
    %c0_24 = arith.constant 0 : index
    %c0_25 = arith.constant 0 : index
    %18 = vector.load %arg3[%c0_23, %c3, %c0_24, %c0_25] : memref<2x4x128x128xf32, #tpu.memory_space<vmem>>, vector<1x1x128x128xf32>
    %19 = vector.shape_cast %18 : vector<1x1x128x128xf32> to vector<128x128xf32>
    %c0_26 = arith.constant 0 : index
    %c0_27 = arith.constant 0 : index
    %c0_28 = arith.constant 0 : index
    %20 = vector.load %arg4[%c0_26, %c0_27, %c0_28] : memref<2x16x128xf32, #tpu.memory_space<vmem>>, vector<1x16x128xf32>
    %21 = vector.shape_cast %20 : vector<1x16x128xf32> to vector<16x128xf32>
    %22 = vector.extract_strided_slice %21 {offsets = [0, 0], sizes = [1, 128], strides = [1, 1]} : vector<16x128xf32> to vector<1x128xf32>
    %23 = vector.extract_strided_slice %21 {offsets = [1, 0], sizes = [1, 128], strides = [1, 1]} : vector<16x128xf32> to vector<1x128xf32>
    %24 = vector.extract_strided_slice %21 {offsets = [2, 0], sizes = [1, 128], strides = [1, 1]} : vector<16x128xf32> to vector<1x128xf32>
    %25 = vector.extract_strided_slice %21 {offsets = [3, 0], sizes = [1, 128], strides = [1, 1]} : vector<16x128xf32> to vector<1x128xf32>
    %26 = vector.extract_strided_slice %21 {offsets = [4, 0], sizes = [1, 128], strides = [1, 1]} : vector<16x128xf32> to vector<1x128xf32>
    %27 = vector.extract_strided_slice %21 {offsets = [5, 0], sizes = [1, 128], strides = [1, 1]} : vector<16x128xf32> to vector<1x128xf32>
    %28 = vector.extract_strided_slice %21 {offsets = [6, 0], sizes = [1, 128], strides = [1, 1]} : vector<16x128xf32> to vector<1x128xf32>
    %29 = vector.extract_strided_slice %21 {offsets = [7, 0], sizes = [1, 128], strides = [1, 1]} : vector<16x128xf32> to vector<1x128xf32>
    %30 = vector.extract_strided_slice %21 {offsets = [8, 0], sizes = [1, 128], strides = [1, 1]} : vector<16x128xf32> to vector<1x128xf32>
    %cst = arith.constant dense<0.000000e+00> : vector<112x128xf32>
    %31 = tpu.matmul %11, %15, %cst {dimension_numbers = #tpu.dot_dimension_numbers<[1], [0], [0], [1], [0, 0, 1, 1], [], []>} : vector<112x128xf32>, vector<128x128xf32>, vector<112x128xf32> -> vector<112x128xf32>
    %32 = vector.broadcast %23 : vector<1x128xf32> to vector<112x128xf32>
    %33 = arith.addf %31, %32 : vector<112x128xf32>
    %cst_29 = arith.constant dense<0.000000e+00> : vector<112x128xf32>
    %34 = tpu.matmul %11, %17, %cst_29 {dimension_numbers = #tpu.dot_dimension_numbers<[1], [0], [0], [1], [0, 0, 1, 1], [], []>} : vector<112x128xf32>, vector<128x128xf32>, vector<112x128xf32> -> vector<112x128xf32>
    %35 = vector.broadcast %24 : vector<1x128xf32> to vector<112x128xf32>
    %36 = arith.addf %34, %35 : vector<112x128xf32>
    %37 = vector.extract_strided_slice %33 {offsets = [0, 0], sizes = [56, 128], strides = [1, 1]} : vector<112x128xf32> to vector<56x128xf32>
    %38 = vector.extract_strided_slice %33 {offsets = [56, 0], sizes = [56, 128], strides = [1, 1]} : vector<112x128xf32> to vector<56x128xf32>
    %39 = vector.extract_strided_slice %36 {offsets = [0, 0], sizes = [56, 128], strides = [1, 1]} : vector<112x128xf32> to vector<56x128xf32>
    %40 = vector.extract_strided_slice %36 {offsets = [56, 0], sizes = [56, 128], strides = [1, 1]} : vector<112x128xf32> to vector<56x128xf32>
    %41 = vector.extract_strided_slice %11 {offsets = [0, 0], sizes = [56, 128], strides = [1, 1]} : vector<112x128xf32> to vector<56x128xf32>
    %cst_30 = arith.constant dense<0.000000e+00> : vector<56x128xf32>
    %42 = tpu.matmul %41, %13, %cst_30 {dimension_numbers = #tpu.dot_dimension_numbers<[1], [0], [0], [1], [0, 0, 1, 1], [], []>} : vector<56x128xf32>, vector<128x128xf32>, vector<56x128xf32> -> vector<56x128xf32>
    %43 = vector.broadcast %22 : vector<1x128xf32> to vector<56x128xf32>
    %44 = arith.addf %42, %43 : vector<56x128xf32>
    %45 = arith.mulf %44, %37 : vector<56x128xf32>
    %cst_31 = arith.constant dense<0.000000e+00> : vector<56x128xf32>
    %46 = tpu.matmul %45, %1, %cst_31 {dimension_numbers = #tpu.dot_dimension_numbers<[1], [0], [0], [1], [0, 0, 1, 1], [], []>} : vector<56x128xf32>, vector<128x128xf32>, vector<56x128xf32> -> vector<56x128xf32>
    %47 = arith.mulf %44, %38 : vector<56x128xf32>
    %cst_32 = arith.constant dense<0.000000e+00> : vector<56x128xf32>
    %48 = tpu.matmul %47, %1, %cst_32 {dimension_numbers = #tpu.dot_dimension_numbers<[1], [0], [0], [1], [0, 0, 1, 1], [], []>} : vector<56x128xf32>, vector<128x128xf32>, vector<56x128xf32> -> vector<56x128xf32>
    %49 = arith.subf %48, %46 : vector<56x128xf32>
    %50 = math.exp %49 : vector<56x128xf32>
    %cst_33 = arith.constant 1.000000e+00 : f32
    %51 = vector.broadcast %cst_33 : f32 to vector<56x128xf32>
    %52 = arith.addf %51, %50 : vector<56x128xf32>
    %53 = tpu.reciprocal %52 {approx = true} : vector<56x128xf32> -> vector<56x128xf32>
    %54 = arith.subf %39, %40 : vector<56x128xf32>
    %55 = arith.mulf %53, %54 : vector<56x128xf32>
    %56 = arith.addf %40, %55 : vector<56x128xf32>
    %57 = vector.extract_strided_slice %11 {offsets = [56, 0], sizes = [56, 128], strides = [1, 1]} : vector<112x128xf32> to vector<56x128xf32>
    %cst_34 = arith.constant dense<0.000000e+00> : vector<56x128xf32>
    %58 = tpu.matmul %57, %13, %cst_34 {dimension_numbers = #tpu.dot_dimension_numbers<[1], [0], [0], [1], [0, 0, 1, 1], [], []>} : vector<56x128xf32>, vector<128x128xf32>, vector<56x128xf32> -> vector<56x128xf32>
    %59 = vector.broadcast %22 : vector<1x128xf32> to vector<56x128xf32>
    %60 = arith.addf %58, %59 : vector<56x128xf32>
    %61 = arith.mulf %60, %37 : vector<56x128xf32>
    %cst_35 = arith.constant dense<0.000000e+00> : vector<56x128xf32>
    %62 = tpu.matmul %61, %1, %cst_35 {dimension_numbers = #tpu.dot_dimension_numbers<[1], [0], [0], [1], [0, 0, 1, 1], [], []>} : vector<56x128xf32>, vector<128x128xf32>, vector<56x128xf32> -> vector<56x128xf32>
    %63 = arith.mulf %60, %38 : vector<56x128xf32>
    %cst_36 = arith.constant dense<0.000000e+00> : vector<56x128xf32>
    %64 = tpu.matmul %63, %1, %cst_36 {dimension_numbers = #tpu.dot_dimension_numbers<[1], [0], [0], [1], [0, 0, 1, 1], [], []>} : vector<56x128xf32>, vector<128x128xf32>, vector<56x128xf32> -> vector<56x128xf32>
    %65 = arith.subf %64, %62 : vector<56x128xf32>
    %66 = math.exp %65 : vector<56x128xf32>
    %cst_37 = arith.constant 1.000000e+00 : f32
    %67 = vector.broadcast %cst_37 : f32 to vector<56x128xf32>
    %68 = arith.addf %67, %66 : vector<56x128xf32>
    %69 = tpu.reciprocal %68 {approx = true} : vector<56x128xf32> -> vector<56x128xf32>
    %70 = arith.subf %39, %40 : vector<56x128xf32>
    %71 = arith.mulf %69, %70 : vector<56x128xf32>
    %72 = arith.addf %40, %71 : vector<56x128xf32>
    %73 = tpu.concatenate %56, %72 in 0 : vector<56x128xf32>, vector<56x128xf32> -> vector<112x128xf32>
    %cst_38 = arith.constant dense<0.000000e+00> : vector<112x128xf32>
    %74 = tpu.matmul %73, %19, %cst_38 {dimension_numbers = #tpu.dot_dimension_numbers<[1], [0], [0], [1], [0, 0, 1, 1], [], []>} : vector<112x128xf32>, vector<128x128xf32>, vector<112x128xf32> -> vector<112x128xf32>
    %75 = vector.broadcast %25 : vector<1x128xf32> to vector<112x128xf32>
    %76 = arith.addf %74, %75 : vector<112x128xf32>
    %77 = arith.addf %11, %76 : vector<112x128xf32>
    %cst_39 = arith.constant dense<0.000000e+00> : vector<112x128xf32>
    %78 = tpu.matmul %77, %3, %cst_39 {dimension_numbers = #tpu.dot_dimension_numbers<[1], [0], [0], [1], [0, 0, 1, 1], [], []>} : vector<112x128xf32>, vector<128x128xf32>, vector<112x128xf32> -> vector<112x128xf32>
    %79 = arith.subf %77, %78 : vector<112x128xf32>
    %80 = arith.subf %77, %78 : vector<112x128xf32>
    %81 = arith.mulf %79, %80 : vector<112x128xf32>
    %cst_40 = arith.constant dense<0.000000e+00> : vector<112x128xf32>
    %82 = tpu.matmul %81, %3, %cst_40 {dimension_numbers = #tpu.dot_dimension_numbers<[1], [0], [0], [1], [0, 0, 1, 1], [], []>} : vector<112x128xf32>, vector<128x128xf32>, vector<112x128xf32> -> vector<112x128xf32>
    %83 = arith.subf %77, %78 : vector<112x128xf32>
    %cst_41 = arith.constant 9.99999974E-6 : f32
    %84 = vector.broadcast %cst_41 : f32 to vector<112x128xf32>
    %85 = arith.addf %82, %84 : vector<112x128xf32>
    %86 = math.rsqrt %85 : vector<112x128xf32>
    %87 = arith.mulf %83, %86 : vector<112x128xf32>
    %88 = vector.broadcast %26 : vector<1x128xf32> to vector<112x128xf32>
    %89 = arith.mulf %87, %88 : vector<112x128xf32>
    %90 = vector.broadcast %27 : vector<1x128xf32> to vector<112x128xf32>
    %91 = arith.addf %89, %90 : vector<112x128xf32>
    %c0_42 = arith.constant 0 : index
    %c0_43 = arith.constant 0 : index
    %c0_44 = arith.constant 0 : index
    %92 = vector.load %arg5[%c0_42, %c0_43, %c0_44] : memref<2x128x256xf32, #tpu.memory_space<vmem>>, vector<1x128x256xf32>
    %93 = vector.shape_cast %92 : vector<1x128x256xf32> to vector<128x256xf32>
    %cst_45 = arith.constant dense<0.000000e+00> : vector<112x256xf32>
    %94 = tpu.matmul %91, %93, %cst_45 {dimension_numbers = #tpu.dot_dimension_numbers<[1], [0], [0], [1], [0, 0, 1, 1], [], []>} : vector<112x128xf32>, vector<128x256xf32>, vector<112x256xf32> -> vector<112x256xf32>
    %c0_46 = arith.constant 0 : index
    %c0_47 = arith.constant 0 : index
    %c0_48 = arith.constant 0 : index
    %95 = vector.load %arg6[%c0_46, %c0_47, %c0_48] : memref<2x1x256xf32, #tpu.memory_space<vmem>>, vector<1x1x256xf32>
    %96 = vector.shape_cast %95 : vector<1x1x256xf32> to vector<1x256xf32>
    %97 = vector.broadcast %96 : vector<1x256xf32> to vector<112x256xf32>
    %98 = arith.addf %94, %97 : vector<112x256xf32>
    %cst_49 = arith.constant 0.000000e+00 : f32
    %99 = vector.broadcast %cst_49 : f32 to vector<112x256xf32>
    %100 = arith.maximumf %98, %99 : vector<112x256xf32>
    %c0_50 = arith.constant 0 : index
    %c0_51 = arith.constant 0 : index
    %c0_52 = arith.constant 0 : index
    %101 = vector.load %arg7[%c0_50, %c0_51, %c0_52] : memref<2x256x128xf32, #tpu.memory_space<vmem>>, vector<1x256x128xf32>
    %102 = vector.shape_cast %101 : vector<1x256x128xf32> to vector<256x128xf32>
    %cst_53 = arith.constant dense<0.000000e+00> : vector<112x128xf32>
    %103 = tpu.matmul %100, %102, %cst_53 {dimension_numbers = #tpu.dot_dimension_numbers<[1], [0], [0], [1], [0, 0, 1, 1], [], []>} : vector<112x256xf32>, vector<256x128xf32>, vector<112x128xf32> -> vector<112x128xf32>
    %104 = vector.broadcast %28 : vector<1x128xf32> to vector<112x128xf32>
    %105 = arith.addf %103, %104 : vector<112x128xf32>
    %106 = arith.addf %91, %105 : vector<112x128xf32>
    %cst_54 = arith.constant dense<0.000000e+00> : vector<112x128xf32>
    %107 = tpu.matmul %106, %3, %cst_54 {dimension_numbers = #tpu.dot_dimension_numbers<[1], [0], [0], [1], [0, 0, 1, 1], [], []>} : vector<112x128xf32>, vector<128x128xf32>, vector<112x128xf32> -> vector<112x128xf32>
    %108 = arith.subf %106, %107 : vector<112x128xf32>
    %109 = arith.subf %106, %107 : vector<112x128xf32>
    %110 = arith.mulf %108, %109 : vector<112x128xf32>
    %cst_55 = arith.constant dense<0.000000e+00> : vector<112x128xf32>
    %111 = tpu.matmul %110, %3, %cst_55 {dimension_numbers = #tpu.dot_dimension_numbers<[1], [0], [0], [1], [0, 0, 1, 1], [], []>} : vector<112x128xf32>, vector<128x128xf32>, vector<112x128xf32> -> vector<112x128xf32>
    %112 = arith.subf %106, %107 : vector<112x128xf32>
    %cst_56 = arith.constant 9.99999974E-6 : f32
    %113 = vector.broadcast %cst_56 : f32 to vector<112x128xf32>
    %114 = arith.addf %111, %113 : vector<112x128xf32>
    %115 = math.rsqrt %114 : vector<112x128xf32>
    %116 = arith.mulf %112, %115 : vector<112x128xf32>
    %117 = vector.broadcast %29 : vector<1x128xf32> to vector<112x128xf32>
    %118 = arith.mulf %116, %117 : vector<112x128xf32>
    %119 = vector.broadcast %30 : vector<1x128xf32> to vector<112x128xf32>
    %120 = arith.addf %118, %119 : vector<112x128xf32>
    %c1_57 = arith.constant 1 : index
    %c0_58 = arith.constant 0 : index
    %c0_59 = arith.constant 0 : index
    %c0_60 = arith.constant 0 : index
    %121 = vector.load %arg3[%c1_57, %c0_58, %c0_59, %c0_60] : memref<2x4x128x128xf32, #tpu.memory_space<vmem>>, vector<1x1x128x128xf32>
    %122 = vector.shape_cast %121 : vector<1x1x128x128xf32> to vector<128x128xf32>
    %c1_61 = arith.constant 1 : index
    %c1_62 = arith.constant 1 : index
    %c0_63 = arith.constant 0 : index
    %c0_64 = arith.constant 0 : index
    %123 = vector.load %arg3[%c1_61, %c1_62, %c0_63, %c0_64] : memref<2x4x128x128xf32, #tpu.memory_space<vmem>>, vector<1x1x128x128xf32>
    %124 = vector.shape_cast %123 : vector<1x1x128x128xf32> to vector<128x128xf32>
    %c1_65 = arith.constant 1 : index
    %c2_66 = arith.constant 2 : index
    %c0_67 = arith.constant 0 : index
    %c0_68 = arith.constant 0 : index
    %125 = vector.load %arg3[%c1_65, %c2_66, %c0_67, %c0_68] : memref<2x4x128x128xf32, #tpu.memory_space<vmem>>, vector<1x1x128x128xf32>
    %126 = vector.shape_cast %125 : vector<1x1x128x128xf32> to vector<128x128xf32>
    %c1_69 = arith.constant 1 : index
    %c3_70 = arith.constant 3 : index
    %c0_71 = arith.constant 0 : index
    %c0_72 = arith.constant 0 : index
    %127 = vector.load %arg3[%c1_69, %c3_70, %c0_71, %c0_72] : memref<2x4x128x128xf32, #tpu.memory_space<vmem>>, vector<1x1x128x128xf32>
    %128 = vector.shape_cast %127 : vector<1x1x128x128xf32> to vector<128x128xf32>
    %c1_73 = arith.constant 1 : index
    %c0_74 = arith.constant 0 : index
    %c0_75 = arith.constant 0 : index
    %129 = vector.load %arg4[%c1_73, %c0_74, %c0_75] : memref<2x16x128xf32, #tpu.memory_space<vmem>>, vector<1x16x128xf32>
    %130 = vector.shape_cast %129 : vector<1x16x128xf32> to vector<16x128xf32>
    %131 = vector.extract_strided_slice %130 {offsets = [0, 0], sizes = [1, 128], strides = [1, 1]} : vector<16x128xf32> to vector<1x128xf32>
    %132 = vector.extract_strided_slice %130 {offsets = [1, 0], sizes = [1, 128], strides = [1, 1]} : vector<16x128xf32> to vector<1x128xf32>
    %133 = vector.extract_strided_slice %130 {offsets = [2, 0], sizes = [1, 128], strides = [1, 1]} : vector<16x128xf32> to vector<1x128xf32>
    %134 = vector.extract_strided_slice %130 {offsets = [3, 0], sizes = [1, 128], strides = [1, 1]} : vector<16x128xf32> to vector<1x128xf32>
    %135 = vector.extract_strided_slice %130 {offsets = [4, 0], sizes = [1, 128], strides = [1, 1]} : vector<16x128xf32> to vector<1x128xf32>
    %136 = vector.extract_strided_slice %130 {offsets = [5, 0], sizes = [1, 128], strides = [1, 1]} : vector<16x128xf32> to vector<1x128xf32>
    %137 = vector.extract_strided_slice %130 {offsets = [6, 0], sizes = [1, 128], strides = [1, 1]} : vector<16x128xf32> to vector<1x128xf32>
    %138 = vector.extract_strided_slice %130 {offsets = [7, 0], sizes = [1, 128], strides = [1, 1]} : vector<16x128xf32> to vector<1x128xf32>
    %139 = vector.extract_strided_slice %130 {offsets = [8, 0], sizes = [1, 128], strides = [1, 1]} : vector<16x128xf32> to vector<1x128xf32>
    %cst_76 = arith.constant dense<0.000000e+00> : vector<112x128xf32>
    %140 = tpu.matmul %120, %124, %cst_76 {dimension_numbers = #tpu.dot_dimension_numbers<[1], [0], [0], [1], [0, 0, 1, 1], [], []>} : vector<112x128xf32>, vector<128x128xf32>, vector<112x128xf32> -> vector<112x128xf32>
    %141 = vector.broadcast %132 : vector<1x128xf32> to vector<112x128xf32>
    %142 = arith.addf %140, %141 : vector<112x128xf32>
    %cst_77 = arith.constant dense<0.000000e+00> : vector<112x128xf32>
    %143 = tpu.matmul %120, %126, %cst_77 {dimension_numbers = #tpu.dot_dimension_numbers<[1], [0], [0], [1], [0, 0, 1, 1], [], []>} : vector<112x128xf32>, vector<128x128xf32>, vector<112x128xf32> -> vector<112x128xf32>
    %144 = vector.broadcast %133 : vector<1x128xf32> to vector<112x128xf32>
    %145 = arith.addf %143, %144 : vector<112x128xf32>
    %146 = vector.extract_strided_slice %142 {offsets = [0, 0], sizes = [56, 128], strides = [1, 1]} : vector<112x128xf32> to vector<56x128xf32>
    %147 = vector.extract_strided_slice %142 {offsets = [56, 0], sizes = [56, 128], strides = [1, 1]} : vector<112x128xf32> to vector<56x128xf32>
    %148 = vector.extract_strided_slice %145 {offsets = [0, 0], sizes = [56, 128], strides = [1, 1]} : vector<112x128xf32> to vector<56x128xf32>
    %149 = vector.extract_strided_slice %145 {offsets = [56, 0], sizes = [56, 128], strides = [1, 1]} : vector<112x128xf32> to vector<56x128xf32>
    %150 = vector.extract_strided_slice %120 {offsets = [0, 0], sizes = [56, 128], strides = [1, 1]} : vector<112x128xf32> to vector<56x128xf32>
    %cst_78 = arith.constant dense<0.000000e+00> : vector<56x128xf32>
    %151 = tpu.matmul %150, %122, %cst_78 {dimension_numbers = #tpu.dot_dimension_numbers<[1], [0], [0], [1], [0, 0, 1, 1], [], []>} : vector<56x128xf32>, vector<128x128xf32>, vector<56x128xf32> -> vector<56x128xf32>
    %152 = vector.broadcast %131 : vector<1x128xf32> to vector<56x128xf32>
    %153 = arith.addf %151, %152 : vector<56x128xf32>
    %154 = arith.mulf %153, %146 : vector<56x128xf32>
    %cst_79 = arith.constant dense<0.000000e+00> : vector<56x128xf32>
    %155 = tpu.matmul %154, %1, %cst_79 {dimension_numbers = #tpu.dot_dimension_numbers<[1], [0], [0], [1], [0, 0, 1, 1], [], []>} : vector<56x128xf32>, vector<128x128xf32>, vector<56x128xf32> -> vector<56x128xf32>
    %156 = arith.mulf %153, %147 : vector<56x128xf32>
    %cst_80 = arith.constant dense<0.000000e+00> : vector<56x128xf32>
    %157 = tpu.matmul %156, %1, %cst_80 {dimension_numbers = #tpu.dot_dimension_numbers<[1], [0], [0], [1], [0, 0, 1, 1], [], []>} : vector<56x128xf32>, vector<128x128xf32>, vector<56x128xf32> -> vector<56x128xf32>
    %158 = arith.subf %157, %155 : vector<56x128xf32>
    %159 = math.exp %158 : vector<56x128xf32>
    %cst_81 = arith.constant 1.000000e+00 : f32
    %160 = vector.broadcast %cst_81 : f32 to vector<56x128xf32>
    %161 = arith.addf %160, %159 : vector<56x128xf32>
    %162 = tpu.reciprocal %161 {approx = true} : vector<56x128xf32> -> vector<56x128xf32>
    %163 = arith.subf %148, %149 : vector<56x128xf32>
    %164 = arith.mulf %162, %163 : vector<56x128xf32>
    %165 = arith.addf %149, %164 : vector<56x128xf32>
    %166 = vector.extract_strided_slice %120 {offsets = [56, 0], sizes = [56, 128], strides = [1, 1]} : vector<112x128xf32> to vector<56x128xf32>
    %cst_82 = arith.constant dense<0.000000e+00> : vector<56x128xf32>
    %167 = tpu.matmul %166, %122, %cst_82 {dimension_numbers = #tpu.dot_dimension_numbers<[1], [0], [0], [1], [0, 0, 1, 1], [], []>} : vector<56x128xf32>, vector<128x128xf32>, vector<56x128xf32> -> vector<56x128xf32>
    %168 = vector.broadcast %131 : vector<1x128xf32> to vector<56x128xf32>
    %169 = arith.addf %167, %168 : vector<56x128xf32>
    %170 = arith.mulf %169, %146 : vector<56x128xf32>
    %cst_83 = arith.constant dense<0.000000e+00> : vector<56x128xf32>
    %171 = tpu.matmul %170, %1, %cst_83 {dimension_numbers = #tpu.dot_dimension_numbers<[1], [0], [0], [1], [0, 0, 1, 1], [], []>} : vector<56x128xf32>, vector<128x128xf32>, vector<56x128xf32> -> vector<56x128xf32>
    %172 = arith.mulf %169, %147 : vector<56x128xf32>
    %cst_84 = arith.constant dense<0.000000e+00> : vector<56x128xf32>
    %173 = tpu.matmul %172, %1, %cst_84 {dimension_numbers = #tpu.dot_dimension_numbers<[1], [0], [0], [1], [0, 0, 1, 1], [], []>} : vector<56x128xf32>, vector<128x128xf32>, vector<56x128xf32> -> vector<56x128xf32>
    %174 = arith.subf %173, %171 : vector<56x128xf32>
    %175 = math.exp %174 : vector<56x128xf32>
    %cst_85 = arith.constant 1.000000e+00 : f32
    %176 = vector.broadcast %cst_85 : f32 to vector<56x128xf32>
    %177 = arith.addf %176, %175 : vector<56x128xf32>
    %178 = tpu.reciprocal %177 {approx = true} : vector<56x128xf32> -> vector<56x128xf32>
    %179 = arith.subf %148, %149 : vector<56x128xf32>
    %180 = arith.mulf %178, %179 : vector<56x128xf32>
    %181 = arith.addf %149, %180 : vector<56x128xf32>
    %182 = tpu.concatenate %165, %181 in 0 : vector<56x128xf32>, vector<56x128xf32> -> vector<112x128xf32>
    %cst_86 = arith.constant dense<0.000000e+00> : vector<112x128xf32>
    %183 = tpu.matmul %182, %128, %cst_86 {dimension_numbers = #tpu.dot_dimension_numbers<[1], [0], [0], [1], [0, 0, 1, 1], [], []>} : vector<112x128xf32>, vector<128x128xf32>, vector<112x128xf32> -> vector<112x128xf32>
    %184 = vector.broadcast %134 : vector<1x128xf32> to vector<112x128xf32>
    %185 = arith.addf %183, %184 : vector<112x128xf32>
    %186 = arith.addf %120, %185 : vector<112x128xf32>
    %cst_87 = arith.constant dense<0.000000e+00> : vector<112x128xf32>
    %187 = tpu.matmul %186, %3, %cst_87 {dimension_numbers = #tpu.dot_dimension_numbers<[1], [0], [0], [1], [0, 0, 1, 1], [], []>} : vector<112x128xf32>, vector<128x128xf32>, vector<112x128xf32> -> vector<112x128xf32>
    %188 = arith.subf %186, %187 : vector<112x128xf32>
    %189 = arith.subf %186, %187 : vector<112x128xf32>
    %190 = arith.mulf %188, %189 : vector<112x128xf32>
    %cst_88 = arith.constant dense<0.000000e+00> : vector<112x128xf32>
    %191 = tpu.matmul %190, %3, %cst_88 {dimension_numbers = #tpu.dot_dimension_numbers<[1], [0], [0], [1], [0, 0, 1, 1], [], []>} : vector<112x128xf32>, vector<128x128xf32>, vector<112x128xf32> -> vector<112x128xf32>
    %192 = arith.subf %186, %187 : vector<112x128xf32>
    %cst_89 = arith.constant 9.99999974E-6 : f32
    %193 = vector.broadcast %cst_89 : f32 to vector<112x128xf32>
    %194 = arith.addf %191, %193 : vector<112x128xf32>
    %195 = math.rsqrt %194 : vector<112x128xf32>
    %196 = arith.mulf %192, %195 : vector<112x128xf32>
    %197 = vector.broadcast %135 : vector<1x128xf32> to vector<112x128xf32>
    %198 = arith.mulf %196, %197 : vector<112x128xf32>
    %199 = vector.broadcast %136 : vector<1x128xf32> to vector<112x128xf32>
    %200 = arith.addf %198, %199 : vector<112x128xf32>
    %c1_90 = arith.constant 1 : index
    %c0_91 = arith.constant 0 : index
    %c0_92 = arith.constant 0 : index
    %201 = vector.load %arg5[%c1_90, %c0_91, %c0_92] : memref<2x128x256xf32, #tpu.memory_space<vmem>>, vector<1x128x256xf32>
    %202 = vector.shape_cast %201 : vector<1x128x256xf32> to vector<128x256xf32>
    %cst_93 = arith.constant dense<0.000000e+00> : vector<112x256xf32>
    %203 = tpu.matmul %200, %202, %cst_93 {dimension_numbers = #tpu.dot_dimension_numbers<[1], [0], [0], [1], [0, 0, 1, 1], [], []>} : vector<112x128xf32>, vector<128x256xf32>, vector<112x256xf32> -> vector<112x256xf32>
    %c1_94 = arith.constant 1 : index
    %c0_95 = arith.constant 0 : index
    %c0_96 = arith.constant 0 : index
    %204 = vector.load %arg6[%c1_94, %c0_95, %c0_96] : memref<2x1x256xf32, #tpu.memory_space<vmem>>, vector<1x1x256xf32>
    %205 = vector.shape_cast %204 : vector<1x1x256xf32> to vector<1x256xf32>
    %206 = vector.broadcast %205 : vector<1x256xf32> to vector<112x256xf32>
    %207 = arith.addf %203, %206 : vector<112x256xf32>
    %cst_97 = arith.constant 0.000000e+00 : f32
    %208 = vector.broadcast %cst_97 : f32 to vector<112x256xf32>
    %209 = arith.maximumf %207, %208 : vector<112x256xf32>
    %c1_98 = arith.constant 1 : index
    %c0_99 = arith.constant 0 : index
    %c0_100 = arith.constant 0 : index
    %210 = vector.load %arg7[%c1_98, %c0_99, %c0_100] : memref<2x256x128xf32, #tpu.memory_space<vmem>>, vector<1x256x128xf32>
    %211 = vector.shape_cast %210 : vector<1x256x128xf32> to vector<256x128xf32>
    %cst_101 = arith.constant dense<0.000000e+00> : vector<112x128xf32>
    %212 = tpu.matmul %209, %211, %cst_101 {dimension_numbers = #tpu.dot_dimension_numbers<[1], [0], [0], [1], [0, 0, 1, 1], [], []>} : vector<112x256xf32>, vector<256x128xf32>, vector<112x128xf32> -> vector<112x128xf32>
    %213 = vector.broadcast %137 : vector<1x128xf32> to vector<112x128xf32>
    %214 = arith.addf %212, %213 : vector<112x128xf32>
    %215 = arith.addf %200, %214 : vector<112x128xf32>
    %cst_102 = arith.constant dense<0.000000e+00> : vector<112x128xf32>
    %216 = tpu.matmul %215, %3, %cst_102 {dimension_numbers = #tpu.dot_dimension_numbers<[1], [0], [0], [1], [0, 0, 1, 1], [], []>} : vector<112x128xf32>, vector<128x128xf32>, vector<112x128xf32> -> vector<112x128xf32>
    %217 = arith.subf %215, %216 : vector<112x128xf32>
    %218 = arith.subf %215, %216 : vector<112x128xf32>
    %219 = arith.mulf %217, %218 : vector<112x128xf32>
    %cst_103 = arith.constant dense<0.000000e+00> : vector<112x128xf32>
    %220 = tpu.matmul %219, %3, %cst_103 {dimension_numbers = #tpu.dot_dimension_numbers<[1], [0], [0], [1], [0, 0, 1, 1], [], []>} : vector<112x128xf32>, vector<128x128xf32>, vector<112x128xf32> -> vector<112x128xf32>
    %221 = arith.subf %215, %216 : vector<112x128xf32>
    %cst_104 = arith.constant 9.99999974E-6 : f32
    %222 = vector.broadcast %cst_104 : f32 to vector<112x128xf32>
    %223 = arith.addf %220, %222 : vector<112x128xf32>
    %224 = math.rsqrt %223 : vector<112x128xf32>
    %225 = arith.mulf %221, %224 : vector<112x128xf32>
    %226 = vector.broadcast %138 : vector<1x128xf32> to vector<112x128xf32>
    %227 = arith.mulf %225, %226 : vector<112x128xf32>
    %228 = vector.broadcast %139 : vector<1x128xf32> to vector<112x128xf32>
    %229 = arith.addf %227, %228 : vector<112x128xf32>
    %c0_105 = arith.constant 0 : index
    %c0_106 = arith.constant 0 : index
    %230 = vector.load %arg9[%c0_105, %c0_106] : memref<128x32xf32, #tpu.memory_space<vmem>>, vector<128x32xf32>
    %cst_107 = arith.constant dense<0.000000e+00> : vector<112x32xf32>
    %231 = tpu.matmul %229, %230, %cst_107 {dimension_numbers = #tpu.dot_dimension_numbers<[1], [0], [0], [1], [0, 0, 1, 1], [], []>} : vector<112x128xf32>, vector<128x32xf32>, vector<112x32xf32> -> vector<112x32xf32>
    %c0_108 = arith.constant 0 : index
    %c0_109 = arith.constant 0 : index
    %232 = vector.load %arg10[%c0_108, %c0_109] : memref<1x32xf32, #tpu.memory_space<vmem>>, vector<1x32xf32>
    %233 = vector.broadcast %232 : vector<1x32xf32> to vector<112x32xf32>
    %234 = arith.addf %231, %233 : vector<112x32xf32>
    %cst_110 = arith.constant 0.000000e+00 : f32
    %235 = vector.broadcast %cst_110 : f32 to vector<112x32xf32>
    %236 = arith.subf %235, %234 : vector<112x32xf32>
    %237 = math.exp %236 : vector<112x32xf32>
    %cst_111 = arith.constant 1.000000e+00 : f32
    %238 = vector.broadcast %cst_111 : f32 to vector<112x32xf32>
    %239 = arith.addf %238, %237 : vector<112x32xf32>
    %cst_112 = arith.constant 1.000000e+00 : f32
    %240 = vector.broadcast %cst_112 : f32 to vector<112x32xf32>
    %241 = arith.divf %240, %239 : vector<112x32xf32>
    %242 = vector.extract_strided_slice %241 {offsets = [0, 0], sizes = [56, 32], strides = [1, 1]} : vector<112x32xf32> to vector<56x32xf32>
    %c0_113 = arith.constant 0 : index
    %c0_114 = arith.constant 0 : index
    %c0_115 = arith.constant 0 : index
    %243 = vector.load %arg11[%c0_113, %c0_114, %c0_115] : memref<2x56x32xf32, #tpu.memory_space<vmem>>, vector<1x56x32xf32>
    %244 = vector.shape_cast %243 : vector<1x56x32xf32> to vector<56x32xf32>
    %245 = vector.shape_cast %242 : vector<56x32xf32> to vector<1x56x32xf32>
    tpu.vector_store %arg11[%c0_113, %c0_114, %c0_115], %245 {strides = array<i32>} : memref<2x56x32xf32, #tpu.memory_space<vmem>>, vector<1x56x32xf32>,
    %246 = vector.extract_strided_slice %241 {offsets = [56, 0], sizes = [56, 32], strides = [1, 1]} : vector<112x32xf32> to vector<56x32xf32>
    %c1_116 = arith.constant 1 : index
    %c0_117 = arith.constant 0 : index
    %c0_118 = arith.constant 0 : index
    %247 = vector.load %arg11[%c1_116, %c0_117, %c0_118] : memref<2x56x32xf32, #tpu.memory_space<vmem>>, vector<1x56x32xf32>
    %248 = vector.shape_cast %247 : vector<1x56x32xf32> to vector<56x32xf32>
    %249 = vector.shape_cast %246 : vector<56x32xf32> to vector<1x56x32xf32>
    tpu.vector_store %arg11[%c1_116, %c0_117, %c0_118], %249 {strides = array<i32>} : memref<2x56x32xf32, #tpu.memory_space<vmem>>, vector<1x56x32xf32>,
    return
  }
  func.func @transform_0(%arg0: i32) -> (i32, i32, i32) {
    %c0_i32 = arith.constant 0 : i32
    %c0_i32_0 = arith.constant 0 : i32
    %c0_i32_1 = arith.constant 0 : i32
    %c0_i32_2 = arith.constant 0 : i32
    return %c0_i32, %c0_i32_0, %c0_i32_1 : i32, i32, i32
  }
  func.func @transform_1(%arg0: i32) -> (i32, i32) {
    %c0_i32 = arith.constant 0 : i32
    %c0_i32_0 = arith.constant 0 : i32
    %c0_i32_1 = arith.constant 0 : i32
    return %c0_i32, %c0_i32_0 : i32, i32
  }
  func.func @transform_2(%arg0: i32) -> (i32, i32, i32, i32) {
    %c0_i32 = arith.constant 0 : i32
    %c0_i32_0 = arith.constant 0 : i32
    %c0_i32_1 = arith.constant 0 : i32
    %c0_i32_2 = arith.constant 0 : i32
    %c0_i32_3 = arith.constant 0 : i32
    return %c0_i32, %c0_i32_0, %c0_i32_1, %c0_i32_2 : i32, i32, i32, i32
  }
  func.func @transform_3(%arg0: i32) -> (i32, i32, i32) {
    %c0_i32 = arith.constant 0 : i32
    %c0_i32_0 = arith.constant 0 : i32
    %c0_i32_1 = arith.constant 0 : i32
    %c0_i32_2 = arith.constant 0 : i32
    return %c0_i32, %c0_i32_0, %c0_i32_1 : i32, i32, i32
  }
  func.func @transform_4(%arg0: i32) -> (i32, i32, i32) {
    %c0_i32 = arith.constant 0 : i32
    %c0_i32_0 = arith.constant 0 : i32
    %c0_i32_1 = arith.constant 0 : i32
    %c0_i32_2 = arith.constant 0 : i32
    return %c0_i32, %c0_i32_0, %c0_i32_1 : i32, i32, i32
  }
  func.func @transform_5(%arg0: i32) -> (i32, i32, i32) {
    %c0_i32 = arith.constant 0 : i32
    %c0_i32_0 = arith.constant 0 : i32
    %c0_i32_1 = arith.constant 0 : i32
    %c0_i32_2 = arith.constant 0 : i32
    return %c0_i32, %c0_i32_0, %c0_i32_1 : i32, i32, i32
  }
  func.func @transform_6(%arg0: i32) -> (i32, i32, i32) {
    %c0_i32 = arith.constant 0 : i32
    %c0_i32_0 = arith.constant 0 : i32
    %c0_i32_1 = arith.constant 0 : i32
    %c0_i32_2 = arith.constant 0 : i32
    return %c0_i32, %c0_i32_0, %c0_i32_1 : i32, i32, i32
  }
  func.func @transform_7(%arg0: i32) -> (i32, i32, i32) {
    %c0_i32 = arith.constant 0 : i32
    %c0_i32_0 = arith.constant 0 : i32
    %c0_i32_1 = arith.constant 0 : i32
    %c0_i32_2 = arith.constant 0 : i32
    return %c0_i32, %c0_i32_0, %c0_i32_1 : i32, i32, i32
  }
  func.func @transform_8(%arg0: i32) -> (i32, i32) {
    %c0_i32 = arith.constant 0 : i32
    %c0_i32_0 = arith.constant 0 : i32
    %c0_i32_1 = arith.constant 0 : i32
    return %c0_i32, %c0_i32_0 : i32, i32
  }
  func.func @transform_9(%arg0: i32) -> (i32, i32) {
    %c0_i32 = arith.constant 0 : i32
    %c0_i32_0 = arith.constant 0 : i32
    %c0_i32_1 = arith.constant 0 : i32
    return %c0_i32, %c0_i32_0 : i32, i32
  }
  func.func @transform_10(%arg0: i32) -> (i32, i32, i32) {
    %c0_i32 = arith.constant 0 : i32
    %c0_i32_0 = arith.constant 0 : i32
    %c0_i32_1 = arith.constant 0 : i32
    %c0_i32_2 = arith.constant 0 : i32
    return %c0_i32, %c0_i32_0, %c0_i32_1 : i32, i32, i32
  }
}

</mosaic_0001>

<llo_original>
// kernel: forward.1
$region0: #{forward.1}
  #allocation0 [shape = 'u32[]', space=smem, size = 0x4, offset = 0x4, fixed_abs, tag = 'smem constant byte address 0x4 - core index']
  #allocation1 [shape = 'u32[144,128]{1,0:T(1,128)}', space=vmem, size = 0x12000, scoped, tag = 'internal scratch']
  %s0 = inlined_call_operand.vmem [shape: f32[2,56,128], index: 0, kind: input, shape index: {}]
  %s1 = inlined_call_operand.vmem [shape: f32[56,128], index: 1, kind: input, shape index: {}]
  %s2 = inlined_call_operand.vmem [shape: f32[2,4,128,128], index: 2, kind: input, shape index: {}]
  %s3 = inlined_call_operand.hbm [shape: f32[2,16,128], index: 3, kind: input, shape index: {}]
  %s4 = inlined_call_operand.vmem [shape: f32[2,128,256], index: 4, kind: input, shape index: {}]
  %s5 = inlined_call_operand.vmem [shape: f32[2,1,256], index: 5, kind: input, shape index: {}]
  %s6 = inlined_call_operand.vmem [shape: f32[2,256,128], index: 6, kind: input, shape index: {}]
  %s7 = inlined_call_operand.hbm [shape: f32[2,128,128], index: 7, kind: input, shape index: {}]
  %s8 = inlined_call_operand.vmem [shape: f32[128,32], index: 8, kind: input, shape index: {}]
  %s9 = inlined_call_operand.vmem [shape: f32[1,32], index: 9, kind: input, shape index: {}]
  %s10 = inlined_call_operand.vmem [shape: f32[2,56,32], index: 10, kind: output, shape index: {}]
  %s11 = sld [smem:[#allocation0]]
  $region58: #{forward.1} parent=0
    _
  %s13 = ssub.s32 1, %s11
  %s14 = scalar_select 0, %s13, %s11
  $region1: #{forward.1} parent=0
    #allocation2 [shape = 'u8[16384]{0}', space=vmem, size = 0x4000, scoped, tag = 'input window, operand 3, single buffered']
    #allocation3 [shape = 's32[1]{0}', space=sflag, size = 0x4, scoped, tag = 'scoped memory for forward.1']
    #allocation4 [shape = 'u8[131072]{0}', space=vmem, size = 0x20000, scoped, tag = 'input window, operand 7, single buffered']
    #allocation5 [shape = 's32[1]{0}', space=sflag, size = 0x4, scoped, tag = 'scoped memory for forward.1']
    %15 = vsyncpa [#allocation3], 0
    %16 = vsyncpa [#allocation5], 0
    // Predicated region
    $region2: #{forward.1} parent=1 // pred_check
      _
    $region3: #{forward.1} parent=1 // pred_check_branch
      %18 = sbr.rel (0) target = $region5
    $region4: #{forward.1} parent=1 // pred_region
      _
    $region5: #{forward.1} parent=1 // pred_fallthru
      _
    // Predicated region
    $region6: #{forward.1} parent=1 // pred_check
      _
    $region7: #{forward.1} parent=1 // pred_check_branch
      %20 = sbr.rel (0) target = $region9
    $region8: #{forward.1} parent=1 // pred_region
      _
    $region9: #{forward.1} parent=1 // pred_fallthru
      _
    // Predicated region
    $region10: #{forward.1} parent=1 // pred_check
      _
    $region11: #{forward.1} parent=1 // pred_check_branch
      %22 = sbr.rel (0) target = $region13
    $region12: #{forward.1} parent=1 // pred_region
      _
    $region13: #{forward.1} parent=1 // pred_fallthru
      _
    // Predicated region
    $region14: #{forward.1} parent=1 // pred_check
      _
    $region15: #{forward.1} parent=1 // pred_check_branch
      %24 = sbr.rel (0) target = $region17
    $region16: #{forward.1} parent=1 // pred_region
      %s26 = ssub.s32 512, 512
      %27 = vsyncadd [#allocation3], %s26
      %s28 = sshll.u32 [#allocation2], 4
      %s29 = int_to_ptr.vmem [resolvable:$true] %s28
      %34 = dma.hbm_to_vmem [thread:$0]  %s3, 512, %s29, [#allocation3], 128, 128, 8
    $region17: #{forward.1} parent=1 // pred_fallthru
      _
    // Predicated region
    $region18: #{forward.1} parent=1 // pred_check
      _
    $region19: #{forward.1} parent=1 // pred_check_branch
      %36 = sbr.rel (0) target = $region21
    $region20: #{forward.1} parent=1 // pred_region
      _
    $region21: #{forward.1} parent=1 // pred_fallthru
      _
    // Predicated region
    $region22: #{forward.1} parent=1 // pred_check
      _
    $region23: #{forward.1} parent=1 // pred_check_branch
      %38 = sbr.rel (0) target = $region25
    $region24: #{forward.1} parent=1 // pred_region
      _
    $region25: #{forward.1} parent=1 // pred_fallthru
      _
    // Predicated region
    $region26: #{forward.1} parent=1 // pred_check
      _
    $region27: #{forward.1} parent=1 // pred_check_branch
      %40 = sbr.rel (0) target = $region29
    $region28: #{forward.1} parent=1 // pred_region
      _
    $region29: #{forward.1} parent=1 // pred_fallthru
      _
    // Predicated region
    $region30: #{forward.1} parent=1 // pred_check
      _
    $region31: #{forward.1} parent=1 // pred_check_branch
      %42 = sbr.rel (0) target = $region33
    $region32: #{forward.1} parent=1 // pred_region
      %s44 = ssub.s32 4096, 4096
      %45 = vsyncadd [#allocation5], %s44
      %s46 = sshll.u32 [#allocation4], 4
      %s47 = int_to_ptr.vmem [resolvable:$true] %s46
      %52 = dma.hbm_to_vmem [thread:$0]  %s7, 4096, %s47, [#allocation5], 128, 128, 8
    $region33: #{forward.1} parent=1 // pred_fallthru
      _
    // Predicated region
    $region34: #{forward.1} parent=1 // pred_check
      _
    $region35: #{forward.1} parent=1 // pred_check_branch
      %54 = sbr.rel (0) target = $region37
    $region36: #{forward.1} parent=1 // pred_region
      _
    $region37: #{forward.1} parent=1 // pred_fallthru
      _
    // Predicated region
    $region38: #{forward.1} parent=1 // pred_check
      _
    $region39: #{forward.1} parent=1 // pred_check_branch
      %56 = sbr.rel (0) target = $region41
    $region40: #{forward.1} parent=1 // pred_region
      _
    $region41: #{forward.1} parent=1 // pred_fallthru
      _
    // Predicated region
    $region42: #{forward.1} parent=1 // pred_check
      _
    $region43: #{forward.1} parent=1 // pred_check_branch
      %58 = sbr.rel (0) target = $region45
    $region44: #{forward.1} parent=1 // pred_region
      %59 = dma.done [#allocation3], 512
    $region45: #{forward.1} parent=1 // pred_fallthru
      _
    // Predicated region
    $region46: #{forward.1} parent=1 // pred_check
      _
    $region47: #{forward.1} parent=1 // pred_check_branch
      %61 = sbr.rel (0) target = $region49
    $region48: #{forward.1} parent=1 // pred_region
      %62 = dma.done [#allocation5], 4096
    $region49: #{forward.1} parent=1 // pred_fallthru
      _
    %v63 = vld [vmem:[#allocation4] sm:$0xff]
    %v64 = vld [vmem:[#allocation4 + $0x8] sm:$0xff]
    %v65 = vld [vmem:[#allocation4 + $0x10] sm:$0xff]
    %v66 = vld [vmem:[#allocation4 + $0x18] sm:$0xff]
    %v67 = vld [vmem:[#allocation4 + $0x20] sm:$0xff]
    %v68 = vld [vmem:[#allocation4 + $0x28] sm:$0xff]
    %v69 = vld [vmem:[#allocation4 + $0x30] sm:$0xff]
    %v70 = vld [vmem:[#allocation4 + $0x38] sm:$0xff]
    %v71 = vld [vmem:[#allocation4 + $0x40] sm:$0xff]
    %v72 = vld [vmem:[#allocation4 + $0x48] sm:$0xff]
    %v73 = vld [vmem:[#allocation4 + $0x50] sm:$0xff]
    %v74 = vld [vmem:[#allocation4 + $0x58] sm:$0xff]
    %v75 = vld [vmem:[#allocation4 + $0x60] sm:$0xff]
    %v76 = vld [vmem:[#allocation4 + $0x68] sm:$0xff]
    %v77 = vld [vmem:[#allocation4 + $0x70] sm:$0xff]
    %v78 = vld [vmem:[#allocation4 + $0x78] sm:$0xff]
    %s79 = scalar_lea.vmem [#allocation4], 128
    %v80 = vld [vmem:[%s79] sm:$0xff]
    %v81 = vld [vmem:[%s79 + $0x8] sm:$0xff]
    %v82 = vld [vmem:[%s79 + $0x10] sm:$0xff]
    %v83 = vld [vmem:[%s79 + $0x18] sm:$0xff]
    %v84 = vld [vmem:[%s79 + $0x20] sm:$0xff]
    %v85 = vld [vmem:[%s79 + $0x28] sm:$0xff]
    %v86 = vld [vmem:[%s79 + $0x30] sm:$0xff]
    %v87 = vld [vmem:[%s79 + $0x38] sm:$0xff]
    %v88 = vld [vmem:[%s79 + $0x40] sm:$0xff]
    %v89 = vld [vmem:[%s79 + $0x48] sm:$0xff]
    %v90 = vld [vmem:[%s79 + $0x50] sm:$0xff]
    %v91 = vld [vmem:[%s79 + $0x58] sm:$0xff]
    %v92 = vld [vmem:[%s79 + $0x60] sm:$0xff]
    %v93 = vld [vmem:[%s79 + $0x68] sm:$0xff]
    %v94 = vld [vmem:[%s79 + $0x70] sm:$0xff]
    %v95 = vld [vmem:[%s79 + $0x78] sm:$0xff]
    %v96 = vld [vmem:[%s1] sm:$0xff]
    %v97 = vld [vmem:[%s1 + $0x8] sm:$0xff]
    %v98 = vld [vmem:[%s1 + $0x10] sm:$0xff]
    %v99 = vld [vmem:[%s1 + $0x18] sm:$0xff]
    %v100 = vld [vmem:[%s1 + $0x20] sm:$0xff]
    %v101 = vld [vmem:[%s1 + $0x28] sm:$0xff]
    %v102 = vld [vmem:[%s1 + $0x30] sm:$0xff]
    %v103 = vld [vmem:[%s0] sm:$0xff]
    %v104 = vld [vmem:[%s0 + $0x8] sm:$0xff]
    %v105 = vld [vmem:[%s0 + $0x10] sm:$0xff]
    %v106 = vld [vmem:[%s0 + $0x18] sm:$0xff]
    %v107 = vld [vmem:[%s0 + $0x20] sm:$0xff]
    %v108 = vld [vmem:[%s0 + $0x28] sm:$0xff]
    %v109 = vld [vmem:[%s0 + $0x30] sm:$0xff]
    %v110 = vadd.f32 %v103, %v96
    %v111 = vadd.f32 %v104, %v97
    %v112 = vadd.f32 %v105, %v98
    %v113 = vadd.f32 %v106, %v99
    %v114 = vadd.f32 %v107, %v100
    %v115 = vadd.f32 %v108, %v101
    %v116 = vadd.f32 %v109, %v102
    %s117 = scalar_lea.vmem %s0, 56
    %v118 = vld [vmem:[%s117] sm:$0xff]
    %v119 = vld [vmem:[%s117 + $0x8] sm:$0xff]
    %v120 = vld [vmem:[%s117 + $0x10] sm:$0xff]
    %v121 = vld [vmem:[%s117 + $0x18] sm:$0xff]
    %v122 = vld [vmem:[%s117 + $0x20] sm:$0xff]
    %v123 = vld [vmem:[%s117 + $0x28] sm:$0xff]
    %v124 = vld [vmem:[%s117 + $0x30] sm:$0xff]
    %v125 = vadd.f32 %v118, %v96
    %v126 = vadd.f32 %v119, %v97
    %v127 = vadd.f32 %v120, %v98
    %v128 = vadd.f32 %v121, %v99
    %v129 = vadd.f32 %v122, %v100
    %v130 = vadd.f32 %v123, %v101
    %v131 = vadd.f32 %v124, %v102
    %v132 = vld [vmem:[%s2] sm:$0xff]
    %v133 = vld [vmem:[%s2 + $0x8] sm:$0xff]
    %v134 = vld [vmem:[%s2 + $0x10] sm:$0xff]
    %v135 = vld [vmem:[%s2 + $0x18] sm:$0xff]
    %v136 = vld [vmem:[%s2 + $0x20] sm:$0xff]
    %v137 = vld [vmem:[%s2 + $0x28] sm:$0xff]
    %v138 = vld [vmem:[%s2 + $0x30] sm:$0xff]
    %v139 = vld [vmem:[%s2 + $0x38] sm:$0xff]
    %v140 = vld [vmem:[%s2 + $0x40] sm:$0xff]
    %v141 = vld [vmem:[%s2 + $0x48] sm:$0xff]
    %v142 = vld [vmem:[%s2 + $0x50] sm:$0xff]
    %v143 = vld [vmem:[%s2 + $0x58] sm:$0xff]
    %v144 = vld [vmem:[%s2 + $0x60] sm:$0xff]
    %v145 = vld [vmem:[%s2 + $0x68] sm:$0xff]
    %v146 = vld [vmem:[%s2 + $0x70] sm:$0xff]
    %v147 = vld [vmem:[%s2 + $0x78] sm:$0xff]
    %s148 = scalar_lea.vmem %s2, 128
    %v149 = vld [vmem:[%s148] sm:$0xff]
    %v150 = vld [vmem:[%s148 + $0x8] sm:$0xff]
    %v151 = vld [vmem:[%s148 + $0x10] sm:$0xff]
    %v152 = vld [vmem:[%s148 + $0x18] sm:$0xff]
    %v153 = vld [vmem:[%s148 + $0x20] sm:$0xff]
    %v154 = vld [vmem:[%s148 + $0x28] sm:$0xff]
    %v155 = vld [vmem:[%s148 + $0x30] sm:$0xff]
    %v156 = vld [vmem:[%s148 + $0x38] sm:$0xff]
    %v157 = vld [vmem:[%s148 + $0x40] sm:$0xff]
    %v158 = vld [vmem:[%s148 + $0x48] sm:$0xff]
    %v159 = vld [vmem:[%s148 + $0x50] sm:$0xff]
    %v160 = vld [vmem:[%s148 + $0x58] sm:$0xff]
    %v161 = vld [vmem:[%s148 + $0x60] sm:$0xff]
    %v162 = vld [vmem:[%s148 + $0x68] sm:$0xff]
    %v163 = vld [vmem:[%s148 + $0x70] sm:$0xff]
    %v164 = vld [vmem:[%s148 + $0x78] sm:$0xff]
    %s165 = scalar_lea.vmem %s2, 256
    %v166 = vld [vmem:[%s165] sm:$0xff]
    %v167 = vld [vmem:[%s165 + $0x8] sm:$0xff]
    %v168 = vld [vmem:[%s165 + $0x10] sm:$0xff]
    %v169 = vld [vmem:[%s165 + $0x18] sm:$0xff]
    %v170 = vld [vmem:[%s165 + $0x20] sm:$0xff]
    %v171 = vld [vmem:[%s165 + $0x28] sm:$0xff]
    %v172 = vld [vmem:[%s165 + $0x30] sm:$0xff]
    %v173 = vld [vmem:[%s165 + $0x38] sm:$0xff]
    %v174 = vld [vmem:[%s165 + $0x40] sm:$0xff]
    %v175 = vld [vmem:[%s165 + $0x48] sm:$0xff]
    %v176 = vld [vmem:[%s165 + $0x50] sm:$0xff]
    %v177 = vld [vmem:[%s165 + $0x58] sm:$0xff]
    %v178 = vld [vmem:[%s165 + $0x60] sm:$0xff]
    %v179 = vld [vmem:[%s165 + $0x68] sm:$0xff]
    %v180 = vld [vmem:[%s165 + $0x70] sm:$0xff]
    %v181 = vld [vmem:[%s165 + $0x78] sm:$0xff]
    %s182 = scalar_lea.vmem %s2, 384
    %v183 = vld [vmem:[%s182] sm:$0xff]
    %v184 = vld [vmem:[%s182 + $0x8] sm:$0xff]
    %v185 = vld [vmem:[%s182 + $0x10] sm:$0xff]
    %v186 = vld [vmem:[%s182 + $0x18] sm:$0xff]
    %v187 = vld [vmem:[%s182 + $0x20] sm:$0xff]
    %v188 = vld [vmem:[%s182 + $0x28] sm:$0xff]
    %v189 = vld [vmem:[%s182 + $0x30] sm:$0xff]
    %v190 = vld [vmem:[%s182 + $0x38] sm:$0xff]
    %v191 = vld [vmem:[%s182 + $0x40] sm:$0xff]
    %v192 = vld [vmem:[%s182 + $0x48] sm:$0xff]
    %v193 = vld [vmem:[%s182 + $0x50] sm:$0xff]
    %v194 = vld [vmem:[%s182 + $0x58] sm:$0xff]
    %v195 = vld [vmem:[%s182 + $0x60] sm:$0xff]
    %v196 = vld [vmem:[%s182 + $0x68] sm:$0xff]
    %v197 = vld [vmem:[%s182 + $0x70] sm:$0xff]
    %v198 = vld [vmem:[%s182 + $0x78] sm:$0xff]
    %v199 = vld [vmem:[#allocation2] sm:$0xff]
    %v200 = vld [vmem:[#allocation2 + $0x8] sm:$0xff]
    %v201 = vlaneseq
    %v202 = vshrl.u32 %v201, 7
    %v203 = vsub.s32 1, %v202
    %v204 = vrot.slane %v199, %v203
    %205 = vmatprep.subr.mxu0 0.0
    %206 = vmatpush1.msra.mxu0 %v149
    %207 = vmatprep.subr.mxu0 0.0
    %208 = vmatpush1.msra.mxu0 %v150
    %209 = vmatprep.subr.mxu0 0.0
    %210 = vmatpush1.msra.mxu0 %v151
    %211 = vmatprep.subr.mxu0 0.0
    %212 = vmatpush1.msra.mxu0 %v152
    %213 = vmatprep.subr.mxu0 0.0
    %214 = vmatpush1.msra.mxu0 %v153
    %215 = vmatprep.subr.mxu0 0.0
    %216 = vmatpush1.msra.mxu0 %v154
    %217 = vmatprep.subr.mxu0 0.0
    %218 = vmatpush1.msra.mxu0 %v155
    %219 = vmatprep.subr.mxu0 0.0
    %220 = vmatpush1.msra.mxu0 %v156
    %221 = vmatprep.subr.mxu0 0.0
    %222 = vmatpush1.msra.mxu0 %v157
    %223 = vmatprep.subr.mxu0 0.0
    %224 = vmatpush1.msra.mxu0 %v158
    %225 = vmatprep.subr.mxu0 0.0
    %226 = vmatpush1.msra.mxu0 %v159
    %227 = vmatprep.subr.mxu0 0.0
    %228 = vmatpush1.msra.mxu0 %v160
    %229 = vmatprep.subr.mxu0 0.0
    %230 = vmatpush1.msra.mxu0 %v161
    %231 = vmatprep.subr.mxu0 0.0
    %232 = vmatpush1.msra.mxu0 %v162
    %233 = vmatprep.subr.mxu0 0.0
    %234 = vmatpush1.msra.mxu0 %v163
    %235 = vmatprep.subr.mxu0 0.0
    %236 = vmatpush1.msra.mxu0 %v164
    %237 = vmatprep.subr.mxu0 0.0
    %238 = vmatpush1.msra.mxu0 0.0
    %239 = vmatprep.subr.mxu0 0.0
    %240 = vmatpush1.msra.mxu0 0.0
    %241 = vmatprep.subr.mxu0 0.0
    %242 = vmatpush1.msra.mxu0 0.0
    %243 = vmatprep.subr.mxu0 0.0
    %244 = vmatpush1.msra.mxu0 0.0
    %245 = vmatprep.subr.mxu0 0.0
    %246 = vmatpush1.msra.mxu0 0.0
    %247 = vmatprep.subr.mxu0 0.0
    %248 = vmatpush1.msra.mxu0 0.0
    %249 = vmatprep.subr.mxu0 0.0
    %250 = vmatpush1.msra.mxu0 0.0
    %251 = vmatprep.subr.mxu0 0.0
    %252 = vmatpush1.msra.mxu0 0.0
    %253 = vmatprep.subr.mxu0 0.0
    %254 = vmatpush1.msra.mxu0 0.0
    %255 = vmatprep.subr.mxu0 0.0
    %256 = vmatpush1.msra.mxu0 0.0
    %257 = vmatprep.subr.mxu0 0.0
    %258 = vmatpush1.msra.mxu0 0.0
    %259 = vmatprep.subr.mxu0 0.0
    %260 = vmatpush1.msra.mxu0 0.0
    %261 = vmatprep.subr.mxu0 0.0
    %262 = vmatpush1.msra.mxu0 0.0
    %263 = vmatprep.subr.mxu0 0.0
    %264 = vmatpush1.msra.mxu0 0.0
    %265 = vmatprep.subr.mxu0 0.0
    %266 = vmatpush1.msra.mxu0 0.0
    %267 = vmatprep.subr.mxu0 0.0
    %268 = vmatpush1.msra.mxu0 0.0
    %269 = vmatprep.mubr.f32.mxu0 0.0
    %270 = vmatmul.mubr.f32.gmra.mrb[0].mxu0 %v110
    %v271 = vpop.f32.mrb[0].mxu0
    %v272 = vadd.f32 %v204, %v271
    %v273 = vpop.f32.mrb[0].mxu0
    %274 = vmatprep.mubr.f32.mxu0 0.0
    %275 = vmatmul.mubr.f32.gmra.mrb[0].mxu0 %v111
    %v276 = vpop.f32.mrb[0].mxu0
    %v277 = vadd.f32 %v204, %v276
    %v278 = vpop.f32.mrb[0].mxu0
    %279 = vmatprep.mubr.f32.mxu0 0.0
    %280 = vmatmul.mubr.f32.gmra.mrb[0].mxu0 %v112
    %v281 = vpop.f32.mrb[0].mxu0
    %v282 = vadd.f32 %v204, %v281
    %v283 = vpop.f32.mrb[0].mxu0
    %284 = vmatprep.mubr.f32.mxu0 0.0
    %285 = vmatmul.mubr.f32.gmra.mrb[0].mxu0 %v113
    %v286 = vpop.f32.mrb[0].mxu0
    %v287 = vadd.f32 %v204, %v286
    %v288 = vpop.f32.mrb[0].mxu0
    %289 = vmatprep.mubr.f32.mxu0 0.0
    %290 = vmatmul.mubr.f32.gmra.mrb[0].mxu0 %v114
    %v291 = vpop.f32.mrb[0].mxu0
    %v292 = vadd.f32 %v204, %v291
    %v293 = vpop.f32.mrb[0].mxu0
    %294 = vmatprep.mubr.f32.mxu0 0.0
    %295 = vmatmul.mubr.f32.gmra.mrb[0].mxu0 %v115
    %v296 = vpop.f32.mrb[0].mxu0
    %v297 = vadd.f32 %v204, %v296
    %v298 = vpop.f32.mrb[0].mxu0
    %299 = vmatprep.mubr.f32.mxu0 0.0
    %300 = vmatmul.mubr.f32.gmra.mrb[0].mxu0 %v116
    %v301 = vpop.f32.mrb[0].mxu0
    %v302 = vadd.f32 %v204, %v301
    %v303 = vpop.f32.mrb[0].mxu0
    %304 = vmatprep.mubr.f32.mxu0 0.0
    %305 = vmatmul.mubr.f32.gmra.mrb[0].mxu0 %v125
    %v306 = vpop.f32.mrb[0].mxu0
    %v307 = vadd.f32 %v204, %v306
    %v308 = vpop.f32.mrb[0].mxu0
    %309 = vmatprep.mubr.f32.mxu0 0.0
    %310 = vmatmul.mubr.f32.gmra.mrb[0].mxu0 %v126
    %v311 = vpop.f32.mrb[0].mxu0
    %v312 = vadd.f32 %v204, %v311
    %v313 = vpop.f32.mrb[0].mxu0
    %314 = vmatprep.mubr.f32.mxu0 0.0
    %315 = vmatmul.mubr.f32.gmra.mrb[0].mxu0 %v127
    %v316 = vpop.f32.mrb[0].mxu0
    %v317 = vadd.f32 %v204, %v316
    %v318 = vpop.f32.mrb[0].mxu0
    %319 = vmatprep.mubr.f32.mxu0 0.0
    %320 = vmatmul.mubr.f32.gmra.mrb[0].mxu0 %v128
    %v321 = vpop.f32.mrb[0].mxu0
    %v322 = vadd.f32 %v204, %v321
    %v323 = vpop.f32.mrb[0].mxu0
    %324 = vmatprep.mubr.f32.mxu0 0.0
    %325 = vmatmul.mubr.f32.gmra.mrb[0].mxu0 %v129
    %v326 = vpop.f32.mrb[0].mxu0
    %v327 = vadd.f32 %v204, %v326
    %v328 = vpop.f32.mrb[0].mxu0
    %329 = vmatprep.mubr.f32.mxu0 0.0
    %330 = vmatmul.mubr.f32.gmra.mrb[0].mxu0 %v130
    %v331 = vpop.f32.mrb[0].mxu0
    %v332 = vadd.f32 %v204, %v331
    %v333 = vpop.f32.mrb[0].mxu0
    %334 = vmatprep.mubr.f32.mxu0 0.0
    %335 = vmatmul.mubr.f32.gmra.mrb[0].mxu0 %v131
    %v336 = vpop.f32.mrb[0].mxu0
    %v337 = vadd.f32 %v204, %v336
    %v338 = vpop.f32.mrb[0].mxu0
    %339 = vdwg.mxu0
    %v340 = vlaneseq
    %v341 = vshrl.u32 %v340, 7
    %v342 = vsub.s32 2, %v341
    %v343 = vrot.slane %v199, %v342
    %344 = vmatprep.subr.mxu0 0.0
    %345 = vmatpush1.msra.mxu0 %v166
    %346 = vmatprep.subr.mxu0 0.0
    %347 = vmatpush1.msra.mxu0 %v167
    %348 = vmatprep.subr.mxu0 0.0
    %349 = vmatpush1.msra.mxu0 %v168
    %350 = vmatprep.subr.mxu0 0.0
    %351 = vmatpush1.msra.mxu0 %v169
    %352 = vmatprep.subr.mxu0 0.0
    %353 = vmatpush1.msra.mxu0 %v170
    %354 = vmatprep.subr.mxu0 0.0
    %355 = vmatpush1.msra.mxu0 %v171
    %356 = vmatprep.subr.mxu0 0.0
    %357 = vmatpush1.msra.mxu0 %v172
    %358 = vmatprep.subr.mxu0 0.0
    %359 = vmatpush1.msra.mxu0 %v173
    %360 = vmatprep.subr.mxu0 0.0
    %361 = vmatpush1.msra.mxu0 %v174
    %362 = vmatprep.subr.mxu0 0.0
    %363 = vmatpush1.msra.mxu0 %v175
    %364 = vmatprep.subr.mxu0 0.0
    %365 = vmatpush1.msra.mxu0 %v176
    %366 = vmatprep.subr.mxu0 0.0
    %367 = vmatpush1.msra.mxu0 %v177
    %368 = vmatprep.subr.mxu0 0.0
    %369 = vmatpush1.msra.mxu0 %v178
    %370 = vmatprep.subr.mxu0 0.0
    %371 = vmatpush1.msra.mxu0 %v179
    %372 = vmatprep.subr.mxu0 0.0
    %373 = vmatpush1.msra.mxu0 %v180
    %374 = vmatprep.subr.mxu0 0.0
    %375 = vmatpush1.msra.mxu0 %v181
    %376 = vmatprep.subr.mxu0 0.0
    %377 = vmatpush1.msra.mxu0 0.0
    %378 = vmatprep.subr.mxu0 0.0
    %379 = vmatpush1.msra.mxu0 0.0
    %380 = vmatprep.subr.mxu0 0.0
    %381 = vmatpush1.msra.mxu0 0.0
    %382 = vmatprep.subr.mxu0 0.0
    %383 = vmatpush1.msra.mxu0 0.0
    %384 = vmatprep.subr.mxu0 0.0
    %385 = vmatpush1.msra.mxu0 0.0
    %386 = vmatprep.subr.mxu0 0.0
    %387 = vmatpush1.msra.mxu0 0.0
    %388 = vmatprep.subr.mxu0 0.0
    %389 = vmatpush1.msra.mxu0 0.0
    %390 = vmatprep.subr.mxu0 0.0
    %391 = vmatpush1.msra.mxu0 0.0
    %392 = vmatprep.subr.mxu0 0.0
    %393 = vmatpush1.msra.mxu0 0.0
    %394 = vmatprep.subr.mxu0 0.0
    %395 = vmatpush1.msra.mxu0 0.0
    %396 = vmatprep.subr.mxu0 0.0
    %397 = vmatpush1.msra.mxu0 0.0
    %398 = vmatprep.subr.mxu0 0.0
    %399 = vmatpush1.msra.mxu0 0.0
    %400 = vmatprep.subr.mxu0 0.0
    %401 = vmatpush1.msra.mxu0 0.0
    %402 = vmatprep.subr.mxu0 0.0
    %403 = vmatpush1.msra.mxu0 0.0
    %404 = vmatprep.subr.mxu0 0.0
    %405 = vmatpush1.msra.mxu0 0.0
    %406 = vmatprep.subr.mxu0 0.0
    %407 = vmatpush1.msra.mxu0 0.0
    %408 = vmatprep.mubr.f32.mxu0 0.0
    %409 = vmatmul.mubr.f32.gmra.mrb[0].mxu0 %v110
    %v410 = vpop.f32.mrb[0].mxu0
    %v411 = vadd.f32 %v343, %v410
    %v412 = vpop.f32.mrb[0].mxu0
    %413 = vmatprep.mubr.f32.mxu0 0.0
    %414 = vmatmul.mubr.f32.gmra.mrb[0].mxu0 %v111
    %v415 = vpop.f32.mrb[0].mxu0
    %v416 = vadd.f32 %v343, %v415
    %v417 = vpop.f32.mrb[0].mxu0
    %418 = vmatprep.mubr.f32.mxu0 0.0
    %419 = vmatmul.mubr.f32.gmra.mrb[0].mxu0 %v112
    %v420 = vpop.f32.mrb[0].mxu0
    %v421 = vadd.f32 %v343, %v420
    %v422 = vpop.f32.mrb[0].mxu0
    %423 = vmatprep.mubr.f32.mxu0 0.0
    %424 = vmatmul.mubr.f32.gmra.mrb[0].mxu0 %v113
    %v425 = vpop.f32.mrb[0].mxu0
    %v426 = vadd.f32 %v343, %v425
    %v427 = vpop.f32.mrb[0].mxu0
    %428 = vmatprep.mubr.f32.mxu0 0.0
    %429 = vmatmul.mubr.f32.gmra.mrb[0].mxu0 %v114
    %v430 = vpop.f32.mrb[0].mxu0
    %v431 = vadd.f32 %v343, %v430
    %v432 = vpop.f32.mrb[0].mxu0
    %433 = vmatprep.mubr.f32.mxu0 0.0
    %434 = vmatmul.mubr.f32.gmra.mrb[0].mxu0 %v115
    %v435 = vpop.f32.mrb[0].mxu0
    %v436 = vadd.f32 %v343, %v435
    %v437 = vpop.f32.mrb[0].mxu0
    %438 = vmatprep.mubr.f32.mxu0 0.0
    %439 = vmatmul.mubr.f32.gmra.mrb[0].mxu0 %v116
    %v440 = vpop.f32.mrb[0].mxu0
    %v441 = vadd.f32 %v343, %v440
    %v442 = vpop.f32.mrb[0].mxu0
    %443 = vmatprep.mubr.f32.mxu0 0.0
    %444 = vmatmul.mubr.f32.gmra.mrb[0].mxu0 %v125
    %v445 = vpop.f32.mrb[0].mxu0
    %v446 = vadd.f32 %v343, %v445
    %v447 = vpop.f32.mrb[0].mxu0
    %448 = vmatprep.mubr.f32.mxu0 0.0
    %449 = vmatmul.mubr.f32.gmra.mrb[0].mxu0 %v126
    %v450 = vpop.f32.mrb[0].mxu0
    %v451 = vadd.f32 %v343, %v450
    %v452 = vpop.f32.mrb[0].mxu0
    %453 = vmatprep.mubr.f32.mxu0 0.0
    %454 = vmatmul.mubr.f32.gmra.mrb[0].mxu0 %v127
    %v455 = vpop.f32.mrb[0].mxu0
    %v456 = vadd.f32 %v343, %v455
    %v457 = vpop.f32.mrb[0].mxu0
    %458 = vmatprep.mubr.f32.mxu0 0.0
    %459 = vmatmul.mubr.f32.gmra.mrb[0].mxu0 %v128
    %v460 = vpop.f32.mrb[0].mxu0
    %v461 = vadd.f32 %v343, %v460
    %v462 = vpop.f32.mrb[0].mxu0
    %463 = vmatprep.mubr.f32.mxu0 0.0
    %464 = vmatmul.mubr.f32.gmra.mrb[0].mxu0 %v129
    %v465 = vpop.f32.mrb[0].mxu0
    %v466 = vadd.f32 %v343, %v465
    %v467 = vpop.f32.mrb[0].mxu0
    %468 = vmatprep.mubr.f32.mxu0 0.0
    %469 = vmatmul.mubr.f32.gmra.mrb[0].mxu0 %v130
    %v470 = vpop.f32.mrb[0].mxu0
    %v471 = vadd.f32 %v343, %v470
    %v472 = vpop.f32.mrb[0].mxu0
    %473 = vmatprep.mubr.f32.mxu0 0.0
    %474 = vmatmul.mubr.f32.gmra.mrb[0].mxu0 %v131
    %v475 = vpop.f32.mrb[0].mxu0
    %v476 = vadd.f32 %v343, %v475
    %v477 = vpop.f32.mrb[0].mxu0
    %478 = vdwg.mxu0
    %v479 = vlaneseq
    %v480 = vshrl.u32 %v479, 7
    %v481 = vsub.s32 0, %v480
    %v482 = vrot.slane %v199, %v481
    %483 = vmatprep.subr.mxu0 0.0
    %484 = vmatpush1.msra.mxu0 %v132
    %485 = vmatprep.subr.mxu0 0.0
    %486 = vmatpush1.msra.mxu0 %v133
    %487 = vmatprep.subr.mxu0 0.0
    %488 = vmatpush1.msra.mxu0 %v134
    %489 = vmatprep.subr.mxu0 0.0
    %490 = vmatpush1.msra.mxu0 %v135
    %491 = vmatprep.subr.mxu0 0.0
    %492 = vmatpush1.msra.mxu0 %v136
    %493 = vmatprep.subr.mxu0 0.0
    %494 = vmatpush1.msra.mxu0 %v137
    %495 = vmatprep.subr.mxu0 0.0
    %496 = vmatpush1.msra.mxu0 %v138
    %497 = vmatprep.subr.mxu0 0.0
    %498 = vmatpush1.msra.mxu0 %v139
    %499 = vmatprep.subr.mxu0 0.0
    %500 = vmatpush1.msra.mxu0 %v140
    %501 = vmatprep.subr.mxu0 0.0
    %502 = vmatpush1.msra.mxu0 %v141
    %503 = vmatprep.subr.mxu0 0.0
    %504 = vmatpush1.msra.mxu0 %v142
    %505 = vmatprep.subr.mxu0 0.0
    %506 = vmatpush1.msra.mxu0 %v143
    %507 = vmatprep.subr.mxu0 0.0
    %508 = vmatpush1.msra.mxu0 %v144
    %509 = vmatprep.subr.mxu0 0.0
    %510 = vmatpush1.msra.mxu0 %v145
    %511 = vmatprep.subr.mxu0 0.0
    %512 = vmatpush1.msra.mxu0 %v146
    %513 = vmatprep.subr.mxu0 0.0
    %514 = vmatpush1.msra.mxu0 %v147
    %515 = vmatprep.subr.mxu0 0.0
    %516 = vmatpush1.msra.mxu0 0.0
    %517 = vmatprep.subr.mxu0 0.0
    %518 = vmatpush1.msra.mxu0 0.0
    %519 = vmatprep.subr.mxu0 0.0
    %520 = vmatpush1.msra.mxu0 0.0
    %521 = vmatprep.subr.mxu0 0.0
    %522 = vmatpush1.msra.mxu0 0.0
    %523 = vmatprep.subr.mxu0 0.0
    %524 = vmatpush1.msra.mxu0 0.0
    %525 = vmatprep.subr.mxu0 0.0
    %526 = vmatpush1.msra.mxu0 0.0
    %527 = vmatprep.subr.mxu0 0.0
    %528 = vmatpush1.msra.mxu0 0.0
    %529 = vmatprep.subr.mxu0 0.0
    %530 = vmatpush1.msra.mxu0 0.0
    %531 = vmatprep.subr.mxu0 0.0
    %532 = vmatpush1.msra.mxu0 0.0
    %533 = vmatprep.subr.mxu0 0.0
    %534 = vmatpush1.msra.mxu0 0.0
    %535 = vmatprep.subr.mxu0 0.0
    %536 = vmatpush1.msra.mxu0 0.0
    %537 = vmatprep.subr.mxu0 0.0
    %538 = vmatpush1.msra.mxu0 0.0
    %539 = vmatprep.subr.mxu0 0.0
    %540 = vmatpush1.msra.mxu0 0.0
    %541 = vmatprep.subr.mxu0 0.0
    %542 = vmatpush1.msra.mxu0 0.0
    %543 = vmatprep.subr.mxu0 0.0
    %544 = vmatpush1.msra.mxu0 0.0
    %545 = vmatprep.subr.mxu0 0.0
    %546 = vmatpush1.msra.mxu0 0.0
    %547 = vmatprep.mubr.f32.mxu0 0.0
    %548 = vmatmul.mubr.f32.gmra.mrb[0].mxu0 %v110
    %v549 = vpop.f32.mrb[0].mxu0
    %v550 = vadd.f32 %v482, %v549
    %v551 = vpop.f32.mrb[0].mxu0
    %552 = vmatprep.mubr.f32.mxu0 0.0
    %553 = vmatmul.mubr.f32.gmra.mrb[0].mxu0 %v111
    %v554 = vpop.f32.mrb[0].mxu0
    %v555 = vadd.f32 %v482, %v554
    %v556 = vpop.f32.mrb[0].mxu0
    %557 = vmatprep.mubr.f32.mxu0 0.0
    %558 = vmatmul.mubr.f32.gmra.mrb[0].mxu0 %v112
    %v559 = vpop.f32.mrb[0].mxu0
    %v560 = vadd.f32 %v482, %v559
    %v561 = vpop.f32.mrb[0].mxu0
    %562 = vmatprep.mubr.f32.mxu0 0.0
    %563 = vmatmul.mubr.f32.gmra.mrb[0].mxu0 %v113
    %v564 = vpop.f32.mrb[0].mxu0
    %v565 = vadd.f32 %v482, %v564
    %v566 = vpop.f32.mrb[0].mxu0
    %567 = vmatprep.mubr.f32.mxu0 0.0
    %568 = vmatmul.mubr.f32.gmra.mrb[0].mxu0 %v114
    %v569 = vpop.f32.mrb[0].mxu0
    %v570 = vadd.f32 %v482, %v569
    %v571 = vpop.f32.mrb[0].mxu0
    %572 = vmatprep.mubr.f32.mxu0 0.0
    %573 = vmatmul.mubr.f32.gmra.mrb[0].mxu0 %v115
    %v574 = vpop.f32.mrb[0].mxu0
    %v575 = vadd.f32 %v482, %v574
    %v576 = vpop.f32.mrb[0].mxu0
    %577 = vmatprep.mubr.f32.mxu0 0.0
    %578 = vmatmul.mubr.f32.gmra.mrb[0].mxu0 %v116
    %v579 = vpop.f32.mrb[0].mxu0
    %v580 = vadd.f32 %v482, %v579
    %v581 = vpop.f32.mrb[0].mxu0
    %582 = vdwg.mxu0
    %v583 = vmul.f32 %v550, %v272
    %v584 = vmul.f32 %v555, %v277
    %v585 = vmul.f32 %v560, %v282
    %v586 = vmul.f32 %v565, %v287
    %v587 = vmul.f32 %v570, %v292
    %v588 = vmul.f32 %v575, %v297
    %v589 = vmul.f32 %v580, %v302
    %590 = vmatprep.subr.mxu0 0.0
    %591 = vmatpush1.msra.mxu0 %v63
    %592 = vmatprep.subr.mxu0 0.0
    %593 = vmatpush1.msra.mxu0 %v64
    %594 = vmatprep.subr.mxu0 0.0
    %595 = vmatpush1.msra.mxu0 %v65
    %596 = vmatprep.subr.mxu0 0.0
    %597 = vmatpush1.msra.mxu0 %v66
    %598 = vmatprep.subr.mxu0 0.0
    %599 = vmatpush1.msra.mxu0 %v67
    %600 = vmatprep.subr.mxu0 0.0
    %601 = vmatpush1.msra.mxu0 %v68
    %602 = vmatprep.subr.mxu0 0.0
    %603 = vmatpush1.msra.mxu0 %v69
    %604 = vmatprep.subr.mxu0 0.0
    %605 = vmatpush1.msra.mxu0 %v70
    %606 = vmatprep.subr.mxu0 0.0
    %607 = vmatpush1.msra.mxu0 %v71
    %608 = vmatprep.subr.mxu0 0.0
    %609 = vmatpush1.msra.mxu0 %v72
    %610 = vmatprep.subr.mxu0 0.0
    %611 = vmatpush1.msra.mxu0 %v73
    %612 = vmatprep.subr.mxu0 0.0
    %613 = vmatpush1.msra.mxu0 %v74
    %614 = vmatprep.subr.mxu0 0.0
    %615 = vmatpush1.msra.mxu0 %v75
    %616 = vmatprep.subr.mxu0 0.0
    %617 = vmatpush1.msra.mxu0 %v76
    %618 = vmatprep.subr.mxu0 0.0
    %619 = vmatpush1.msra.mxu0 %v77
    %620 = vmatprep.subr.mxu0 0.0
    %621 = vmatpush1.msra.mxu0 %v78
    %622 = vmatprep.subr.mxu0 0.0
    %623 = vmatpush1.msra.mxu0 0.0
    %624 = vmatprep.subr.mxu0 0.0
    %625 = vmatpush1.msra.mxu0 0.0
    %626 = vmatprep.subr.mxu0 0.0
    %627 = vmatpush1.msra.mxu0 0.0
    %628 = vmatprep.subr.mxu0 0.0
    %629 = vmatpush1.msra.mxu0 0.0
    %630 = vmatprep.subr.mxu0 0.0
    %631 = vmatpush1.msra.mxu0 0.0
    %632 = vmatprep.subr.mxu0 0.0
    %633 = vmatpush1.msra.mxu0 0.0
    %634 = vmatprep.subr.mxu0 0.0
    %635 = vmatpush1.msra.mxu0 0.0
    %636 = vmatprep.subr.mxu0 0.0
    %637 = vmatpush1.msra.mxu0 0.0
    %638 = vmatprep.subr.mxu0 0.0
    %639 = vmatpush1.msra.mxu0 0.0
    %640 = vmatprep.subr.mxu0 0.0
    %641 = vmatpush1.msra.mxu0 0.0
    %642 = vmatprep.subr.mxu0 0.0
    %643 = vmatpush1.msra.mxu0 0.0
    %644 = vmatprep.subr.mxu0 0.0
    %645 = vmatpush1.msra.mxu0 0.0
    %646 = vmatprep.subr.mxu0 0.0
    %647 = vmatpush1.msra.mxu0 0.0
    %648 = vmatprep.subr.mxu0 0.0
    %649 = vmatpush1.msra.mxu0 0.0
    %650 = vmatprep.subr.mxu0 0.0
    %651 = vmatpush1.msra.mxu0 0.0
    %652 = vmatprep.subr.mxu0 0.0
    %653 = vmatpush1.msra.mxu0 0.0
    %654 = vmatprep.mubr.f32.mxu0 0.0
    %655 = vmatmul.mubr.f32.gmra.mrb[0].mxu0 %v583
    %v656 = vpop.f32.mrb[0].mxu0
    %v657 = vadd.f32 0.0, %v656
    %v658 = vpop.f32.mrb[0].mxu0
    %659 = vmatprep.mubr.f32.mxu0 0.0
    %660 = vmatmul.mubr.f32.gmra.mrb[0].mxu0 %v584
    %v661 = vpop.f32.mrb[0].mxu0
    %v662 = vadd.f32 0.0, %v661
    %v663 = vpop.f32.mrb[0].mxu0
    %664 = vmatprep.mubr.f32.mxu0 0.0
    %665 = vmatmul.mubr.f32.gmra.mrb[0].mxu0 %v585
    %v666 = vpop.f32.mrb[0].mxu0
    %v667 = vadd.f32 0.0, %v666
    %v668 = vpop.f32.mrb[0].mxu0
    %669 = vmatprep.mubr.f32.mxu0 0.0
    %670 = vmatmul.mubr.f32.gmra.mrb[0].mxu0 %v586
    %v671 = vpop.f32.mrb[0].mxu0
    %v672 = vadd.f32 0.0, %v671
    %v673 = vpop.f32.mrb[0].mxu0
    %674 = vmatprep.mubr.f32.mxu0 0.0
    %675 = vmatmul.mubr.f32.gmra.mrb[0].mxu0 %v587
    %v676 = vpop.f32.mrb[0].mxu0
    %v677 = vadd.f32 0.0, %v676
    %v678 = vpop.f32.mrb[0].mxu0
    %679 = vmatprep.mubr.f32.mxu0 0.0
    %680 = vmatmul.mubr.f32.gmra.mrb[0].mxu0 %v588
    %v681 = vpop.f32.mrb[0].mxu0
    %v682 = vadd.f32 0.0, %v681
    %v683 = vpop.f32.mrb[0].mxu0
    %684 = vmatprep.mubr.f32.mxu0 0.0
    %685 = vmatmul.mubr.f32.gmra.mrb[0].mxu0 %v589
    %v686 = vpop.f32.mrb[0].mxu0
    %v687 = vadd.f32 0.0, %v686
    %v688 = vpop.f32.mrb[0].mxu0
    %689 = vdwg.mxu0
    %v690 = vmul.f32 %v550, %v307
    %v691 = vmul.f32 %v555, %v312
    %v692 = vmul.f32 %v560, %v317
    %v693 = vmul.f32 %v565, %v322
    %v694 = vmul.f32 %v570, %v327
    %v695 = vmul.f32 %v575, %v332
    %v696 = vmul.f32 %v580, %v337
    %697 = vmatprep.subr.mxu0 0.0
    %698 = vmatpush1.msra.mxu0 %v63
    %699 = vmatprep.subr.mxu0 0.0
    %700 = vmatpush1.msra.mxu0 %v64
    %701 = vmatprep.subr.mxu0 0.0
    %702 = vmatpush1.msra.mxu0 %v65
    %703 = vmatprep.subr.mxu0 0.0
    %704 = vmatpush1.msra.mxu0 %v66
    %705 = vmatprep.subr.mxu0 0.0
    %706 = vmatpush1.msra.mxu0 %v67
    %707 = vmatprep.subr.mxu0 0.0
    %708 = vmatpush1.msra.mxu0 %v68
    %709 = vmatprep.subr.mxu0 0.0
    %710 = vmatpush1.msra.mxu0 %v69
    %711 = vmatprep.subr.mxu0 0.0
    %712 = vmatpush1.msra.mxu0 %v70
    %713 = vmatprep.subr.mxu0 0.0
    %714 = vmatpush1.msra.mxu0 %v71
    %715 = vmatprep.subr.mxu0 0.0
    %716 = vmatpush1.msra.mxu0 %v72
    %717 = vmatprep.subr.mxu0 0.0
    %718 = vmatpush1.msra.mxu0 %v73
    %719 = vmatprep.subr.mxu0 0.0
    %720 = vmatpush1.msra.mxu0 %v74
    %721 = vmatprep.subr.mxu0 0.0
    %722 = vmatpush1.msra.mxu0 %v75
    %723 = vmatprep.subr.mxu0 0.0
    %724 = vmatpush1.msra.mxu0 %v76
    %725 = vmatprep.subr.mxu0 0.0
    %726 = vmatpush1.msra.mxu0 %v77
    %727 = vmatprep.subr.mxu0 0.0
    %728 = vmatpush1.msra.mxu0 %v78
    %729 = vmatprep.subr.mxu0 0.0
    %730 = vmatpush1.msra.mxu0 0.0
    %731 = vmatprep.subr.mxu0 0.0
    %732 = vmatpush1.msra.mxu0 0.0
    %733 = vmatprep.subr.mxu0 0.0
    %734 = vmatpush1.msra.mxu0 0.0
    %735 = vmatprep.subr.mxu0 0.0
    %736 = vmatpush1.msra.mxu0 0.0
    %737 = vmatprep.subr.mxu0 0.0
    %738 = vmatpush1.msra.mxu0 0.0
    %739 = vmatprep.subr.mxu0 0.0
    %740 = vmatpush1.msra.mxu0 0.0
    %741 = vmatprep.subr.mxu0 0.0
    %742 = vmatpush1.msra.mxu0 0.0
    %743 = vmatprep.subr.mxu0 0.0
    %744 = vmatpush1.msra.mxu0 0.0
    %745 = vmatprep.subr.mxu0 0.0
    %746 = vmatpush1.msra.mxu0 0.0
    %747 = vmatprep.subr.mxu0 0.0
    %748 = vmatpush1.msra.mxu0 0.0
    %749 = vmatprep.subr.mxu0 0.0
    %750 = vmatpush1.msra.mxu0 0.0
    %751 = vmatprep.subr.mxu0 0.0
    %752 = vmatpush1.msra.mxu0 0.0
    %753 = vmatprep.subr.mxu0 0.0
    %754 = vmatpush1.msra.mxu0 0.0
    %755 = vmatprep.subr.mxu0 0.0
    %756 = vmatpush1.msra.mxu0 0.0
    %757 = vmatprep.subr.mxu0 0.0
    %758 = vmatpush1.msra.mxu0 0.0
    %759 = vmatprep.subr.mxu0 0.0
    %760 = vmatpush1.msra.mxu0 0.0
    %761 = vmatprep.mubr.f32.mxu0 0.0
    %762 = vmatmul.mubr.f32.gmra.mrb[0].mxu0 %v690
    %v763 = vpop.f32.mrb[0].mxu0
    %v764 = vadd.f32 0.0, %v763
    %v765 = vpop.f32.mrb[0].mxu0
    %766 = vmatprep.mubr.f32.mxu0 0.0
    %767 = vmatmul.mubr.f32.gmra.mrb[0].mxu0 %v691
    %v768 = vpop.f32.mrb[0].mxu0
    %v769 = vadd.f32 0.0, %v768
    %v770 = vpop.f32.mrb[0].mxu0
    %771 = vmatprep.mubr.f32.mxu0 0.0
    %772 = vmatmul.mubr.f32.gmra.mrb[0].mxu0 %v692
    %v773 = vpop.f32.mrb[0].mxu0
    %v774 = vadd.f32 0.0, %v773
    %v775 = vpop.f32.mrb[0].mxu0
    %776 = vmatprep.mubr.f32.mxu0 0.0
    %777 = vmatmul.mubr.f32.gmra.mrb[0].mxu0 %v693
    %v778 = vpop.f32.mrb[0].mxu0
    %v779 = vadd.f32 0.0, %v778
    %v780 = vpop.f32.mrb[0].mxu0
    %781 = vmatprep.mubr.f32.mxu0 0.0
    %782 = vmatmul.mubr.f32.gmra.mrb[0].mxu0 %v694
    %v783 = vpop.f32.mrb[0].mxu0
    %v784 = vadd.f32 0.0, %v783
    %v785 = vpop.f32.mrb[0].mxu0
    %786 = vmatprep.mubr.f32.mxu0 0.0
    %787 = vmatmul.mubr.f32.gmra.mrb[0].mxu0 %v695
    %v788 = vpop.f32.mrb[0].mxu0
    %v789 = vadd.f32 0.0, %v788
    %v790 = vpop.f32.mrb[0].mxu0
    %791 = vmatprep.mubr.f32.mxu0 0.0
    %792 = vmatmul.mubr.f32.gmra.mrb[0].mxu0 %v696
    %v793 = vpop.f32.mrb[0].mxu0
    %v794 = vadd.f32 0.0, %v793
    %v795 = vpop.f32.mrb[0].mxu0
    %796 = vdwg.mxu0
    %v797 = vsub.f32 %v764, %v657
    %v798 = vsub.f32 %v769, %v662
    %v799 = vsub.f32 %v774, %v667
    %v800 = vsub.f32 %v779, %v672
    %v801 = vsub.f32 %v784, %v677
    %v802 = vsub.f32 %v789, %v682
    %v803 = vsub.f32 %v794, %v687
    %v804 = vmul.f32 %v797, 1.442695
    %v805 = vpow.pop %v804
    %v806 = vmul.f32 %v798, 1.442695
    %v807 = vpow.pop %v806
    %v808 = vmul.f32 %v799, 1.442695
    %v809 = vpow.pop %v808
    %v810 = vmul.f32 %v800, 1.442695
    %v811 = vpow.pop %v810
    %v812 = vmul.f32 %v801, 1.442695
    %v813 = vpow.pop %v812
    %v814 = vmul.f32 %v802, 1.442695
    %v815 = vpow.pop %v814
    %v816 = vmul.f32 %v803, 1.442695
    %v817 = vpow.pop %v816
    %v818 = vadd.f32 %v805, 1.0
    %v819 = vadd.f32 %v807, 1.0
    %v820 = vadd.f32 %v809, 1.0
    %v821 = vadd.f32 %v811, 1.0
    %v822 = vadd.f32 %v813, 1.0
    %v823 = vadd.f32 %v815, 1.0
    %v824 = vadd.f32 %v817, 1.0
    %v825 = vrcp.pop %v818
    %v826 = vrcp.pop %v819
    %v827 = vrcp.pop %v820
    %v828 = vrcp.pop %v821
    %v829 = vrcp.pop %v822
    %v830 = vrcp.pop %v823
    %v831 = vrcp.pop %v824
    %v832 = vsub.f32 %v411, %v446
    %v833 = vsub.f32 %v416, %v451
    %v834 = vsub.f32 %v421, %v456
    %v835 = vsub.f32 %v426, %v461
    %v836 = vsub.f32 %v431, %v466
    %v837 = vsub.f32 %v436, %v471
    %v838 = vsub.f32 %v441, %v476
    %v839 = vmul.f32 %v825, %v832
    %v840 = vmul.f32 %v826, %v833
    %v841 = vmul.f32 %v827, %v834
    %v842 = vmul.f32 %v828, %v835
    %v843 = vmul.f32 %v829, %v836
    %v844 = vmul.f32 %v830, %v837
    %v845 = vmul.f32 %v831, %v838
    %v846 = vadd.f32 %v446, %v839
    %v847 = vadd.f32 %v451, %v840
    %v848 = vadd.f32 %v456, %v841
    %v849 = vadd.f32 %v461, %v842
    %v850 = vadd.f32 %v466, %v843
    %v851 = vadd.f32 %v471, %v844
    %v852 = vadd.f32 %v476, %v845
    %853 = vmatprep.subr.mxu0 0.0
    %854 = vmatpush1.msra.mxu0 %v132
    %855 = vmatprep.subr.mxu0 0.0
    %856 = vmatpush1.msra.mxu0 %v133
    %857 = vmatprep.subr.mxu0 0.0
    %858 = vmatpush1.msra.mxu0 %v134
    %859 = vmatprep.subr.mxu0 0.0
    %860 = vmatpush1.msra.mxu0 %v135
    %861 = vmatprep.subr.mxu0 0.0
    %862 = vmatpush1.msra.mxu0 %v136
    %863 = vmatprep.subr.mxu0 0.0
    %864 = vmatpush1.msra.mxu0 %v137
    %865 = vmatprep.subr.mxu0 0.0
    %866 = vmatpush1.msra.mxu0 %v138
    %867 = vmatprep.subr.mxu0 0.0
    %868 = vmatpush1.msra.mxu0 %v139
    %869 = vmatprep.subr.mxu0 0.0
    %870 = vmatpush1.msra.mxu0 %v140
    %871 = vmatprep.subr.mxu0 0.0
    %872 = vmatpush1.msra.mxu0 %v141
    %873 = vmatprep.subr.mxu0 0.0
    %874 = vmatpush1.msra.mxu0 %v142
    %875 = vmatprep.subr.mxu0 0.0
    %876 = vmatpush1.msra.mxu0 %v143
    %877 = vmatprep.subr.mxu0 0.0
    %878 = vmatpush1.msra.mxu0 %v144
    %879 = vmatprep.subr.mxu0 0.0
    %880 = vmatpush1.msra.mxu0 %v145
    %881 = vmatprep.subr.mxu0 0.0
    %882 = vmatpush1.msra.mxu0 %v146
    %883 = vmatprep.subr.mxu0 0.0
    %884 = vmatpush1.msra.mxu0 %v147
    %885 = vmatprep.subr.mxu0 0.0
    %886 = vmatpush1.msra.mxu0 0.0
    %887 = vmatprep.subr.mxu0 0.0
    %888 = vmatpush1.msra.mxu0 0.0
    %889 = vmatprep.subr.mxu0 0.0
    %890 = vmatpush1.msra.mxu0 0.0
    %891 = vmatprep.subr.mxu0 0.0
    %892 = vmatpush1.msra.mxu0 0.0
    %893 = vmatprep.subr.mxu0 0.0
    %894 = vmatpush1.msra.mxu0 0.0
    %895 = vmatprep.subr.mxu0 0.0
    %896 = vmatpush1.msra.mxu0 0.0
    %897 = vmatprep.subr.mxu0 0.0
    %898 = vmatpush1.msra.mxu0 0.0
    %899 = vmatprep.subr.mxu0 0.0
    %900 = vmatpush1.msra.mxu0 0.0
    %901 = vmatprep.subr.mxu0 0.0
    %902 = vmatpush1.msra.mxu0 0.0
    %903 = vmatprep.subr.mxu0 0.0
    %904 = vmatpush1.msra.mxu0 0.0
    %905 = vmatprep.subr.mxu0 0.0
    %906 = vmatpush1.msra.mxu0 0.0
    %907 = vmatprep.subr.mxu0 0.0
    %908 = vmatpush1.msra.mxu0 0.0
    %909 = vmatprep.subr.mxu0 0.0
    %910 = vmatpush1.msra.mxu0 0.0
    %911 = vmatprep.subr.mxu0 0.0
    %912 = vmatpush1.msra.mxu0 0.0
    %913 = vmatprep.subr.mxu0 0.0
    %914 = vmatpush1.msra.mxu0 0.0
    %915 = vmatprep.subr.mxu0 0.0
    %916 = vmatpush1.msra.mxu0 0.0
    %917 = vmatprep.mubr.f32.mxu0 0.0
    %918 = vmatmul.mubr.f32.gmra.mrb[0].mxu0 %v125
    %v919 = vpop.f32.mrb[0].mxu0
    %v920 = vadd.f32 %v482, %v919
    %v921 = vpop.f32.mrb[0].mxu0
    %922 = vmatprep.mubr.f32.mxu0 0.0
    %923 = vmatmul.mubr.f32.gmra.mrb[0].mxu0 %v126
    %v924 = vpop.f32.mrb[0].mxu0
    %v925 = vadd.f32 %v482, %v924
    %v926 = vpop.f32.mrb[0].mxu0
    %927 = vmatprep.mubr.f32.mxu0 0.0
    %928 = vmatmul.mubr.f32.gmra.mrb[0].mxu0 %v127
    %v929 = vpop.f32.mrb[0].mxu0
    %v930 = vadd.f32 %v482, %v929
    %v931 = vpop.f32.mrb[0].mxu0
    %932 = vmatprep.mubr.f32.mxu0 0.0
    %933 = vmatmul.mubr.f32.gmra.mrb[0].mxu0 %v128
    %v934 = vpop.f32.mrb[0].mxu0
    %v935 = vadd.f32 %v482, %v934
    %v936 = vpop.f32.mrb[0].mxu0
    %937 = vmatprep.mubr.f32.mxu0 0.0
    %938 = vmatmul.mubr.f32.gmra.mrb[0].mxu0 %v129
    %v939 = vpop.f32.mrb[0].mxu0
    %v940 = vadd.f32 %v482, %v939
    %v941 = vpop.f32.mrb[0].mxu0
    %942 = vmatprep.mubr.f32.mxu0 0.0
    %943 = vmatmul.mubr.f32.gmra.mrb[0].mxu0 %v130
    %v944 = vpop.f32.mrb[0].mxu0
    %v945 = vadd.f32 %v482, %v944
    %v946 = vpop.f32.mrb[0].mxu0
    %947 = vmatprep.mubr.f32.mxu0 0.0
    %948 = vmatmul.mubr.f32.gmra.mrb[0].mxu0 %v131
    %v949 = vpop.f32.mrb[0].mxu0
    %v950 = vadd.f32 %v482, %v949
    %v951 = vpop.f32.mrb[0].mxu0
    %952 = vdwg.mxu0
    %v953 = vmul.f32 %v920, %v272
    %v954 = vmul.f32 %v925, %v277
    %v955 = vmul.f32 %v930, %v282
    %v956 = vmul.f32 %v935, %v287
    %v957 = vmul.f32 %v940, %v292
    %v958 = vmul.f32 %v945, %v297
    %v959 = vmul.f32 %v950, %v302
    %960 = vmatprep.subr.mxu0 0.0
    %961 = vmatpush1.msra.mxu0 %v63
    %962 = vmatprep.subr.mxu0 0.0
    %963 = vmatpush1.msra.mxu0 %v64
    %964 = vmatprep.subr.mxu0 0.0
    %965 = vmatpush1.msra.mxu0 %v65
    %966 = vmatprep.subr.mxu0 0.0
    %967 = vmatpush1.msra.mxu0 %v66
    %968 = vmatprep.subr.mxu0 0.0
    %969 = vmatpush1.msra.mxu0 %v67
    %970 = vmatprep.subr.mxu0 0.0
    %971 = vmatpush1.msra.mxu0 %v68
    %972 = vmatprep.subr.mxu0 0.0
    %973 = vmatpush1.msra.mxu0 %v69
    %974 = vmatprep.subr.mxu0 0.0
    %975 = vmatpush1.msra.mxu0 %v70
    %976 = vmatprep.subr.mxu0 0.0
    %977 = vmatpush1.msra.mxu0 %v71
    %978 = vmatprep.subr.mxu0 0.0
    %979 = vmatpush1.msra.mxu0 %v72
    %980 = vmatprep.subr.mxu0 0.0
    %981 = vmatpush1.msra.mxu0 %v73
    %982 = vmatprep.subr.mxu0 0.0
    %983 = vmatpush1.msra.mxu0 %v74
    %984 = vmatprep.subr.mxu0 0.0
    %985 = vmatpush1.msra.mxu0 %v75
    %986 = vmatprep.subr.mxu0 0.0
    %987 = vmatpush1.msra.mxu0 %v76
    %988 = vmatprep.subr.mxu0 0.0
    %989 = vmatpush1.msra.mxu0 %v77
    %990 = vmatprep.subr.mxu0 0.0
    %991 = vmatpush1.msra.mxu0 %v78
    %992 = vmatprep.subr.mxu0 0.0
    %993 = vmatpush1.msra.mxu0 0.0
    %994 = vmatprep.subr.mxu0 0.0
    %995 = vmatpush1.msra.mxu0 0.0
    %996 = vmatprep.subr.mxu0 0.0
    %997 = vmatpush1.msra.mxu0 0.0
    %998 = vmatprep.subr.mxu0 0.0
    %999 = vmatpush1.msra.mxu0 0.0
    %1000 = vmatprep.subr.mxu0 0.0
    %1001 = vmatpush1.msra.mxu0 0.0
    %1002 = vmatprep.subr.mxu0 0.0
    %1003 = vmatpush1.msra.mxu0 0.0
    %1004 = vmatprep.subr.mxu0 0.0
    %1005 = vmatpush1.msra.mxu0 0.0
    %1006 = vmatprep.subr.mxu0 0.0
    %1007 = vmatpush1.msra.mxu0 0.0
    %1008 = vmatprep.subr.mxu0 0.0
    %1009 = vmatpush1.msra.mxu0 0.0
    %1010 = vmatprep.subr.mxu0 0.0
    %1011 = vmatpush1.msra.mxu0 0.0
    %1012 = vmatprep.subr.mxu0 0.0
    %1013 = vmatpush1.msra.mxu0 0.0
    %1014 = vmatprep.subr.mxu0 0.0
    %1015 = vmatpush1.msra.mxu0 0.0
    %1016 = vmatprep.subr.mxu0 0.0
    %1017 = vmatpush1.msra.mxu0 0.0
    %1018 = vmatprep.subr.mxu0 0.0
    %1019 = vmatpush1.msra.mxu0 0.0
    %1020 = vmatprep.subr.mxu0 0.0
    %1021 = vmatpush1.msra.mxu0 0.0
    %1022 = vmatprep.subr.mxu0 0.0
    %1023 = vmatpush1.msra.mxu0 0.0
    %1024 = vmatprep.mubr.f32.mxu0 0.0
    %1025 = vmatmul.mubr.f32.gmra.mrb[0].mxu0 %v953
    %v1026 = vpop.f32.mrb[0].mxu0
    %v1027 = vadd.f32 0.0, %v1026
    %v1028 = vpop.f32.mrb[0].mxu0
    %1029 = vmatprep.mubr.f32.mxu0 0.0
    %1030 = vmatmul.mubr.f32.gmra.mrb[0].mxu0 %v954
    %v1031 = vpop.f32.mrb[0].mxu0
    %v1032 = vadd.f32 0.0, %v1031
    %v1033 = vpop.f32.mrb[0].mxu0
    %1034 = vmatprep.mubr.f32.mxu0 0.0
    %1035 = vmatmul.mubr.f32.gmra.mrb[0].mxu0 %v955
    %v1036 = vpop.f32.mrb[0].mxu0
    %v1037 = vadd.f32 0.0, %v1036
    %v1038 = vpop.f32.mrb[0].mxu0
    %1039 = vmatprep.mubr.f32.mxu0 0.0
    %1040 = vmatmul.mubr.f32.gmra.mrb[0].mxu0 %v956
    %v1041 = vpop.f32.mrb[0].mxu0
    %v1042 = vadd.f32 0.0, %v1041
    %v1043 = vpop.f32.mrb[0].mxu0
    %1044 = vmatprep.mubr.f32.mxu0 0.0
    %1045 = vmatmul.mubr.f32.gmra.mrb[0].mxu0 %v957
    %v1046 = vpop.f32.mrb[0].mxu0
    %v1047 = vadd.f32 0.0, %v1046
    %v1048 = vpop.f32.mrb[0].mxu0
    %1049 = vmatprep.mubr.f32.mxu0 0.0
    %1050 = vmatmul.mubr.f32.gmra.mrb[0].mxu0 %v958
    %v1051 = vpop.f32.mrb[0].mxu0
    %v1052 = vadd.f32 0.0, %v1051
    %v1053 = vpop.f32.mrb[0].mxu0
    %1054 = vmatprep.mubr.f32.mxu0 0.0
    %1055 = vmatmul.mubr.f32.gmra.mrb[0].mxu0 %v959
    %v1056 = vpop.f32.mrb[0].mxu0
    %v1057 = vadd.f32 0.0, %v1056
    %v1058 = vpop.f32.mrb[0].mxu0
    %1059 = vdwg.mxu0
    %v1060 = vmul.f32 %v920, %v307
    %v1061 = vmul.f32 %v925, %v312
    %v1062 = vmul.f32 %v930, %v317
    %v1063 = vmul.f32 %v935, %v322
    %v1064 = vmul.f32 %v940, %v327
    %v1065 = vmul.f32 %v945, %v332
    %v1066 = vmul.f32 %v950, %v337
    %1067 = vmatprep.subr.mxu0 0.0
    %1068 = vmatpush1.msra.mxu0 %v63
    %1069 = vmatprep.subr.mxu0 0.0
    %1070 = vmatpush1.msra.mxu0 %v64
    %1071 = vmatprep.subr.mxu0 0.0
    %1072 = vmatpush1.msra.mxu0 %v65
    %1073 = vmatprep.subr.mxu0 0.0
    %1074 = vmatpush1.msra.mxu0 %v66
    %1075 = vmatprep.subr.mxu0 0.0
    %1076 = vmatpush1.msra.mxu0 %v67
    %1077 = vmatprep.subr.mxu0 0.0
    %1078 = vmatpush1.msra.mxu0 %v68
    %1079 = vmatprep.subr.mxu0 0.0
    %1080 = vmatpush1.msra.mxu0 %v69
    %1081 = vmatprep.subr.mxu0 0.0
    %1082 = vmatpush1.msra.mxu0 %v70
    %1083 = vmatprep.subr.mxu0 0.0
    %1084 = vmatpush1.msra.mxu0 %v71
    %1085 = vmatprep.subr.mxu0 0.0
    %1086 = vmatpush1.msra.mxu0 %v72
    %1087 = vmatprep.subr.mxu0 0.0
    %1088 = vmatpush1.msra.mxu0 %v73
    %1089 = vmatprep.subr.mxu0 0.0
    %1090 = vmatpush1.msra.mxu0 %v74
    %1091 = vmatprep.subr.mxu0 0.0
    %1092 = vmatpush1.msra.mxu0 %v75
    %1093 = vmatprep.subr.mxu0 0.0
    %1094 = vmatpush1.msra.mxu0 %v76
    %1095 = vmatprep.subr.mxu0 0.0
    %1096 = vmatpush1.msra.mxu0 %v77
    %1097 = vmatprep.subr.mxu0 0.0
    %1098 = vmatpush1.msra.mxu0 %v78
    %1099 = vmatprep.subr.mxu0 0.0
    %1100 = vmatpush1.msra.mxu0 0.0
    %1101 = vmatprep.subr.mxu0 0.0
    %1102 = vmatpush1.msra.mxu0 0.0
    %1103 = vmatprep.subr.mxu0 0.0
    %1104 = vmatpush1.msra.mxu0 0.0
    %1105 = vmatprep.subr.mxu0 0.0
    %1106 = vmatpush1.msra.mxu0 0.0
    %1107 = vmatprep.subr.mxu0 0.0
    %1108 = vmatpush1.msra.mxu0 0.0
    %1109 = vmatprep.subr.mxu0 0.0
    %1110 = vmatpush1.msra.mxu0 0.0
    %1111 = vmatprep.subr.mxu0 0.0
    %1112 = vmatpush1.msra.mxu0 0.0
    %1113 = vmatprep.subr.mxu0 0.0
    %1114 = vmatpush1.msra.mxu0 0.0
    %1115 = vmatprep.subr.mxu0 0.0
    %1116 = vmatpush1.msra.mxu0 0.0
    %1117 = vmatprep.subr.mxu0 0.0
    %1118 = vmatpush1.msra.mxu0 0.0
    %1119 = vmatprep.subr.mxu0 0.0
    %1120 = vmatpush1.msra.mxu0 0.0
    %1121 = vmatprep.subr.mxu0 0.0
    %1122 = vmatpush1.msra.mxu0 0.0
    %1123 = vmatprep.subr.mxu0 0.0
    %1124 = vmatpush1.msra.mxu0 0.0
    %1125 = vmatprep.subr.mxu0 0.0
    %1126 = vmatpush1.msra.mxu0 0.0
    %1127 = vmatprep.subr.mxu0 0.0
    %1128 = vmatpush1.msra.mxu0 0.0
    %1129 = vmatprep.subr.mxu0 0.0
    %1130 = vmatpush1.msra.mxu0 0.0
    %1131 = vmatprep.mubr.f32.mxu0 0.0
    %1132 = vmatmul.mubr.f32.gmra.mrb[0].mxu0 %v1060
    %v1133 = vpop.f32.mrb[0].mxu0
    %v1134 = vadd.f32 0.0, %v1133
    %v1135 = vpop.f32.mrb[0].mxu0
    %1136 = vmatprep.mubr.f32.mxu0 0.0
    %1137 = vmatmul.mubr.f32.gmra.mrb[0].mxu0 %v1061
    %v1138 = vpop.f32.mrb[0].mxu0
    %v1139 = vadd.f32 0.0, %v1138
    %v1140 = vpop.f32.mrb[0].mxu0
    %1141 = vmatprep.mubr.f32.mxu0 0.0
    %1142 = vmatmul.mubr.f32.gmra.mrb[0].mxu0 %v1062
    %v1143 = vpop.f32.mrb[0].mxu0
    %v1144 = vadd.f32 0.0, %v1143
    %v1145 = vpop.f32.mrb[0].mxu0
    %1146 = vmatprep.mubr.f32.mxu0 0.0
    %1147 = vmatmul.mubr.f32.gmra.mrb[0].mxu0 %v1063
    %v1148 = vpop.f32.mrb[0].mxu0
    %v1149 = vadd.f32 0.0, %v1148
    %v1150 = vpop.f32.mrb[0].mxu0
    %1151 = vmatprep.mubr.f32.mxu0 0.0
    %1152 = vmatmul.mubr.f32.gmra.mrb[0].mxu0 %v1064
    %v1153 = vpop.f32.mrb[0].mxu0
    %v1154 = vadd.f32 0.0, %v1153
    %v1155 = vpop.f32.mrb[0].mxu0
    %1156 = vmatprep.mubr.f32.mxu0 0.0
    %1157 = vmatmul.mubr.f32.gmra.mrb[0].mxu0 %v1065
    %v1158 = vpop.f32.mrb[0].mxu0
    %v1159 = vadd.f32 0.0, %v1158
    %v1160 = vpop.f32.mrb[0].mxu0
    %1161 = vmatprep.mubr.f32.mxu0 0.0
    %1162 = vmatmul.mubr.f32.gmra.mrb[0].mxu0 %v1066
    %v1163 = vpop.f32.mrb[0].mxu0
    %v1164 = vadd.f32 0.0, %v1163
    %v1165 = vpop.f32.mrb[0].mxu0
    %1166 = vdwg.mxu0
    %v1167 = vsub.f32 %v1134, %v1027
    %v1168 = vsub.f32 %v1139, %v1032
    %v1169 = vsub.f32 %v1144, %v1037
    %v1170 = vsub.f32 %v1149, %v1042
    %v1171 = vsub.f32 %v1154, %v1047
    %v1172 = vsub.f32 %v1159, %v1052
    %v1173 = vsub.f32 %v1164, %v1057
    %v1174 = vmul.f32 %v1167, 1.442695
    %v1175 = vpow.pop %v1174
    %v1176 = vmul.f32 %v1168, 1.442695
    %v1177 = vpow.pop %v1176
    %v1178 = vmul.f32 %v1169, 1.442695
    %v1179 = vpow.pop %v1178
    %v1180 = vmul.f32 %v1170, 1.442695
    %v1181 = vpow.pop %v1180
    %v1182 = vmul.f32 %v1171, 1.442695
    %v1183 = vpow.pop %v1182
    %v1184 = vmul.f32 %v1172, 1.442695
    %v1185 = vpow.pop %v1184
    %v1186 = vmul.f32 %v1173, 1.442695
    %v1187 = vpow.pop %v1186
    %v1188 = vadd.f32 %v1175, 1.0
    %v1189 = vadd.f32 %v1177, 1.0
    %v1190 = vadd.f32 %v1179, 1.0
    %v1191 = vadd.f32 %v1181, 1.0
    %v1192 = vadd.f32 %v1183, 1.0
    %v1193 = vadd.f32 %v1185, 1.0
    %v1194 = vadd.f32 %v1187, 1.0
    %v1195 = vrcp.pop %v1188
    %v1196 = vrcp.pop %v1189
    %v1197 = vrcp.pop %v1190
    %v1198 = vrcp.pop %v1191
    %v1199 = vrcp.pop %v1192
    %v1200 = vrcp.pop %v1193
    %v1201 = vrcp.pop %v1194
    %v1202 = vmul.f32 %v1195, %v832
    %v1203 = vmul.f32 %v1196, %v833
    %v1204 = vmul.f32 %v1197, %v834
    %v1205 = vmul.f32 %v1198, %v835
    %v1206 = vmul.f32 %v1199, %v836
    %v1207 = vmul.f32 %v1200, %v837
    %v1208 = vmul.f32 %v1201, %v838
    %v1209 = vadd.f32 %v446, %v1202
    %v1210 = vadd.f32 %v451, %v1203
    %v1211 = vadd.f32 %v456, %v1204
    %v1212 = vadd.f32 %v461, %v1205
    %v1213 = vadd.f32 %v466, %v1206
    %v1214 = vadd.f32 %v471, %v1207
    %v1215 = vadd.f32 %v476, %v1208
    %v1216 = vlaneseq
    %v1217 = vshrl.u32 %v1216, 7
    %v1218 = vsub.s32 3, %v1217
    %v1219 = vrot.slane %v199, %v1218
    %1220 = vmatprep.subr.mxu0 0.0
    %1221 = vmatpush1.msra.mxu0 %v183
    %1222 = vmatprep.subr.mxu0 0.0
    %1223 = vmatpush1.msra.mxu0 %v184
    %1224 = vmatprep.subr.mxu0 0.0
    %1225 = vmatpush1.msra.mxu0 %v185
    %1226 = vmatprep.subr.mxu0 0.0
    %1227 = vmatpush1.msra.mxu0 %v186
    %1228 = vmatprep.subr.mxu0 0.0
    %1229 = vmatpush1.msra.mxu0 %v187
    %1230 = vmatprep.subr.mxu0 0.0
    %1231 = vmatpush1.msra.mxu0 %v188
    %1232 = vmatprep.subr.mxu0 0.0
    %1233 = vmatpush1.msra.mxu0 %v189
    %1234 = vmatprep.subr.mxu0 0.0
    %1235 = vmatpush1.msra.mxu0 %v190
    %1236 = vmatprep.subr.mxu0 0.0
    %1237 = vmatpush1.msra.mxu0 %v191
    %1238 = vmatprep.subr.mxu0 0.0
    %1239 = vmatpush1.msra.mxu0 %v192
    %1240 = vmatprep.subr.mxu0 0.0
    %1241 = vmatpush1.msra.mxu0 %v193
    %1242 = vmatprep.subr.mxu0 0.0
    %1243 = vmatpush1.msra.mxu0 %v194
    %1244 = vmatprep.subr.mxu0 0.0
    %1245 = vmatpush1.msra.mxu0 %v195
    %1246 = vmatprep.subr.mxu0 0.0
    %1247 = vmatpush1.msra.mxu0 %v196
    %1248 = vmatprep.subr.mxu0 0.0
    %1249 = vmatpush1.msra.mxu0 %v197
    %1250 = vmatprep.subr.mxu0 0.0
    %1251 = vmatpush1.msra.mxu0 %v198
    %1252 = vmatprep.subr.mxu0 0.0
    %1253 = vmatpush1.msra.mxu0 0.0
    %1254 = vmatprep.subr.mxu0 0.0
    %1255 = vmatpush1.msra.mxu0 0.0
    %1256 = vmatprep.subr.mxu0 0.0
    %1257 = vmatpush1.msra.mxu0 0.0
    %1258 = vmatprep.subr.mxu0 0.0
    %1259 = vmatpush1.msra.mxu0 0.0
    %1260 = vmatprep.subr.mxu0 0.0
    %1261 = vmatpush1.msra.mxu0 0.0
    %1262 = vmatprep.subr.mxu0 0.0
    %1263 = vmatpush1.msra.mxu0 0.0
    %1264 = vmatprep.subr.mxu0 0.0
    %1265 = vmatpush1.msra.mxu0 0.0
    %1266 = vmatprep.subr.mxu0 0.0
    %1267 = vmatpush1.msra.mxu0 0.0
    %1268 = vmatprep.subr.mxu0 0.0
    %1269 = vmatpush1.msra.mxu0 0.0
    %1270 = vmatprep.subr.mxu0 0.0
    %1271 = vmatpush1.msra.mxu0 0.0
    %1272 = vmatprep.subr.mxu0 0.0
    %1273 = vmatpush1.msra.mxu0 0.0
    %1274 = vmatprep.subr.mxu0 0.0
    %1275 = vmatpush1.msra.mxu0 0.0
    %1276 = vmatprep.subr.mxu0 0.0
    %1277 = vmatpush1.msra.mxu0 0.0
    %1278 = vmatprep.subr.mxu0 0.0
    %1279 = vmatpush1.msra.mxu0 0.0
    %1280 = vmatprep.subr.mxu0 0.0
    %1281 = vmatpush1.msra.mxu0 0.0
    %1282 = vmatprep.subr.mxu0 0.0
    %1283 = vmatpush1.msra.mxu0 0.0
    %1284 = vmatprep.mubr.f32.mxu0 0.0
    %1285 = vmatmul.mubr.f32.gmra.mrb[0].mxu0 %v846
    %v1286 = vpop.f32.mrb[0].mxu0
    %v1287 = vadd.f32 %v1219, %v1286
    %v1288 = vpop.f32.mrb[0].mxu0
    %1289 = vmatprep.mubr.f32.mxu0 0.0
    %1290 = vmatmul.mubr.f32.gmra.mrb[0].mxu0 %v847
    %v1291 = vpop.f32.mrb[0].mxu0
    %v1292 = vadd.f32 %v1219, %v1291
    %v1293 = vpop.f32.mrb[0].mxu0
    %1294 = vmatprep.mubr.f32.mxu0 0.0
    %1295 = vmatmul.mubr.f32.gmra.mrb[0].mxu0 %v848
    %v1296 = vpop.f32.mrb[0].mxu0
    %v1297 = vadd.f32 %v1219, %v1296
    %v1298 = vpop.f32.mrb[0].mxu0
    %1299 = vmatprep.mubr.f32.mxu0 0.0
    %1300 = vmatmul.mubr.f32.gmra.mrb[0].mxu0 %v849
    %v1301 = vpop.f32.mrb[0].mxu0
    %v1302 = vadd.f32 %v1219, %v1301
    %v1303 = vpop.f32.mrb[0].mxu0
    %1304 = vmatprep.mubr.f32.mxu0 0.0
    %1305 = vmatmul.mubr.f32.gmra.mrb[0].mxu0 %v850
    %v1306 = vpop.f32.mrb[0].mxu0
    %v1307 = vadd.f32 %v1219, %v1306
    %v1308 = vpop.f32.mrb[0].mxu0
    %1309 = vmatprep.mubr.f32.mxu0 0.0
    %1310 = vmatmul.mubr.f32.gmra.mrb[0].mxu0 %v851
    %v1311 = vpop.f32.mrb[0].mxu0
    %v1312 = vadd.f32 %v1219, %v1311
    %v1313 = vpop.f32.mrb[0].mxu0
    %1314 = vmatprep.mubr.f32.mxu0 0.0
    %1315 = vmatmul.mubr.f32.gmra.mrb[0].mxu0 %v852
    %v1316 = vpop.f32.mrb[0].mxu0
    %v1317 = vadd.f32 %v1219, %v1316
    %v1318 = vpop.f32.mrb[0].mxu0
    %1319 = vmatprep.mubr.f32.mxu0 0.0
    %1320 = vmatmul.mubr.f32.gmra.mrb[0].mxu0 %v1209
    %v1321 = vpop.f32.mrb[0].mxu0
    %v1322 = vadd.f32 %v1219, %v1321
    %v1323 = vpop.f32.mrb[0].mxu0
    %1324 = vmatprep.mubr.f32.mxu0 0.0
    %1325 = vmatmul.mubr.f32.gmra.mrb[0].mxu0 %v1210
    %v1326 = vpop.f32.mrb[0].mxu0
    %v1327 = vadd.f32 %v1219, %v1326
    %v1328 = vpop.f32.mrb[0].mxu0
    %1329 = vmatprep.mubr.f32.mxu0 0.0
    %1330 = vmatmul.mubr.f32.gmra.mrb[0].mxu0 %v1211
    %v1331 = vpop.f32.mrb[0].mxu0
    %v1332 = vadd.f32 %v1219, %v1331
    %v1333 = vpop.f32.mrb[0].mxu0
    %1334 = vmatprep.mubr.f32.mxu0 0.0
    %1335 = vmatmul.mubr.f32.gmra.mrb[0].mxu0 %v1212
    %v1336 = vpop.f32.mrb[0].mxu0
    %v1337 = vadd.f32 %v1219, %v1336
    %v1338 = vpop.f32.mrb[0].mxu0
    %1339 = vmatprep.mubr.f32.mxu0 0.0
    %1340 = vmatmul.mubr.f32.gmra.mrb[0].mxu0 %v1213
    %v1341 = vpop.f32.mrb[0].mxu0
    %v1342 = vadd.f32 %v1219, %v1341
    %v1343 = vpop.f32.mrb[0].mxu0
    %1344 = vmatprep.mubr.f32.mxu0 0.0
    %1345 = vmatmul.mubr.f32.gmra.mrb[0].mxu0 %v1214
    %v1346 = vpop.f32.mrb[0].mxu0
    %v1347 = vadd.f32 %v1219, %v1346
    %v1348 = vpop.f32.mrb[0].mxu0
    %1349 = vmatprep.mubr.f32.mxu0 0.0
    %1350 = vmatmul.mubr.f32.gmra.mrb[0].mxu0 %v1215
    %v1351 = vpop.f32.mrb[0].mxu0
    %v1352 = vadd.f32 %v1219, %v1351
    %v1353 = vpop.f32.mrb[0].mxu0
    %1354 = vdwg.mxu0
    %v1355 = vadd.f32 %v110, %v1287
    %v1356 = vadd.f32 %v111, %v1292
    %v1357 = vadd.f32 %v112, %v1297
    %v1358 = vadd.f32 %v113, %v1302
    %v1359 = vadd.f32 %v114, %v1307
    %v1360 = vadd.f32 %v115, %v1312
    %v1361 = vadd.f32 %v116, %v1317
    %v1362 = vadd.f32 %v125, %v1322
    %v1363 = vadd.f32 %v126, %v1327
    %v1364 = vadd.f32 %v127, %v1332
    %v1365 = vadd.f32 %v128, %v1337
    %v1366 = vadd.f32 %v129, %v1342
    %v1367 = vadd.f32 %v130, %v1347
    %v1368 = vadd.f32 %v131, %v1352
    %1369 = vmatprep.subr.mxu0 0.0
    %1370 = vmatpush1.msra.mxu0 %v80
    %1371 = vmatprep.subr.mxu0 0.0
    %1372 = vmatpush1.msra.mxu0 %v81
    %1373 = vmatprep.subr.mxu0 0.0
    %1374 = vmatpush1.msra.mxu0 %v82
    %1375 = vmatprep.subr.mxu0 0.0
    %1376 = vmatpush1.msra.mxu0 %v83
    %1377 = vmatprep.subr.mxu0 0.0
    %1378 = vmatpush1.msra.mxu0 %v84
    %1379 = vmatprep.subr.mxu0 0.0
    %1380 = vmatpush1.msra.mxu0 %v85
    %1381 = vmatprep.subr.mxu0 0.0
    %1382 = vmatpush1.msra.mxu0 %v86
    %1383 = vmatprep.subr.mxu0 0.0
    %1384 = vmatpush1.msra.mxu0 %v87
    %1385 = vmatprep.subr.mxu0 0.0
    %1386 = vmatpush1.msra.mxu0 %v88
    %1387 = vmatprep.subr.mxu0 0.0
    %1388 = vmatpush1.msra.mxu0 %v89
    %1389 = vmatprep.subr.mxu0 0.0
    %1390 = vmatpush1.msra.mxu0 %v90
    %1391 = vmatprep.subr.mxu0 0.0
    %1392 = vmatpush1.msra.mxu0 %v91
    %1393 = vmatprep.subr.mxu0 0.0
    %1394 = vmatpush1.msra.mxu0 %v92
    %1395 = vmatprep.subr.mxu0 0.0
    %1396 = vmatpush1.msra.mxu0 %v93
    %1397 = vmatprep.subr.mxu0 0.0
    %1398 = vmatpush1.msra.mxu0 %v94
    %1399 = vmatprep.subr.mxu0 0.0
    %1400 = vmatpush1.msra.mxu0 %v95
    %1401 = vmatprep.subr.mxu0 0.0
    %1402 = vmatpush1.msra.mxu0 0.0
    %1403 = vmatprep.subr.mxu0 0.0
    %1404 = vmatpush1.msra.mxu0 0.0
    %1405 = vmatprep.subr.mxu0 0.0
    %1406 = vmatpush1.msra.mxu0 0.0
    %1407 = vmatprep.subr.mxu0 0.0
    %1408 = vmatpush1.msra.mxu0 0.0
    %1409 = vmatprep.subr.mxu0 0.0
    %1410 = vmatpush1.msra.mxu0 0.0
    %1411 = vmatprep.subr.mxu0 0.0
    %1412 = vmatpush1.msra.mxu0 0.0
    %1413 = vmatprep.subr.mxu0 0.0
    %1414 = vmatpush1.msra.mxu0 0.0
    %1415 = vmatprep.subr.mxu0 0.0
    %1416 = vmatpush1.msra.mxu0 0.0
    %1417 = vmatprep.subr.mxu0 0.0
    %1418 = vmatpush1.msra.mxu0 0.0
    %1419 = vmatprep.subr.mxu0 0.0
    %1420 = vmatpush1.msra.mxu0 0.0
    %1421 = vmatprep.subr.mxu0 0.0
    %1422 = vmatpush1.msra.mxu0 0.0
    %1423 = vmatprep.subr.mxu0 0.0
    %1424 = vmatpush1.msra.mxu0 0.0
    %1425 = vmatprep.subr.mxu0 0.0
    %1426 = vmatpush1.msra.mxu0 0.0
    %1427 = vmatprep.subr.mxu0 0.0
    %1428 = vmatpush1.msra.mxu0 0.0
    %1429 = vmatprep.subr.mxu0 0.0
    %1430 = vmatpush1.msra.mxu0 0.0
    %1431 = vmatprep.subr.mxu0 0.0
    %1432 = vmatpush1.msra.mxu0 0.0
    %1433 = vmatprep.mubr.f32.mxu0 0.0
    %1434 = vmatmul.mubr.f32.gmra.mrb[0].mxu0 %v1355
    %v1435 = vpop.f32.mrb[0].mxu0
    %v1436 = vadd.f32 0.0, %v1435
    %v1437 = vpop.f32.mrb[0].mxu0
    %1438 = vmatprep.mubr.f32.mxu0 0.0
    %1439 = vmatmul.mubr.f32.gmra.mrb[0].mxu0 %v1356
    %v1440 = vpop.f32.mrb[0].mxu0
    %v1441 = vadd.f32 0.0, %v1440
    %v1442 = vpop.f32.mrb[0].mxu0
    %1443 = vmatprep.mubr.f32.mxu0 0.0
    %1444 = vmatmul.mubr.f32.gmra.mrb[0].mxu0 %v1357
    %v1445 = vpop.f32.mrb[0].mxu0
    %v1446 = vadd.f32 0.0, %v1445
    %v1447 = vpop.f32.mrb[0].mxu0
    %1448 = vmatprep.mubr.f32.mxu0 0.0
    %1449 = vmatmul.mubr.f32.gmra.mrb[0].mxu0 %v1358
    %v1450 = vpop.f32.mrb[0].mxu0
    %v1451 = vadd.f32 0.0, %v1450
    %v1452 = vpop.f32.mrb[0].mxu0
    %1453 = vmatprep.mubr.f32.mxu0 0.0
    %1454 = vmatmul.mubr.f32.gmra.mrb[0].mxu0 %v1359
    %v1455 = vpop.f32.mrb[0].mxu0
    %v1456 = vadd.f32 0.0, %v1455
    %v1457 = vpop.f32.mrb[0].mxu0
    %1458 = vmatprep.mubr.f32.mxu0 0.0
    %1459 = vmatmul.mubr.f32.gmra.mrb[0].mxu0 %v1360
    %v1460 = vpop.f32.mrb[0].mxu0
    %v1461 = vadd.f32 0.0, %v1460
    %v1462 = vpop.f32.mrb[0].mxu0
    %1463 = vmatprep.mubr.f32.mxu0 0.0
    %1464 = vmatmul.mubr.f32.gmra.mrb[0].mxu0 %v1361
    %v1465 = vpop.f32.mrb[0].mxu0
    %v1466 = vadd.f32 0.0, %v1465
    %v1467 = vpop.f32.mrb[0].mxu0
    %1468 = vmatprep.mubr.f32.mxu0 0.0
    %1469 = vmatmul.mubr.f32.gmra.mrb[0].mxu0 %v1362
    %v1470 = vpop.f32.mrb[0].mxu0
    %v1471 = vadd.f32 0.0, %v1470
    %v1472 = vpop.f32.mrb[0].mxu0
    %1473 = vmatprep.mubr.f32.mxu0 0.0
    %1474 = vmatmul.mubr.f32.gmra.mrb[0].mxu0 %v1363
    %v1475 = vpop.f32.mrb[0].mxu0
    %v1476 = vadd.f32 0.0, %v1475
    %v1477 = vpop.f32.mrb[0].mxu0
    %1478 = vmatprep.mubr.f32.mxu0 0.0
    %1479 = vmatmul.mubr.f32.gmra.mrb[0].mxu0 %v1364
    %v1480 = vpop.f32.mrb[0].mxu0
    %v1481 = vadd.f32 0.0, %v1480
    %v1482 = vpop.f32.mrb[0].mxu0
    %1483 = vmatprep.mubr.f32.mxu0 0.0
    %1484 = vmatmul.mubr.f32.gmra.mrb[0].mxu0 %v1365
    %v1485 = vpop.f32.mrb[0].mxu0
    %v1486 = vadd.f32 0.0, %v1485
    %v1487 = vpop.f32.mrb[0].mxu0
    %1488 = vmatprep.mubr.f32.mxu0 0.0
    %1489 = vmatmul.mubr.f32.gmra.mrb[0].mxu0 %v1366
    %v1490 = vpop.f32.mrb[0].mxu0
    %v1491 = vadd.f32 0.0, %v1490
    %v1492 = vpop.f32.mrb[0].mxu0
    %1493 = vmatprep.mubr.f32.mxu0 0.0
    %1494 = vmatmul.mubr.f32.gmra.mrb[0].mxu0 %v1367
    %v1495 = vpop.f32.mrb[0].mxu0
    %v1496 = vadd.f32 0.0, %v1495
    %v1497 = vpop.f32.mrb[0].mxu0
    %1498 = vmatprep.mubr.f32.mxu0 0.0
    %1499 = vmatmul.mubr.f32.gmra.mrb[0].mxu0 %v1368
    %v1500 = vpop.f32.mrb[0].mxu0
    %v1501 = vadd.f32 0.0, %v1500
    %v1502 = vpop.f32.mrb[0].mxu0
    %1503 = vdwg.mxu0
    %v1504 = vsub.f32 %v1355, %v1436
    %v1505 = vsub.f32 %v1356, %v1441
    %v1506 = vsub.f32 %v1357, %v1446
    %v1507 = vsub.f32 %v1358, %v1451
    %v1508 = vsub.f32 %v1359, %v1456
    %v1509 = vsub.f32 %v1360, %v1461
    %v1510 = vsub.f32 %v1361, %v1466
    %v1511 = vsub.f32 %v1362, %v1471
    %v1512 = vsub.f32 %v1363, %v1476
    %v1513 = vsub.f32 %v1364, %v1481
    %v1514 = vsub.f32 %v1365, %v1486
    %v1515 = vsub.f32 %v1366, %v1491
    %v1516 = vsub.f32 %v1367, %v1496
    %v1517 = vsub.f32 %v1368, %v1501
    %v1518 = vmul.f32 %v1504, %v1504
    %v1519 = vmul.f32 %v1505, %v1505
    %v1520 = vmul.f32 %v1506, %v1506
    %v1521 = vmul.f32 %v1507, %v1507
    %v1522 = vmul.f32 %v1508, %v1508
    %v1523 = vmul.f32 %v1509, %v1509
    %v1524 = vmul.f32 %v1510, %v1510
    %v1525 = vmul.f32 %v1511, %v1511
    %v1526 = vmul.f32 %v1512, %v1512
    %v1527 = vmul.f32 %v1513, %v1513
    %v1528 = vmul.f32 %v1514, %v1514
    %v1529 = vmul.f32 %v1515, %v1515
    %v1530 = vmul.f32 %v1516, %v1516
    %v1531 = vmul.f32 %v1517, %v1517
    %1532 = vmatprep.subr.mxu0 0.0
    %1533 = vmatpush1.msra.mxu0 %v80
    %1534 = vmatprep.subr.mxu0 0.0
    %1535 = vmatpush1.msra.mxu0 %v81
    %1536 = vmatprep.subr.mxu0 0.0
    %1537 = vmatpush1.msra.mxu0 %v82
    %1538 = vmatprep.subr.mxu0 0.0
    %1539 = vmatpush1.msra.mxu0 %v83
    %1540 = vmatprep.subr.mxu0 0.0
    %1541 = vmatpush1.msra.mxu0 %v84
    %1542 = vmatprep.subr.mxu0 0.0
    %1543 = vmatpush1.msra.mxu0 %v85
    %1544 = vmatprep.subr.mxu0 0.0
    %1545 = vmatpush1.msra.mxu0 %v86
    %1546 = vmatprep.subr.mxu0 0.0
    %1547 = vmatpush1.msra.mxu0 %v87
    %1548 = vmatprep.subr.mxu0 0.0
    %1549 = vmatpush1.msra.mxu0 %v88
    %1550 = vmatprep.subr.mxu0 0.0
    %1551 = vmatpush1.msra.mxu0 %v89
    %1552 = vmatprep.subr.mxu0 0.0
    %1553 = vmatpush1.msra.mxu0 %v90
    %1554 = vmatprep.subr.mxu0 0.0
    %1555 = vmatpush1.msra.mxu0 %v91
    %1556 = vmatprep.subr.mxu0 0.0
    %1557 = vmatpush1.msra.mxu0 %v92
    %1558 = vmatprep.subr.mxu0 0.0
    %1559 = vmatpush1.msra.mxu0 %v93
    %1560 = vmatprep.subr.mxu0 0.0
    %1561 = vmatpush1.msra.mxu0 %v94
    %1562 = vmatprep.subr.mxu0 0.0
    %1563 = vmatpush1.msra.mxu0 %v95
    %1564 = vmatprep.subr.mxu0 0.0
    %1565 = vmatpush1.msra.mxu0 0.0
    %1566 = vmatprep.subr.mxu0 0.0
    %1567 = vmatpush1.msra.mxu0 0.0
    %1568 = vmatprep.subr.mxu0 0.0
    %1569 = vmatpush1.msra.mxu0 0.0
    %1570 = vmatprep.subr.mxu0 0.0
    %1571 = vmatpush1.msra.mxu0 0.0
    %1572 = vmatprep.subr.mxu0 0.0
    %1573 = vmatpush1.msra.mxu0 0.0
    %1574 = vmatprep.subr.mxu0 0.0
    %1575 = vmatpush1.msra.mxu0 0.0
    %1576 = vmatprep.subr.mxu0 0.0
    %1577 = vmatpush1.msra.mxu0 0.0
    %1578 = vmatprep.subr.mxu0 0.0
    %1579 = vmatpush1.msra.mxu0 0.0
    %1580 = vmatprep.subr.mxu0 0.0
    %1581 = vmatpush1.msra.mxu0 0.0
    %1582 = vmatprep.subr.mxu0 0.0
    %1583 = vmatpush1.msra.mxu0 0.0
    %1584 = vmatprep.subr.mxu0 0.0
    %1585 = vmatpush1.msra.mxu0 0.0
    %1586 = vmatprep.subr.mxu0 0.0
    %1587 = vmatpush1.msra.mxu0 0.0
    %1588 = vmatprep.subr.mxu0 0.0
    %1589 = vmatpush1.msra.mxu0 0.0
    %1590 = vmatprep.subr.mxu0 0.0
    %1591 = vmatpush1.msra.mxu0 0.0
    %1592 = vmatprep.subr.mxu0 0.0
    %1593 = vmatpush1.msra.mxu0 0.0
    %1594 = vmatprep.subr.mxu0 0.0
    %1595 = vmatpush1.msra.mxu0 0.0
    %1596 = vmatprep.mubr.f32.mxu0 0.0
    %1597 = vmatmul.mubr.f32.gmra.mrb[0].mxu0 %v1518
    %v1598 = vpop.f32.mrb[0].mxu0
    %v1599 = vadd.f32 1e-05, %v1598
    %v1600 = vpop.f32.mrb[0].mxu0
    %1601 = vmatprep.mubr.f32.mxu0 0.0
    %1602 = vmatmul.mubr.f32.gmra.mrb[0].mxu0 %v1519
    %v1603 = vpop.f32.mrb[0].mxu0
    %v1604 = vadd.f32 1e-05, %v1603
    %v1605 = vpop.f32.mrb[0].mxu0
    %1606 = vmatprep.mubr.f32.mxu0 0.0
    %1607 = vmatmul.mubr.f32.gmra.mrb[0].mxu0 %v1520
    %v1608 = vpop.f32.mrb[0].mxu0
    %v1609 = vadd.f32 1e-05, %v1608
    %v1610 = vpop.f32.mrb[0].mxu0
    %1611 = vmatprep.mubr.f32.mxu0 0.0
    %1612 = vmatmul.mubr.f32.gmra.mrb[0].mxu0 %v1521
    %v1613 = vpop.f32.mrb[0].mxu0
    %v1614 = vadd.f32 1e-05, %v1613
    %v1615 = vpop.f32.mrb[0].mxu0
    %1616 = vmatprep.mubr.f32.mxu0 0.0
    %1617 = vmatmul.mubr.f32.gmra.mrb[0].mxu0 %v1522
    %v1618 = vpop.f32.mrb[0].mxu0
    %v1619 = vadd.f32 1e-05, %v1618
    %v1620 = vpop.f32.mrb[0].mxu0
    %1621 = vmatprep.mubr.f32.mxu0 0.0
    %1622 = vmatmul.mubr.f32.gmra.mrb[0].mxu0 %v1523
    %v1623 = vpop.f32.mrb[0].mxu0
    %v1624 = vadd.f32 1e-05, %v1623
    %v1625 = vpop.f32.mrb[0].mxu0
    %1626 = vmatprep.mubr.f32.mxu0 0.0
    %1627 = vmatmul.mubr.f32.gmra.mrb[0].mxu0 %v1524
    %v1628 = vpop.f32.mrb[0].mxu0
    %v1629 = vadd.f32 1e-05, %v1628
    %v1630 = vpop.f32.mrb[0].mxu0
    %1631 = vmatprep.mubr.f32.mxu0 0.0
    %1632 = vmatmul.mubr.f32.gmra.mrb[0].mxu0 %v1525
    %v1633 = vpop.f32.mrb[0].mxu0
    %v1634 = vadd.f32 1e-05, %v1633
    %v1635 = vpop.f32.mrb[0].mxu0
    %1636 = vmatprep.mubr.f32.mxu0 0.0
    %1637 = vmatmul.mubr.f32.gmra.mrb[0].mxu0 %v1526
    %v1638 = vpop.f32.mrb[0].mxu0
    %v1639 = vadd.f32 1e-05, %v1638
    %v1640 = vpop.f32.mrb[0].mxu0
    %1641 = vmatprep.mubr.f32.mxu0 0.0
    %1642 = vmatmul.mubr.f32.gmra.mrb[0].mxu0 %v1527
    %v1643 = vpop.f32.mrb[0].mxu0
    %v1644 = vadd.f32 1e-05, %v1643
    %v1645 = vpop.f32.mrb[0].mxu0
    %1646 = vmatprep.mubr.f32.mxu0 0.0
    %1647 = vmatmul.mubr.f32.gmra.mrb[0].mxu0 %v1528
    %v1648 = vpop.f32.mrb[0].mxu0
    %v1649 = vadd.f32 1e-05, %v1648
    %v1650 = vpop.f32.mrb[0].mxu0
    %1651 = vmatprep.mubr.f32.mxu0 0.0
    %1652 = vmatmul.mubr.f32.gmra.mrb[0].mxu0 %v1529
    %v1653 = vpop.f32.mrb[0].mxu0
    %v1654 = vadd.f32 1e-05, %v1653
    %v1655 = vpop.f32.mrb[0].mxu0
    %1656 = vmatprep.mubr.f32.mxu0 0.0
    %1657 = vmatmul.mubr.f32.gmra.mrb[0].mxu0 %v1530
    %v1658 = vpop.f32.mrb[0].mxu0
    %v1659 = vadd.f32 1e-05, %v1658
    %v1660 = vpop.f32.mrb[0].mxu0
    %1661 = vmatprep.mubr.f32.mxu0 0.0
    %1662 = vmatmul.mubr.f32.gmra.mrb[0].mxu0 %v1531
    %v1663 = vpop.f32.mrb[0].mxu0
    %v1664 = vadd.f32 1e-05, %v1663
    %v1665 = vpop.f32.mrb[0].mxu0
    %1666 = vdwg.mxu0
    %v1667 = vrsqrt.pop %v1599
    %v1668 = vrsqrt.pop %v1604
    %v1669 = vrsqrt.pop %v1609
    %v1670 = vrsqrt.pop %v1614
    %v1671 = vrsqrt.pop %v1619
    %v1672 = vrsqrt.pop %v1624
    %v1673 = vrsqrt.pop %v1629
    %v1674 = vrsqrt.pop %v1634
    %v1675 = vrsqrt.pop %v1639
    %v1676 = vrsqrt.pop %v1644
    %v1677 = vrsqrt.pop %v1649
    %v1678 = vrsqrt.pop %v1654
    %v1679 = vrsqrt.pop %v1659
    %v1680 = vrsqrt.pop %v1664
    %v1681 = vmul.f32 %v1504, %v1667
    %v1682 = vmul.f32 %v1505, %v1668
    %v1683 = vmul.f32 %v1506, %v1669
    %v1684 = vmul.f32 %v1507, %v1670
    %v1685 = vmul.f32 %v1508, %v1671
    %v1686 = vmul.f32 %v1509, %v1672
    %v1687 = vmul.f32 %v1510, %v1673
    %v1688 = vmul.f32 %v1511, %v1674
    %v1689 = vmul.f32 %v1512, %v1675
    %v1690 = vmul.f32 %v1513, %v1676
    %v1691 = vmul.f32 %v1514, %v1677
    %v1692 = vmul.f32 %v1515, %v1678
    %v1693 = vmul.f32 %v1516, %v1679
    %v1694 = vmul.f32 %v1517, %v1680
    %v1695 = vlaneseq
    %v1696 = vshrl.u32 %v1695, 7
    %v1697 = vsub.s32 4, %v1696
    %v1698 = vrot.slane %v199, %v1697
    %v1699 = vmul.f32 %v1681, %v1698
    %v1700 = vmul.f32 %v1682, %v1698
    %v1701 = vmul.f32 %v1683, %v1698
    %v1702 = vmul.f32 %v1684, %v1698
    %v1703 = vmul.f32 %v1685, %v1698
    %v1704 = vmul.f32 %v1686, %v1698
    %v1705 = vmul.f32 %v1687, %v1698
    %v1706 = vmul.f32 %v1688, %v1698
    %v1707 = vmul.f32 %v1689, %v1698
    %v1708 = vmul.f32 %v1690, %v1698
    %v1709 = vmul.f32 %v1691, %v1698
    %v1710 = vmul.f32 %v1692, %v1698
    %v1711 = vmul.f32 %v1693, %v1698
    %v1712 = vmul.f32 %v1694, %v1698
    %v1713 = vlaneseq
    %v1714 = vshrl.u32 %v1713, 7
    %v1715 = vsub.s32 5, %v1714
    %v1716 = vrot.slane %v199, %v1715
    %v1717 = vadd.f32 %v1699, %v1716
    %v1718 = vadd.f32 %v1700, %v1716
    %v1719 = vadd.f32 %v1701, %v1716
    %v1720 = vadd.f32 %v1702, %v1716
    %v1721 = vadd.f32 %v1703, %v1716
    %v1722 = vadd.f32 %v1704, %v1716
    %v1723 = vadd.f32 %v1705, %v1716
    %v1724 = vadd.f32 %v1706, %v1716
    %v1725 = vadd.f32 %v1707, %v1716
    %v1726 = vadd.f32 %v1708, %v1716
    %v1727 = vadd.f32 %v1709, %v1716
    %v1728 = vadd.f32 %v1710, %v1716
    %v1729 = vadd.f32 %v1711, %v1716
    %v1730 = vadd.f32 %v1712, %v1716
    %v1731 = vld [vmem:[%s4] sm:$0xff]
    %v1732 = vld [vmem:[%s4 + $0x8] sm:$0xff]
    %v1733 = vld [vmem:[%s4 + $0x10] sm:$0xff]
    %v1734 = vld [vmem:[%s4 + $0x18] sm:$0xff]
    %v1735 = vld [vmem:[%s4 + $0x20] sm:$0xff]
    %v1736 = vld [vmem:[%s4 + $0x28] sm:$0xff]
    %v1737 = vld [vmem:[%s4 + $0x30] sm:$0xff]
    %v1738 = vld [vmem:[%s4 + $0x38] sm:$0xff]
    %v1739 = vld [vmem:[%s4 + $0x40] sm:$0xff]
    %v1740 = vld [vmem:[%s4 + $0x48] sm:$0xff]
    %v1741 = vld [vmem:[%s4 + $0x50] sm:$0xff]
    %v1742 = vld [vmem:[%s4 + $0x58] sm:$0xff]
    %v1743 = vld [vmem:[%s4 + $0x60] sm:$0xff]
    %v1744 = vld [vmem:[%s4 + $0x68] sm:$0xff]
    %v1745 = vld [vmem:[%s4 + $0x70] sm:$0xff]
    %v1746 = vld [vmem:[%s4 + $0x78] sm:$0xff]
    %v1747 = vld [vmem:[%s4 + $0x80] sm:$0xff]
    %v1748 = vld [vmem:[%s4 + $0x88] sm:$0xff]
    %v1749 = vld [vmem:[%s4 + $0x90] sm:$0xff]
    %v1750 = vld [vmem:[%s4 + $0x98] sm:$0xff]
    %v1751 = vld [vmem:[%s4 + $0xa0] sm:$0xff]
    %v1752 = vld [vmem:[%s4 + $0xa8] sm:$0xff]
    %v1753 = vld [vmem:[%s4 + $0xb0] sm:$0xff]
    %v1754 = vld [vmem:[%s4 + $0xb8] sm:$0xff]
    %v1755 = vld [vmem:[%s4 + $0xc0] sm:$0xff]
    %v1756 = vld [vmem:[%s4 + $0xc8] sm:$0xff]
    %v1757 = vld [vmem:[%s4 + $0xd0] sm:$0xff]
    %v1758 = vld [vmem:[%s4 + $0xd8] sm:$0xff]
    %v1759 = vld [vmem:[%s4 + $0xe0] sm:$0xff]
    %v1760 = vld [vmem:[%s4 + $0xe8] sm:$0xff]
    %v1761 = vld [vmem:[%s4 + $0xf0] sm:$0xff]
    %v1762 = vld [vmem:[%s4 + $0xf8] sm:$0xff]
    %v1763 = vld [vmem:[%s5] sm:$0x3]
    %v1765 = vlaneseq
    %v1766 = vshrl.u32 %v1765, 7
    %v1767 = vsub.s32 0, %v1766
    %v1768 = vrot.slane %v1763, %v1767
    %v1769 = vlaneseq
    %v1770 = vshrl.u32 %v1769, 7
    %v1771 = vsub.s32 1, %v1770
    %v1772 = vrot.slane %v1763, %v1771
    %1775 = vmatprep.subr.mxu0 %v1732
    %1776 = vmatpush1.msra.mxu0 %v1731
    %1777 = vmatprep.subr.mxu0 %v1734
    %1778 = vmatpush1.msra.mxu0 %v1733
    %1779 = vmatprep.subr.mxu0 %v1736
    %1780 = vmatpush1.msra.mxu0 %v1735
    %1781 = vmatprep.subr.mxu0 %v1738
    %1782 = vmatpush1.msra.mxu0 %v1737
    %1783 = vmatprep.subr.mxu0 %v1740
    %1784 = vmatpush1.msra.mxu0 %v1739
    %1785 = vmatprep.subr.mxu0 %v1742
    %1786 = vmatpush1.msra.mxu0 %v1741
    %1787 = vmatprep.subr.mxu0 %v1744
    %1788 = vmatpush1.msra.mxu0 %v1743
    %1789 = vmatprep.subr.mxu0 %v1746
    %1790 = vmatpush1.msra.mxu0 %v1745
    %1791 = vmatprep.subr.mxu0 %v1748
    %1792 = vmatpush1.msra.mxu0 %v1747
    %1793 = vmatprep.subr.mxu0 %v1750
    %1794 = vmatpush1.msra.mxu0 %v1749
    %1795 = vmatprep.subr.mxu0 %v1752
    %1796 = vmatpush1.msra.mxu0 %v1751
    %1797 = vmatprep.subr.mxu0 %v1754
    %1798 = vmatpush1.msra.mxu0 %v1753
    %1799 = vmatprep.subr.mxu0 %v1756
    %1800 = vmatpush1.msra.mxu0 %v1755
    %1801 = vmatprep.subr.mxu0 %v1758
    %1802 = vmatpush1.msra.mxu0 %v1757
    %1803 = vmatprep.subr.mxu0 %v1760
    %1804 = vmatpush1.msra.mxu0 %v1759
    %1805 = vmatprep.subr.mxu0 %v1762
    %1806 = vmatpush1.msra.mxu0 %v1761
    %1807 = vmatprep.subr.mxu0 0.0
    %1808 = vmatpush1.msra.mxu0 0.0
    %1809 = vmatprep.subr.mxu0 0.0
    %1810 = vmatpush1.msra.mxu0 0.0
    %1811 = vmatprep.subr.mxu0 0.0
    %1812 = vmatpush1.msra.mxu0 0.0
    %1813 = vmatprep.subr.mxu0 0.0
    %1814 = vmatpush1.msra.mxu0 0.0
    %1815 = vmatprep.subr.mxu0 0.0
    %1816 = vmatpush1.msra.mxu0 0.0
    %1817 = vmatprep.subr.mxu0 0.0
    %1818 = vmatpush1.msra.mxu0 0.0
    %1819 = vmatprep.subr.mxu0 0.0
    %1820 = vmatpush1.msra.mxu0 0.0
    %1821 = vmatprep.subr.mxu0 0.0
    %1822 = vmatpush1.msra.mxu0 0.0
    %1823 = vmatprep.subr.mxu0 0.0
    %1824 = vmatpush1.msra.mxu0 0.0
    %1825 = vmatprep.subr.mxu0 0.0
    %1826 = vmatpush1.msra.mxu0 0.0
    %1827 = vmatprep.subr.mxu0 0.0
    %1828 = vmatpush1.msra.mxu0 0.0
    %1829 = vmatprep.subr.mxu0 0.0
    %1830 = vmatpush1.msra.mxu0 0.0
    %1831 = vmatprep.subr.mxu0 0.0
    %1832 = vmatpush1.msra.mxu0 0.0
    %1833 = vmatprep.subr.mxu0 0.0
    %1834 = vmatpush1.msra.mxu0 0.0
    %1835 = vmatprep.subr.mxu0 0.0
    %1836 = vmatpush1.msra.mxu0 0.0
    %1837 = vmatprep.subr.mxu0 0.0
    %1838 = vmatpush1.msra.mxu0 0.0
    %1839 = vmatprep.mubr.f32.mxu0 0.0
    %1840 = vmatmul.mubr.f32.gmra.mrb[0].mxu0 %v1717
    %v1841 = vpop.f32.mrb[0].mxu0
    %v1842 = vadd.f32 %v1768, %v1841
    %v1843 = vpop.f32.mrb[0].mxu0
    %v1844 = vadd.f32 %v1772, %v1843
    %1845 = vmatprep.mubr.f32.mxu0 0.0
    %1846 = vmatmul.mubr.f32.gmra.mrb[0].mxu0 %v1718
    %v1847 = vpop.f32.mrb[0].mxu0
    %v1848 = vadd.f32 %v1768, %v1847
    %v1849 = vpop.f32.mrb[0].mxu0
    %v1850 = vadd.f32 %v1772, %v1849
    %1851 = vmatprep.mubr.f32.mxu0 0.0
    %1852 = vmatmul.mubr.f32.gmra.mrb[0].mxu0 %v1719
    %v1853 = vpop.f32.mrb[0].mxu0
    %v1854 = vadd.f32 %v1768, %v1853
    %v1855 = vpop.f32.mrb[0].mxu0
    %v1856 = vadd.f32 %v1772, %v1855
    %1857 = vmatprep.mubr.f32.mxu0 0.0
    %1858 = vmatmul.mubr.f32.gmra.mrb[0].mxu0 %v1720
    %v1859 = vpop.f32.mrb[0].mxu0
    %v1860 = vadd.f32 %v1768, %v1859
    %v1861 = vpop.f32.mrb[0].mxu0
    %v1862 = vadd.f32 %v1772, %v1861
    %1863 = vmatprep.mubr.f32.mxu0 0.0
    %1864 = vmatmul.mubr.f32.gmra.mrb[0].mxu0 %v1721
    %v1865 = vpop.f32.mrb[0].mxu0
    %v1866 = vadd.f32 %v1768, %v1865
    %v1867 = vpop.f32.mrb[0].mxu0
    %v1868 = vadd.f32 %v1772, %v1867
    %1869 = vmatprep.mubr.f32.mxu0 0.0
    %1870 = vmatmul.mubr.f32.gmra.mrb[0].mxu0 %v1722
    %v1871 = vpop.f32.mrb[0].mxu0
    %v1872 = vadd.f32 %v1768, %v1871
    %v1873 = vpop.f32.mrb[0].mxu0
    %v1874 = vadd.f32 %v1772, %v1873
    %1875 = vmatprep.mubr.f32.mxu0 0.0
    %1876 = vmatmul.mubr.f32.gmra.mrb[0].mxu0 %v1723
    %v1877 = vpop.f32.mrb[0].mxu0
    %v1878 = vadd.f32 %v1768, %v1877
    %v1879 = vpop.f32.mrb[0].mxu0
    %v1880 = vadd.f32 %v1772, %v1879
    %1881 = vmatprep.mubr.f32.mxu0 0.0
    %1882 = vmatmul.mubr.f32.gmra.mrb[0].mxu0 %v1724
    %v1883 = vpop.f32.mrb[0].mxu0
    %v1884 = vadd.f32 %v1768, %v1883
    %v1885 = vpop.f32.mrb[0].mxu0
    %v1886 = vadd.f32 %v1772, %v1885
    %1887 = vmatprep.mubr.f32.mxu0 0.0
    %1888 = vmatmul.mubr.f32.gmra.mrb[0].mxu0 %v1725
    %v1889 = vpop.f32.mrb[0].mxu0
    %v1890 = vadd.f32 %v1768, %v1889
    %v1891 = vpop.f32.mrb[0].mxu0
    %v1892 = vadd.f32 %v1772, %v1891
    %1893 = vmatprep.mubr.f32.mxu0 0.0
    %1894 = vmatmul.mubr.f32.gmra.mrb[0].mxu0 %v1726
    %v1895 = vpop.f32.mrb[0].mxu0
    %v1896 = vadd.f32 %v1768, %v1895
    %v1897 = vpop.f32.mrb[0].mxu0
    %v1898 = vadd.f32 %v1772, %v1897
    %1899 = vmatprep.mubr.f32.mxu0 0.0
    %1900 = vmatmul.mubr.f32.gmra.mrb[0].mxu0 %v1727
    %v1901 = vpop.f32.mrb[0].mxu0
    %v1902 = vadd.f32 %v1768, %v1901
    %v1903 = vpop.f32.mrb[0].mxu0
    %v1904 = vadd.f32 %v1772, %v1903
    %1905 = vmatprep.mubr.f32.mxu0 0.0
    %1906 = vmatmul.mubr.f32.gmra.mrb[0].mxu0 %v1728
    %v1907 = vpop.f32.mrb[0].mxu0
    %v1908 = vadd.f32 %v1768, %v1907
    %v1909 = vpop.f32.mrb[0].mxu0
    %v1910 = vadd.f32 %v1772, %v1909
    %1911 = vmatprep.mubr.f32.mxu0 0.0
    %1912 = vmatmul.mubr.f32.gmra.mrb[0].mxu0 %v1729
    %v1913 = vpop.f32.mrb[0].mxu0
    %v1914 = vadd.f32 %v1768, %v1913
    %v1915 = vpop.f32.mrb[0].mxu0
    %v1916 = vadd.f32 %v1772, %v1915
    %1917 = vmatprep.mubr.f32.mxu0 0.0
    %1918 = vmatmul.mubr.f32.gmra.mrb[0].mxu0 %v1730
    %v1919 = vpop.f32.mrb[0].mxu0
    %v1920 = vadd.f32 %v1768, %v1919
    %v1921 = vpop.f32.mrb[0].mxu0
    %v1922 = vadd.f32 %v1772, %v1921
    %1923 = vdwg.mxu0
    %v1924 = vmax.f32 %v1842, 0.0
    %v1925 = vmax.f32 %v1844, 0.0
    %v1926 = vmax.f32 %v1848, 0.0
    %v1927 = vmax.f32 %v1850, 0.0
    %v1928 = vmax.f32 %v1854, 0.0
    %v1929 = vmax.f32 %v1856, 0.0
    %v1930 = vmax.f32 %v1860, 0.0
    %v1931 = vmax.f32 %v1862, 0.0
    %v1932 = vmax.f32 %v1866, 0.0
    %v1933 = vmax.f32 %v1868, 0.0
    %v1934 = vmax.f32 %v1872, 0.0
    %v1935 = vmax.f32 %v1874, 0.0
    %v1936 = vmax.f32 %v1878, 0.0
    %v1937 = vmax.f32 %v1880, 0.0
    %v1938 = vmax.f32 %v1884, 0.0
    %v1939 = vmax.f32 %v1886, 0.0
    %v1940 = vmax.f32 %v1890, 0.0
    %v1941 = vmax.f32 %v1892, 0.0
    %v1942 = vmax.f32 %v1896, 0.0
    %v1943 = vmax.f32 %v1898, 0.0
    %v1944 = vmax.f32 %v1902, 0.0
    %v1945 = vmax.f32 %v1904, 0.0
    %v1946 = vmax.f32 %v1908, 0.0
    %v1947 = vmax.f32 %v1910, 0.0
    %v1948 = vmax.f32 %v1914, 0.0
    %v1949 = vmax.f32 %v1916, 0.0
    %v1950 = vmax.f32 %v1920, 0.0
    %v1951 = vmax.f32 %v1922, 0.0
    %v1952 = vld [vmem:[%s6] sm:$0xff]
    %v1953 = vld [vmem:[%s6 + $0x8] sm:$0xff]
    %v1954 = vld [vmem:[%s6 + $0x10] sm:$0xff]
    %v1955 = vld [vmem:[%s6 + $0x18] sm:$0xff]
    %v1956 = vld [vmem:[%s6 + $0x20] sm:$0xff]
    %v1957 = vld [vmem:[%s6 + $0x28] sm:$0xff]
    %v1958 = vld [vmem:[%s6 + $0x30] sm:$0xff]
    %v1959 = vld [vmem:[%s6 + $0x38] sm:$0xff]
    %v1960 = vld [vmem:[%s6 + $0x40] sm:$0xff]
    %v1961 = vld [vmem:[%s6 + $0x48] sm:$0xff]
    %v1962 = vld [vmem:[%s6 + $0x50] sm:$0xff]
    %v1963 = vld [vmem:[%s6 + $0x58] sm:$0xff]
    %v1964 = vld [vmem:[%s6 + $0x60] sm:$0xff]
    %v1965 = vld [vmem:[%s6 + $0x68] sm:$0xff]
    %v1966 = vld [vmem:[%s6 + $0x70] sm:$0xff]
    %v1967 = vld [vmem:[%s6 + $0x78] sm:$0xff]
    %v1968 = vld [vmem:[%s6 + $0x80] sm:$0xff]
    %v1969 = vld [vmem:[%s6 + $0x88] sm:$0xff]
    %v1970 = vld [vmem:[%s6 + $0x90] sm:$0xff]
    %v1971 = vld [vmem:[%s6 + $0x98] sm:$0xff]
    %v1972 = vld [vmem:[%s6 + $0xa0] sm:$0xff]
    %v1973 = vld [vmem:[%s6 + $0xa8] sm:$0xff]
    %v1974 = vld [vmem:[%s6 + $0xb0] sm:$0xff]
    %v1975 = vld [vmem:[%s6 + $0xb8] sm:$0xff]
    %v1976 = vld [vmem:[%s6 + $0xc0] sm:$0xff]
    %v1977 = vld [vmem:[%s6 + $0xc8] sm:$0xff]
    %v1978 = vld [vmem:[%s6 + $0xd0] sm:$0xff]
    %v1979 = vld [vmem:[%s6 + $0xd8] sm:$0xff]
    %v1980 = vld [vmem:[%s6 + $0xe0] sm:$0xff]
    %v1981 = vld [vmem:[%s6 + $0xe8] sm:$0xff]
    %v1982 = vld [vmem:[%s6 + $0xf0] sm:$0xff]
    %v1983 = vld [vmem:[%s6 + $0xf8] sm:$0xff]
    %v1984 = vlaneseq
    %v1985 = vshrl.u32 %v1984, 7
    %v1986 = vsub.s32 6, %v1985
    %v1987 = vrot.slane %v199, %v1986
    %1988 = vmatprep.subr.mxu0 0.0
    %1989 = vmatpush1.msra.mxu0 %v1952
    %1990 = vmatprep.subr.mxu0 0.0
    %1991 = vmatpush1.msra.mxu0 %v1953
    %1992 = vmatprep.subr.mxu0 0.0
    %1993 = vmatpush1.msra.mxu0 %v1954
    %1994 = vmatprep.subr.mxu0 0.0
    %1995 = vmatpush1.msra.mxu0 %v1955
    %1996 = vmatprep.subr.mxu0 0.0
    %1997 = vmatpush1.msra.mxu0 %v1956
    %1998 = vmatprep.subr.mxu0 0.0
    %1999 = vmatpush1.msra.mxu0 %v1957
    %2000 = vmatprep.subr.mxu0 0.0
    %2001 = vmatpush1.msra.mxu0 %v1958
    %2002 = vmatprep.subr.mxu0 0.0
    %2003 = vmatpush1.msra.mxu0 %v1959
    %2004 = vmatprep.subr.mxu0 0.0
    %2005 = vmatpush1.msra.mxu0 %v1960
    %2006 = vmatprep.subr.mxu0 0.0
    %2007 = vmatpush1.msra.mxu0 %v1961
    %2008 = vmatprep.subr.mxu0 0.0
    %2009 = vmatpush1.msra.mxu0 %v1962
    %2010 = vmatprep.subr.mxu0 0.0
    %2011 = vmatpush1.msra.mxu0 %v1963
    %2012 = vmatprep.subr.mxu0 0.0
    %2013 = vmatpush1.msra.mxu0 %v1964
    %2014 = vmatprep.subr.mxu0 0.0
    %2015 = vmatpush1.msra.mxu0 %v1965
    %2016 = vmatprep.subr.mxu0 0.0
    %2017 = vmatpush1.msra.mxu0 %v1966
    %2018 = vmatprep.subr.mxu0 0.0
    %2019 = vmatpush1.msra.mxu0 %v1967
    %2020 = vmatprep.subr.mxu0 0.0
    %2021 = vmatpush1.msra.mxu0 %v1968
    %2022 = vmatprep.subr.mxu0 0.0
    %2023 = vmatpush1.msra.mxu0 %v1969
    %2024 = vmatprep.subr.mxu0 0.0
    %2025 = vmatpush1.msra.mxu0 %v1970
    %2026 = vmatprep.subr.mxu0 0.0
    %2027 = vmatpush1.msra.mxu0 %v1971
    %2028 = vmatprep.subr.mxu0 0.0
    %2029 = vmatpush1.msra.mxu0 %v1972
    %2030 = vmatprep.subr.mxu0 0.0
    %2031 = vmatpush1.msra.mxu0 %v1973
    %2032 = vmatprep.subr.mxu0 0.0
    %2033 = vmatpush1.msra.mxu0 %v1974
    %2034 = vmatprep.subr.mxu0 0.0
    %2035 = vmatpush1.msra.mxu0 %v1975
    %2036 = vmatprep.subr.mxu0 0.0
    %2037 = vmatpush1.msra.mxu0 %v1976
    %2038 = vmatprep.subr.mxu0 0.0
    %2039 = vmatpush1.msra.mxu0 %v1977
    %2040 = vmatprep.subr.mxu0 0.0
    %2041 = vmatpush1.msra.mxu0 %v1978
    %2042 = vmatprep.subr.mxu0 0.0
    %2043 = vmatpush1.msra.mxu0 %v1979
    %2044 = vmatprep.subr.mxu0 0.0
    %2045 = vmatpush1.msra.mxu0 %v1980
    %2046 = vmatprep.subr.mxu0 0.0
    %2047 = vmatpush1.msra.mxu0 %v1981
    %2048 = vmatprep.subr.mxu0 0.0
    %2049 = vmatpush1.msra.mxu0 %v1982
    %2050 = vmatprep.subr.mxu0 0.0
    %2051 = vmatpush1.msra.mxu0 %v1983
    %2052 = vmatprep.mubr.f32.mxu0 %v1925
    %2053 = vmatmul.mubr.f32.gmra.mrb[0].mxu0 %v1924
    %v2054 = vpop.f32.mrb[0].mxu0
    %v2055 = vadd.f32 %v1987, %v2054
    %v2056 = vpop.f32.mrb[0].mxu0
    %2057 = vmatprep.mubr.f32.mxu0 %v1927
    %2058 = vmatmul.mubr.f32.gmra.mrb[0].mxu0 %v1926
    %v2059 = vpop.f32.mrb[0].mxu0
    %v2060 = vadd.f32 %v1987, %v2059
    %v2061 = vpop.f32.mrb[0].mxu0
    %2062 = vmatprep.mubr.f32.mxu0 %v1929
    %2063 = vmatmul.mubr.f32.gmra.mrb[0].mxu0 %v1928
    %v2064 = vpop.f32.mrb[0].mxu0
    %v2065 = vadd.f32 %v1987, %v2064
    %v2066 = vpop.f32.mrb[0].mxu0
    %2067 = vmatprep.mubr.f32.mxu0 %v1931
    %2068 = vmatmul.mubr.f32.gmra.mrb[0].mxu0 %v1930
    %v2069 = vpop.f32.mrb[0].mxu0
    %v2070 = vadd.f32 %v1987, %v2069
    %v2071 = vpop.f32.mrb[0].mxu0
    %2072 = vmatprep.mubr.f32.mxu0 %v1933
    %2073 = vmatmul.mubr.f32.gmra.mrb[0].mxu0 %v1932
    %v2074 = vpop.f32.mrb[0].mxu0
    %v2075 = vadd.f32 %v1987, %v2074
    %v2076 = vpop.f32.mrb[0].mxu0
    %2077 = vmatprep.mubr.f32.mxu0 %v1935
    %2078 = vmatmul.mubr.f32.gmra.mrb[0].mxu0 %v1934
    %v2079 = vpop.f32.mrb[0].mxu0
    %v2080 = vadd.f32 %v1987, %v2079
    %v2081 = vpop.f32.mrb[0].mxu0
    %2082 = vmatprep.mubr.f32.mxu0 %v1937
    %2083 = vmatmul.mubr.f32.gmra.mrb[0].mxu0 %v1936
    %v2084 = vpop.f32.mrb[0].mxu0
    %v2085 = vadd.f32 %v1987, %v2084
    %v2086 = vpop.f32.mrb[0].mxu0
    %2087 = vmatprep.mubr.f32.mxu0 %v1939
    %2088 = vmatmul.mubr.f32.gmra.mrb[0].mxu0 %v1938
    %v2089 = vpop.f32.mrb[0].mxu0
    %v2090 = vadd.f32 %v1987, %v2089
    %v2091 = vpop.f32.mrb[0].mxu0
    %2092 = vmatprep.mubr.f32.mxu0 %v1941
    %2093 = vmatmul.mubr.f32.gmra.mrb[0].mxu0 %v1940
    %v2094 = vpop.f32.mrb[0].mxu0
    %v2095 = vadd.f32 %v1987, %v2094
    %v2096 = vpop.f32.mrb[0].mxu0
    %2097 = vmatprep.mubr.f32.mxu0 %v1943
    %2098 = vmatmul.mubr.f32.gmra.mrb[0].mxu0 %v1942
    %v2099 = vpop.f32.mrb[0].mxu0
    %v2100 = vadd.f32 %v1987, %v2099
    %v2101 = vpop.f32.mrb[0].mxu0
    %2102 = vmatprep.mubr.f32.mxu0 %v1945
    %2103 = vmatmul.mubr.f32.gmra.mrb[0].mxu0 %v1944
    %v2104 = vpop.f32.mrb[0].mxu0
    %v2105 = vadd.f32 %v1987, %v2104
    %v2106 = vpop.f32.mrb[0].mxu0
    %2107 = vmatprep.mubr.f32.mxu0 %v1947
    %2108 = vmatmul.mubr.f32.gmra.mrb[0].mxu0 %v1946
    %v2109 = vpop.f32.mrb[0].mxu0
    %v2110 = vadd.f32 %v1987, %v2109
    %v2111 = vpop.f32.mrb[0].mxu0
    %2112 = vmatprep.mubr.f32.mxu0 %v1949
    %2113 = vmatmul.mubr.f32.gmra.mrb[0].mxu0 %v1948
    %v2114 = vpop.f32.mrb[0].mxu0
    %v2115 = vadd.f32 %v1987, %v2114
    %v2116 = vpop.f32.mrb[0].mxu0
    %2117 = vmatprep.mubr.f32.mxu0 %v1951
    %2118 = vmatmul.mubr.f32.gmra.mrb[0].mxu0 %v1950
    %v2119 = vpop.f32.mrb[0].mxu0
    %v2120 = vadd.f32 %v1987, %v2119
    %v2121 = vpop.f32.mrb[0].mxu0
    %2122 = vdwg.mxu0
    %v2123 = vadd.f32 %v1717, %v2055
    %v2124 = vadd.f32 %v1718, %v2060
    %v2125 = vadd.f32 %v1719, %v2065
    %v2126 = vadd.f32 %v1720, %v2070
    %v2127 = vadd.f32 %v1721, %v2075
    %v2128 = vadd.f32 %v1722, %v2080
    %v2129 = vadd.f32 %v1723, %v2085
    %v2130 = vadd.f32 %v1724, %v2090
    %v2131 = vadd.f32 %v1725, %v2095
    %v2132 = vadd.f32 %v1726, %v2100
    %v2133 = vadd.f32 %v1727, %v2105
    %v2134 = vadd.f32 %v1728, %v2110
    %v2135 = vadd.f32 %v1729, %v2115
    %v2136 = vadd.f32 %v1730, %v2120
    %2137 = vmatprep.subr.mxu0 0.0
    %2138 = vmatpush1.msra.mxu0 %v80
    %2139 = vmatprep.subr.mxu0 0.0
    %2140 = vmatpush1.msra.mxu0 %v81
    %2141 = vmatprep.subr.mxu0 0.0
    %2142 = vmatpush1.msra.mxu0 %v82
    %2143 = vmatprep.subr.mxu0 0.0
    %2144 = vmatpush1.msra.mxu0 %v83
    %2145 = vmatprep.subr.mxu0 0.0
    %2146 = vmatpush1.msra.mxu0 %v84
    %2147 = vmatprep.subr.mxu0 0.0
    %2148 = vmatpush1.msra.mxu0 %v85
    %2149 = vmatprep.subr.mxu0 0.0
    %2150 = vmatpush1.msra.mxu0 %v86
    %2151 = vmatprep.subr.mxu0 0.0
    %2152 = vmatpush1.msra.mxu0 %v87
    %2153 = vmatprep.subr.mxu0 0.0
    %2154 = vmatpush1.msra.mxu0 %v88
    %2155 = vmatprep.subr.mxu0 0.0
    %2156 = vmatpush1.msra.mxu0 %v89
    %2157 = vmatprep.subr.mxu0 0.0
    %2158 = vmatpush1.msra.mxu0 %v90
    %2159 = vmatprep.subr.mxu0 0.0
    %2160 = vmatpush1.msra.mxu0 %v91
    %2161 = vmatprep.subr.mxu0 0.0
    %2162 = vmatpush1.msra.mxu0 %v92
    %2163 = vmatprep.subr.mxu0 0.0
    %2164 = vmatpush1.msra.mxu0 %v93
    %2165 = vmatprep.subr.mxu0 0.0
    %2166 = vmatpush1.msra.mxu0 %v94
    %2167 = vmatprep.subr.mxu0 0.0
    %2168 = vmatpush1.msra.mxu0 %v95
    %2169 = vmatprep.subr.mxu0 0.0
    %2170 = vmatpush1.msra.mxu0 0.0
    %2171 = vmatprep.subr.mxu0 0.0
    %2172 = vmatpush1.msra.mxu0 0.0
    %2173 = vmatprep.subr.mxu0 0.0
    %2174 = vmatpush1.msra.mxu0 0.0
    %2175 = vmatprep.subr.mxu0 0.0
    %2176 = vmatpush1.msra.mxu0 0.0
    %2177 = vmatprep.subr.mxu0 0.0
    %2178 = vmatpush1.msra.mxu0 0.0
    %2179 = vmatprep.subr.mxu0 0.0
    %2180 = vmatpush1.msra.mxu0 0.0
    %2181 = vmatprep.subr.mxu0 0.0
    %2182 = vmatpush1.msra.mxu0 0.0
    %2183 = vmatprep.subr.mxu0 0.0
    %2184 = vmatpush1.msra.mxu0 0.0
    %2185 = vmatprep.subr.mxu0 0.0
    %2186 = vmatpush1.msra.mxu0 0.0
    %2187 = vmatprep.subr.mxu0 0.0
    %2188 = vmatpush1.msra.mxu0 0.0
    %2189 = vmatprep.subr.mxu0 0.0
    %2190 = vmatpush1.msra.mxu0 0.0
    %2191 = vmatprep.subr.mxu0 0.0
    %2192 = vmatpush1.msra.mxu0 0.0
    %2193 = vmatprep.subr.mxu0 0.0
    %2194 = vmatpush1.msra.mxu0 0.0
    %2195 = vmatprep.subr.mxu0 0.0
    %2196 = vmatpush1.msra.mxu0 0.0
    %2197 = vmatprep.subr.mxu0 0.0
    %2198 = vmatpush1.msra.mxu0 0.0
    %2199 = vmatprep.subr.mxu0 0.0
    %2200 = vmatpush1.msra.mxu0 0.0
    %2201 = vmatprep.mubr.f32.mxu0 0.0
    %2202 = vmatmul.mubr.f32.gmra.mrb[0].mxu0 %v2123
    %v2203 = vpop.f32.mrb[0].mxu0
    %v2204 = vadd.f32 0.0, %v2203
    %v2205 = vpop.f32.mrb[0].mxu0
    %2206 = vmatprep.mubr.f32.mxu0 0.0
    %2207 = vmatmul.mubr.f32.gmra.mrb[0].mxu0 %v2124
    %v2208 = vpop.f32.mrb[0].mxu0
    %v2209 = vadd.f32 0.0, %v2208
    %v2210 = vpop.f32.mrb[0].mxu0
    %2211 = vmatprep.mubr.f32.mxu0 0.0
    %2212 = vmatmul.mubr.f32.gmra.mrb[0].mxu0 %v2125
    %v2213 = vpop.f32.mrb[0].mxu0
    %v2214 = vadd.f32 0.0, %v2213
    %v2215 = vpop.f32.mrb[0].mxu0
    %2216 = vmatprep.mubr.f32.mxu0 0.0
    %2217 = vmatmul.mubr.f32.gmra.mrb[0].mxu0 %v2126
    %v2218 = vpop.f32.mrb[0].mxu0
    %v2219 = vadd.f32 0.0, %v2218
    %v2220 = vpop.f32.mrb[0].mxu0
    %2221 = vmatprep.mubr.f32.mxu0 0.0
    %2222 = vmatmul.mubr.f32.gmra.mrb[0].mxu0 %v2127
    %v2223 = vpop.f32.mrb[0].mxu0
    %v2224 = vadd.f32 0.0, %v2223
    %v2225 = vpop.f32.mrb[0].mxu0
    %2226 = vmatprep.mubr.f32.mxu0 0.0
    %2227 = vmatmul.mubr.f32.gmra.mrb[0].mxu0 %v2128
    %v2228 = vpop.f32.mrb[0].mxu0
    %v2229 = vadd.f32 0.0, %v2228
    %v2230 = vpop.f32.mrb[0].mxu0
    %2231 = vmatprep.mubr.f32.mxu0 0.0
    %2232 = vmatmul.mubr.f32.gmra.mrb[0].mxu0 %v2129
    %v2233 = vpop.f32.mrb[0].mxu0
    %v2234 = vadd.f32 0.0, %v2233
    %v2235 = vpop.f32.mrb[0].mxu0
    %2236 = vmatprep.mubr.f32.mxu0 0.0
    %2237 = vmatmul.mubr.f32.gmra.mrb[0].mxu0 %v2130
    %v2238 = vpop.f32.mrb[0].mxu0
    %v2239 = vadd.f32 0.0, %v2238
    %v2240 = vpop.f32.mrb[0].mxu0
    %2241 = vmatprep.mubr.f32.mxu0 0.0
    %2242 = vmatmul.mubr.f32.gmra.mrb[0].mxu0 %v2131
    %v2243 = vpop.f32.mrb[0].mxu0
    %v2244 = vadd.f32 0.0, %v2243
    %v2245 = vpop.f32.mrb[0].mxu0
    %2246 = vmatprep.mubr.f32.mxu0 0.0
    %2247 = vmatmul.mubr.f32.gmra.mrb[0].mxu0 %v2132
    %v2248 = vpop.f32.mrb[0].mxu0
    %v2249 = vadd.f32 0.0, %v2248
    %v2250 = vpop.f32.mrb[0].mxu0
    %2251 = vmatprep.mubr.f32.mxu0 0.0
    %2252 = vmatmul.mubr.f32.gmra.mrb[0].mxu0 %v2133
    %v2253 = vpop.f32.mrb[0].mxu0
    %v2254 = vadd.f32 0.0, %v2253
    %v2255 = vpop.f32.mrb[0].mxu0
    %2256 = vmatprep.mubr.f32.mxu0 0.0
    %2257 = vmatmul.mubr.f32.gmra.mrb[0].mxu0 %v2134
    %v2258 = vpop.f32.mrb[0].mxu0
    %v2259 = vadd.f32 0.0, %v2258
    %v2260 = vpop.f32.mrb[0].mxu0
    %2261 = vmatprep.mubr.f32.mxu0 0.0
    %2262 = vmatmul.mubr.f32.gmra.mrb[0].mxu0 %v2135
    %v2263 = vpop.f32.mrb[0].mxu0
    %v2264 = vadd.f32 0.0, %v2263
    %v2265 = vpop.f32.mrb[0].mxu0
    %2266 = vmatprep.mubr.f32.mxu0 0.0
    %2267 = vmatmul.mubr.f32.gmra.mrb[0].mxu0 %v2136
    %v2268 = vpop.f32.mrb[0].mxu0
    %v2269 = vadd.f32 0.0, %v2268
    %v2270 = vpop.f32.mrb[0].mxu0
    %2271 = vdwg.mxu0
    %v2272 = vsub.f32 %v2123, %v2204
    %v2273 = vsub.f32 %v2124, %v2209
    %v2274 = vsub.f32 %v2125, %v2214
    %v2275 = vsub.f32 %v2126, %v2219
    %v2276 = vsub.f32 %v2127, %v2224
    %v2277 = vsub.f32 %v2128, %v2229
    %v2278 = vsub.f32 %v2129, %v2234
    %v2279 = vsub.f32 %v2130, %v2239
    %v2280 = vsub.f32 %v2131, %v2244
    %v2281 = vsub.f32 %v2132, %v2249
    %v2282 = vsub.f32 %v2133, %v2254
    %v2283 = vsub.f32 %v2134, %v2259
    %v2284 = vsub.f32 %v2135, %v2264
    %v2285 = vsub.f32 %v2136, %v2269
    %v2286 = vmul.f32 %v2272, %v2272
    %v2287 = vmul.f32 %v2273, %v2273
    %v2288 = vmul.f32 %v2274, %v2274
    %v2289 = vmul.f32 %v2275, %v2275
    %v2290 = vmul.f32 %v2276, %v2276
    %v2291 = vmul.f32 %v2277, %v2277
    %v2292 = vmul.f32 %v2278, %v2278
    %v2293 = vmul.f32 %v2279, %v2279
    %v2294 = vmul.f32 %v2280, %v2280
    %v2295 = vmul.f32 %v2281, %v2281
    %v2296 = vmul.f32 %v2282, %v2282
    %v2297 = vmul.f32 %v2283, %v2283
    %v2298 = vmul.f32 %v2284, %v2284
    %v2299 = vmul.f32 %v2285, %v2285
    %2300 = vmatprep.subr.mxu0 0.0
    %2301 = vmatpush1.msra.mxu0 %v80
    %2302 = vmatprep.subr.mxu0 0.0
    %2303 = vmatpush1.msra.mxu0 %v81
    %2304 = vmatprep.subr.mxu0 0.0
    %2305 = vmatpush1.msra.mxu0 %v82
    %2306 = vmatprep.subr.mxu0 0.0
    %2307 = vmatpush1.msra.mxu0 %v83
    %2308 = vmatprep.subr.mxu0 0.0
    %2309 = vmatpush1.msra.mxu0 %v84
    %2310 = vmatprep.subr.mxu0 0.0
    %2311 = vmatpush1.msra.mxu0 %v85
    %2312 = vmatprep.subr.mxu0 0.0
    %2313 = vmatpush1.msra.mxu0 %v86
    %2314 = vmatprep.subr.mxu0 0.0
    %2315 = vmatpush1.msra.mxu0 %v87
    %2316 = vmatprep.subr.mxu0 0.0
    %2317 = vmatpush1.msra.mxu0 %v88
    %2318 = vmatprep.subr.mxu0 0.0
    %2319 = vmatpush1.msra.mxu0 %v89
    %2320 = vmatprep.subr.mxu0 0.0
    %2321 = vmatpush1.msra.mxu0 %v90
    %2322 = vmatprep.subr.mxu0 0.0
    %2323 = vmatpush1.msra.mxu0 %v91
    %2324 = vmatprep.subr.mxu0 0.0
    %2325 = vmatpush1.msra.mxu0 %v92
    %2326 = vmatprep.subr.mxu0 0.0
    %2327 = vmatpush1.msra.mxu0 %v93
    %2328 = vmatprep.subr.mxu0 0.0
    %2329 = vmatpush1.msra.mxu0 %v94
    %2330 = vmatprep.subr.mxu0 0.0
    %2331 = vmatpush1.msra.mxu0 %v95
    %2332 = vmatprep.subr.mxu0 0.0
    %2333 = vmatpush1.msra.mxu0 0.0
    %2334 = vmatprep.subr.mxu0 0.0
    %2335 = vmatpush1.msra.mxu0 0.0
    %2336 = vmatprep.subr.mxu0 0.0
    %2337 = vmatpush1.msra.mxu0 0.0
    %2338 = vmatprep.subr.mxu0 0.0
    %2339 = vmatpush1.msra.mxu0 0.0
    %2340 = vmatprep.subr.mxu0 0.0
    %2341 = vmatpush1.msra.mxu0 0.0
    %2342 = vmatprep.subr.mxu0 0.0
    %2343 = vmatpush1.msra.mxu0 0.0
    %2344 = vmatprep.subr.mxu0 0.0
    %2345 = vmatpush1.msra.mxu0 0.0
    %2346 = vmatprep.subr.mxu0 0.0
    %2347 = vmatpush1.msra.mxu0 0.0
    %2348 = vmatprep.subr.mxu0 0.0
    %2349 = vmatpush1.msra.mxu0 0.0
    %2350 = vmatprep.subr.mxu0 0.0
    %2351 = vmatpush1.msra.mxu0 0.0
    %2352 = vmatprep.subr.mxu0 0.0
    %2353 = vmatpush1.msra.mxu0 0.0
    %2354 = vmatprep.subr.mxu0 0.0
    %2355 = vmatpush1.msra.mxu0 0.0
    %2356 = vmatprep.subr.mxu0 0.0
    %2357 = vmatpush1.msra.mxu0 0.0
    %2358 = vmatprep.subr.mxu0 0.0
    %2359 = vmatpush1.msra.mxu0 0.0
    %2360 = vmatprep.subr.mxu0 0.0
    %2361 = vmatpush1.msra.mxu0 0.0
    %2362 = vmatprep.subr.mxu0 0.0
    %2363 = vmatpush1.msra.mxu0 0.0
    %2364 = vmatprep.mubr.f32.mxu0 0.0
    %2365 = vmatmul.mubr.f32.gmra.mrb[0].mxu0 %v2286
    %v2366 = vpop.f32.mrb[0].mxu0
    %v2367 = vadd.f32 1e-05, %v2366
    %v2368 = vpop.f32.mrb[0].mxu0
    %2369 = vmatprep.mubr.f32.mxu0 0.0
    %2370 = vmatmul.mubr.f32.gmra.mrb[0].mxu0 %v2287
    %v2371 = vpop.f32.mrb[0].mxu0
    %v2372 = vadd.f32 1e-05, %v2371
    %v2373 = vpop.f32.mrb[0].mxu0
    %2374 = vmatprep.mubr.f32.mxu0 0.0
    %2375 = vmatmul.mubr.f32.gmra.mrb[0].mxu0 %v2288
    %v2376 = vpop.f32.mrb[0].mxu0
    %v2377 = vadd.f32 1e-05, %v2376
    %v2378 = vpop.f32.mrb[0].mxu0
    %2379 = vmatprep.mubr.f32.mxu0 0.0
    %2380 = vmatmul.mubr.f32.gmra.mrb[0].mxu0 %v2289
    %v2381 = vpop.f32.mrb[0].mxu0
    %v2382 = vadd.f32 1e-05, %v2381
    %v2383 = vpop.f32.mrb[0].mxu0
    %2384 = vmatprep.mubr.f32.mxu0 0.0
    %2385 = vmatmul.mubr.f32.gmra.mrb[0].mxu0 %v2290
    %v2386 = vpop.f32.mrb[0].mxu0
    %v2387 = vadd.f32 1e-05, %v2386
    %v2388 = vpop.f32.mrb[0].mxu0
    %2389 = vmatprep.mubr.f32.mxu0 0.0
    %2390 = vmatmul.mubr.f32.gmra.mrb[0].mxu0 %v2291
    %v2391 = vpop.f32.mrb[0].mxu0
    %v2392 = vadd.f32 1e-05, %v2391
    %v2393 = vpop.f32.mrb[0].mxu0
    %2394 = vmatprep.mubr.f32.mxu0 0.0
    %2395 = vmatmul.mubr.f32.gmra.mrb[0].mxu0 %v2292
    %v2396 = vpop.f32.mrb[0].mxu0
    %v2397 = vadd.f32 1e-05, %v2396
    %v2398 = vpop.f32.mrb[0].mxu0
    %2399 = vmatprep.mubr.f32.mxu0 0.0
    %2400 = vmatmul.mubr.f32.gmra.mrb[0].mxu0 %v2293
    %v2401 = vpop.f32.mrb[0].mxu0
    %v2402 = vadd.f32 1e-05, %v2401
    %v2403 = vpop.f32.mrb[0].mxu0
    %2404 = vmatprep.mubr.f32.mxu0 0.0
    %2405 = vmatmul.mubr.f32.gmra.mrb[0].mxu0 %v2294
    %v2406 = vpop.f32.mrb[0].mxu0
    %v2407 = vadd.f32 1e-05, %v2406
    %v2408 = vpop.f32.mrb[0].mxu0
    %2409 = vmatprep.mubr.f32.mxu0 0.0
    %2410 = vmatmul.mubr.f32.gmra.mrb[0].mxu0 %v2295
    %v2411 = vpop.f32.mrb[0].mxu0
    %v2412 = vadd.f32 1e-05, %v2411
    %v2413 = vpop.f32.mrb[0].mxu0
    %2414 = vmatprep.mubr.f32.mxu0 0.0
    %2415 = vmatmul.mubr.f32.gmra.mrb[0].mxu0 %v2296
    %v2416 = vpop.f32.mrb[0].mxu0
    %v2417 = vadd.f32 1e-05, %v2416
    %v2418 = vpop.f32.mrb[0].mxu0
    %2419 = vmatprep.mubr.f32.mxu0 0.0
    %2420 = vmatmul.mubr.f32.gmra.mrb[0].mxu0 %v2297
    %v2421 = vpop.f32.mrb[0].mxu0
    %v2422 = vadd.f32 1e-05, %v2421
    %v2423 = vpop.f32.mrb[0].mxu0
    %2424 = vmatprep.mubr.f32.mxu0 0.0
    %2425 = vmatmul.mubr.f32.gmra.mrb[0].mxu0 %v2298
    %v2426 = vpop.f32.mrb[0].mxu0
    %v2427 = vadd.f32 1e-05, %v2426
    %v2428 = vpop.f32.mrb[0].mxu0
    %2429 = vmatprep.mubr.f32.mxu0 0.0
    %2430 = vmatmul.mubr.f32.gmra.mrb[0].mxu0 %v2299
    %v2431 = vpop.f32.mrb[0].mxu0
    %v2432 = vadd.f32 1e-05, %v2431
    %v2433 = vpop.f32.mrb[0].mxu0
    %2434 = vdwg.mxu0
    %v2435 = vrsqrt.pop %v2367
    %v2436 = vrsqrt.pop %v2372
    %v2437 = vrsqrt.pop %v2377
    %v2438 = vrsqrt.pop %v2382
    %v2439 = vrsqrt.pop %v2387
    %v2440 = vrsqrt.pop %v2392
    %v2441 = vrsqrt.pop %v2397
    %v2442 = vrsqrt.pop %v2402
    %v2443 = vrsqrt.pop %v2407
    %v2444 = vrsqrt.pop %v2412
    %v2445 = vrsqrt.pop %v2417
    %v2446 = vrsqrt.pop %v2422
    %v2447 = vrsqrt.pop %v2427
    %v2448 = vrsqrt.pop %v2432
    %v2449 = vmul.f32 %v2272, %v2435
    %v2450 = vmul.f32 %v2273, %v2436
    %v2451 = vmul.f32 %v2274, %v2437
    %v2452 = vmul.f32 %v2275, %v2438
    %v2453 = vmul.f32 %v2276, %v2439
    %v2454 = vmul.f32 %v2277, %v2440
    %v2455 = vmul.f32 %v2278, %v2441
    %v2456 = vmul.f32 %v2279, %v2442
    %v2457 = vmul.f32 %v2280, %v2443
    %v2458 = vmul.f32 %v2281, %v2444
    %v2459 = vmul.f32 %v2282, %v2445
    %v2460 = vmul.f32 %v2283, %v2446
    %v2461 = vmul.f32 %v2284, %v2447
    %v2462 = vmul.f32 %v2285, %v2448
    %v2463 = vlaneseq
    %v2464 = vshrl.u32 %v2463, 7
    %v2465 = vsub.s32 7, %v2464
    %v2466 = vrot.slane %v199, %v2465
    %v2467 = vmul.f32 %v2449, %v2466
    %v2468 = vmul.f32 %v2450, %v2466
    %v2469 = vmul.f32 %v2451, %v2466
    %v2470 = vmul.f32 %v2452, %v2466
    %v2471 = vmul.f32 %v2453, %v2466
    %v2472 = vmul.f32 %v2454, %v2466
    %v2473 = vmul.f32 %v2455, %v2466
    %v2474 = vmul.f32 %v2456, %v2466
    %v2475 = vmul.f32 %v2457, %v2466
    %v2476 = vmul.f32 %v2458, %v2466
    %v2477 = vmul.f32 %v2459, %v2466
    %v2478 = vmul.f32 %v2460, %v2466
    %v2479 = vmul.f32 %v2461, %v2466
    %v2480 = vmul.f32 %v2462, %v2466
    %v2481 = vlaneseq
    %v2482 = vshrl.u32 %v2481, 7
    %v2483 = vsub.s32 0, %v2482
    %v2484 = vrot.slane %v200, %v2483
    %v2485 = vadd.f32 %v2467, %v2484
    %v2486 = vadd.f32 %v2468, %v2484
    %v2487 = vadd.f32 %v2469, %v2484
    %v2488 = vadd.f32 %v2470, %v2484
    %v2489 = vadd.f32 %v2471, %v2484
    %v2490 = vadd.f32 %v2472, %v2484
    %v2491 = vadd.f32 %v2473, %v2484
    %v2492 = vadd.f32 %v2474, %v2484
    %v2493 = vadd.f32 %v2475, %v2484
    %v2494 = vadd.f32 %v2476, %v2484
    %v2495 = vadd.f32 %v2477, %v2484
    %v2496 = vadd.f32 %v2478, %v2484
    %v2497 = vadd.f32 %v2479, %v2484
    %v2498 = vadd.f32 %v2480, %v2484
    %s2499 = scalar_lea.vmem %s2, 512
    %v2500 = vld [vmem:[%s2499] sm:$0xff]
    %v2501 = vld [vmem:[%s2499 + $0x8] sm:$0xff]
    %v2502 = vld [vmem:[%s2499 + $0x10] sm:$0xff]
    %v2503 = vld [vmem:[%s2499 + $0x18] sm:$0xff]
    %v2504 = vld [vmem:[%s2499 + $0x20] sm:$0xff]
    %v2505 = vld [vmem:[%s2499 + $0x28] sm:$0xff]
    %v2506 = vld [vmem:[%s2499 + $0x30] sm:$0xff]
    %v2507 = vld [vmem:[%s2499 + $0x38] sm:$0xff]
    %v2508 = vld [vmem:[%s2499 + $0x40] sm:$0xff]
    %v2509 = vld [vmem:[%s2499 + $0x48] sm:$0xff]
    %v2510 = vld [vmem:[%s2499 + $0x50] sm:$0xff]
    %v2511 = vld [vmem:[%s2499 + $0x58] sm:$0xff]
    %v2512 = vld [vmem:[%s2499 + $0x60] sm:$0xff]
    %v2513 = vld [vmem:[%s2499 + $0x68] sm:$0xff]
    %v2514 = vld [vmem:[%s2499 + $0x70] sm:$0xff]
    %v2515 = vld [vmem:[%s2499 + $0x78] sm:$0xff]
    %s2516 = scalar_lea.vmem %s2, 640
    %v2517 = vld [vmem:[%s2516] sm:$0xff]
    %v2518 = vld [vmem:[%s2516 + $0x8] sm:$0xff]
    %v2519 = vld [vmem:[%s2516 + $0x10] sm:$0xff]
    %v2520 = vld [vmem:[%s2516 + $0x18] sm:$0xff]
    %v2521 = vld [vmem:[%s2516 + $0x20] sm:$0xff]
    %v2522 = vld [vmem:[%s2516 + $0x28] sm:$0xff]
    %v2523 = vld [vmem:[%s2516 + $0x30] sm:$0xff]
    %v2524 = vld [vmem:[%s2516 + $0x38] sm:$0xff]
    %v2525 = vld [vmem:[%s2516 + $0x40] sm:$0xff]
    %v2526 = vld [vmem:[%s2516 + $0x48] sm:$0xff]
    %v2527 = vld [vmem:[%s2516 + $0x50] sm:$0xff]
    %v2528 = vld [vmem:[%s2516 + $0x58] sm:$0xff]
    %v2529 = vld [vmem:[%s2516 + $0x60] sm:$0xff]
    %v2530 = vld [vmem:[%s2516 + $0x68] sm:$0xff]
    %v2531 = vld [vmem:[%s2516 + $0x70] sm:$0xff]
    %v2532 = vld [vmem:[%s2516 + $0x78] sm:$0xff]
    %s2533 = scalar_lea.vmem %s2, 768
    %v2534 = vld [vmem:[%s2533] sm:$0xff]
    %v2535 = vld [vmem:[%s2533 + $0x8] sm:$0xff]
    %v2536 = vld [vmem:[%s2533 + $0x10] sm:$0xff]
    %v2537 = vld [vmem:[%s2533 + $0x18] sm:$0xff]
    %v2538 = vld [vmem:[%s2533 + $0x20] sm:$0xff]
    %v2539 = vld [vmem:[%s2533 + $0x28] sm:$0xff]
    %v2540 = vld [vmem:[%s2533 + $0x30] sm:$0xff]
    %v2541 = vld [vmem:[%s2533 + $0x38] sm:$0xff]
    %v2542 = vld [vmem:[%s2533 + $0x40] sm:$0xff]
    %v2543 = vld [vmem:[%s2533 + $0x48] sm:$0xff]
    %v2544 = vld [vmem:[%s2533 + $0x50] sm:$0xff]
    %v2545 = vld [vmem:[%s2533 + $0x58] sm:$0xff]
    %v2546 = vld [vmem:[%s2533 + $0x60] sm:$0xff]
    %v2547 = vld [vmem:[%s2533 + $0x68] sm:$0xff]
    %v2548 = vld [vmem:[%s2533 + $0x70] sm:$0xff]
    %v2549 = vld [vmem:[%s2533 + $0x78] sm:$0xff]
    %s2550 = scalar_lea.vmem %s2, 896
    %v2551 = vld [vmem:[%s2550] sm:$0xff]
    %v2552 = vld [vmem:[%s2550 + $0x8] sm:$0xff]
    %v2553 = vld [vmem:[%s2550 + $0x10] sm:$0xff]
    %v2554 = vld [vmem:[%s2550 + $0x18] sm:$0xff]
    %v2555 = vld [vmem:[%s2550 + $0x20] sm:$0xff]
    %v2556 = vld [vmem:[%s2550 + $0x28] sm:$0xff]
    %v2557 = vld [vmem:[%s2550 + $0x30] sm:$0xff]
    %v2558 = vld [vmem:[%s2550 + $0x38] sm:$0xff]
    %v2559 = vld [vmem:[%s2550 + $0x40] sm:$0xff]
    %v2560 = vld [vmem:[%s2550 + $0x48] sm:$0xff]
    %v2561 = vld [vmem:[%s2550 + $0x50] sm:$0xff]
    %v2562 = vld [vmem:[%s2550 + $0x58] sm:$0xff]
    %v2563 = vld [vmem:[%s2550 + $0x60] sm:$0xff]
    %v2564 = vld [vmem:[%s2550 + $0x68] sm:$0xff]
    %v2565 = vld [vmem:[%s2550 + $0x70] sm:$0xff]
    %v2566 = vld [vmem:[%s2550 + $0x78] sm:$0xff]
    %s2567 = scalar_lea.vmem [#allocation2], 16
    %v2568 = vld [vmem:[%s2567] sm:$0xff]
    %v2569 = vld [vmem:[%s2567 + $0x8] sm:$0xff]
    %v2570 = vlaneseq
    %v2571 = vshrl.u32 %v2570, 7
    %v2572 = vsub.s32 1, %v2571
    %v2573 = vrot.slane %v2568, %v2572
    %2574 = vmatprep.subr.mxu0 0.0
    %2575 = vmatpush1.msra.mxu0 %v2517
    %2576 = vmatprep.subr.mxu0 0.0
    %2577 = vmatpush1.msra.mxu0 %v2518
    %2578 = vmatprep.subr.mxu0 0.0
    %2579 = vmatpush1.msra.mxu0 %v2519
    %2580 = vmatprep.subr.mxu0 0.0
    %2581 = vmatpush1.msra.mxu0 %v2520
    %2582 = vmatprep.subr.mxu0 0.0
    %2583 = vmatpush1.msra.mxu0 %v2521
    %2584 = vmatprep.subr.mxu0 0.0
    %2585 = vmatpush1.msra.mxu0 %v2522
    %2586 = vmatprep.subr.mxu0 0.0
    %2587 = vmatpush1.msra.mxu0 %v2523
    %2588 = vmatprep.subr.mxu0 0.0
    %2589 = vmatpush1.msra.mxu0 %v2524
    %2590 = vmatprep.subr.mxu0 0.0
    %2591 = vmatpush1.msra.mxu0 %v2525
    %2592 = vmatprep.subr.mxu0 0.0
    %2593 = vmatpush1.msra.mxu0 %v2526
    %2594 = vmatprep.subr.mxu0 0.0
    %2595 = vmatpush1.msra.mxu0 %v2527
    %2596 = vmatprep.subr.mxu0 0.0
    %2597 = vmatpush1.msra.mxu0 %v2528
    %2598 = vmatprep.subr.mxu0 0.0
    %2599 = vmatpush1.msra.mxu0 %v2529
    %2600 = vmatprep.subr.mxu0 0.0
    %2601 = vmatpush1.msra.mxu0 %v2530
    %2602 = vmatprep.subr.mxu0 0.0
    %2603 = vmatpush1.msra.mxu0 %v2531
    %2604 = vmatprep.subr.mxu0 0.0
    %2605 = vmatpush1.msra.mxu0 %v2532
    %2606 = vmatprep.subr.mxu0 0.0
    %2607 = vmatpush1.msra.mxu0 0.0
    %2608 = vmatprep.subr.mxu0 0.0
    %2609 = vmatpush1.msra.mxu0 0.0
    %2610 = vmatprep.subr.mxu0 0.0
    %2611 = vmatpush1.msra.mxu0 0.0
    %2612 = vmatprep.subr.mxu0 0.0
    %2613 = vmatpush1.msra.mxu0 0.0
    %2614 = vmatprep.subr.mxu0 0.0
    %2615 = vmatpush1.msra.mxu0 0.0
    %2616 = vmatprep.subr.mxu0 0.0
    %2617 = vmatpush1.msra.mxu0 0.0
    %2618 = vmatprep.subr.mxu0 0.0
    %2619 = vmatpush1.msra.mxu0 0.0
    %2620 = vmatprep.subr.mxu0 0.0
    %2621 = vmatpush1.msra.mxu0 0.0
    %2622 = vmatprep.subr.mxu0 0.0
    %2623 = vmatpush1.msra.mxu0 0.0
    %2624 = vmatprep.subr.mxu0 0.0
    %2625 = vmatpush1.msra.mxu0 0.0
    %2626 = vmatprep.subr.mxu0 0.0
    %2627 = vmatpush1.msra.mxu0 0.0
    %2628 = vmatprep.subr.mxu0 0.0
    %2629 = vmatpush1.msra.mxu0 0.0
    %2630 = vmatprep.subr.mxu0 0.0
    %2631 = vmatpush1.msra.mxu0 0.0
    %2632 = vmatprep.subr.mxu0 0.0
    %2633 = vmatpush1.msra.mxu0 0.0
    %2634 = vmatprep.subr.mxu0 0.0
    %2635 = vmatpush1.msra.mxu0 0.0
    %2636 = vmatprep.subr.mxu0 0.0
    %2637 = vmatpush1.msra.mxu0 0.0
    %2638 = vmatprep.mubr.f32.mxu0 0.0
    %2639 = vmatmul.mubr.f32.gmra.mrb[0].mxu0 %v2485
    %v2640 = vpop.f32.mrb[0].mxu0
    %v2641 = vadd.f32 %v2573, %v2640
    %v2642 = vpop.f32.mrb[0].mxu0
    %2643 = vmatprep.mubr.f32.mxu0 0.0
    %2644 = vmatmul.mubr.f32.gmra.mrb[0].mxu0 %v2486
    %v2645 = vpop.f32.mrb[0].mxu0
    %v2646 = vadd.f32 %v2573, %v2645
    %v2647 = vpop.f32.mrb[0].mxu0
    %2648 = vmatprep.mubr.f32.mxu0 0.0
    %2649 = vmatmul.mubr.f32.gmra.mrb[0].mxu0 %v2487
    %v2650 = vpop.f32.mrb[0].mxu0
    %v2651 = vadd.f32 %v2573, %v2650
    %v2652 = vpop.f32.mrb[0].mxu0
    %2653 = vmatprep.mubr.f32.mxu0 0.0
    %2654 = vmatmul.mubr.f32.gmra.mrb[0].mxu0 %v2488
    %v2655 = vpop.f32.mrb[0].mxu0
    %v2656 = vadd.f32 %v2573, %v2655
    %v2657 = vpop.f32.mrb[0].mxu0
    %2658 = vmatprep.mubr.f32.mxu0 0.0
    %2659 = vmatmul.mubr.f32.gmra.mrb[0].mxu0 %v2489
    %v2660 = vpop.f32.mrb[0].mxu0
    %v2661 = vadd.f32 %v2573, %v2660
    %v2662 = vpop.f32.mrb[0].mxu0
    %2663 = vmatprep.mubr.f32.mxu0 0.0
    %2664 = vmatmul.mubr.f32.gmra.mrb[0].mxu0 %v2490
    %v2665 = vpop.f32.mrb[0].mxu0
    %v2666 = vadd.f32 %v2573, %v2665
    %v2667 = vpop.f32.mrb[0].mxu0
    %2668 = vmatprep.mubr.f32.mxu0 0.0
    %2669 = vmatmul.mubr.f32.gmra.mrb[0].mxu0 %v2491
    %v2670 = vpop.f32.mrb[0].mxu0
    %v2671 = vadd.f32 %v2573, %v2670
    %v2672 = vpop.f32.mrb[0].mxu0
    %2673 = vmatprep.mubr.f32.mxu0 0.0
    %2674 = vmatmul.mubr.f32.gmra.mrb[0].mxu0 %v2492
    %v2675 = vpop.f32.mrb[0].mxu0
    %v2676 = vadd.f32 %v2573, %v2675
    %v2677 = vpop.f32.mrb[0].mxu0
    %2678 = vmatprep.mubr.f32.mxu0 0.0
    %2679 = vmatmul.mubr.f32.gmra.mrb[0].mxu0 %v2493
    %v2680 = vpop.f32.mrb[0].mxu0
    %v2681 = vadd.f32 %v2573, %v2680
    %v2682 = vpop.f32.mrb[0].mxu0
    %2683 = vmatprep.mubr.f32.mxu0 0.0
    %2684 = vmatmul.mubr.f32.gmra.mrb[0].mxu0 %v2494
    %v2685 = vpop.f32.mrb[0].mxu0
    %v2686 = vadd.f32 %v2573, %v2685
    %v2687 = vpop.f32.mrb[0].mxu0
    %2688 = vmatprep.mubr.f32.mxu0 0.0
    %2689 = vmatmul.mubr.f32.gmra.mrb[0].mxu0 %v2495
    %v2690 = vpop.f32.mrb[0].mxu0
    %v2691 = vadd.f32 %v2573, %v2690
    %v2692 = vpop.f32.mrb[0].mxu0
    %2693 = vmatprep.mubr.f32.mxu0 0.0
    %2694 = vmatmul.mubr.f32.gmra.mrb[0].mxu0 %v2496
    %v2695 = vpop.f32.mrb[0].mxu0
    %v2696 = vadd.f32 %v2573, %v2695
    %v2697 = vpop.f32.mrb[0].mxu0
    %2698 = vmatprep.mubr.f32.mxu0 0.0
    %2699 = vmatmul.mubr.f32.gmra.mrb[0].mxu0 %v2497
    %v2700 = vpop.f32.mrb[0].mxu0
    %v2701 = vadd.f32 %v2573, %v2700
    %v2702 = vpop.f32.mrb[0].mxu0
    %2703 = vmatprep.mubr.f32.mxu0 0.0
    %2704 = vmatmul.mubr.f32.gmra.mrb[0].mxu0 %v2498
    %v2705 = vpop.f32.mrb[0].mxu0
    %v2706 = vadd.f32 %v2573, %v2705
    %v2707 = vpop.f32.mrb[0].mxu0
    %2708 = vdwg.mxu0
    %v2709 = vlaneseq
    %v2710 = vshrl.u32 %v2709, 7
    %v2711 = vsub.s32 2, %v2710
    %v2712 = vrot.slane %v2568, %v2711
    %2713 = vmatprep.subr.mxu0 0.0
    %2714 = vmatpush1.msra.mxu0 %v2534
    %2715 = vmatprep.subr.mxu0 0.0
    %2716 = vmatpush1.msra.mxu0 %v2535
    %2717 = vmatprep.subr.mxu0 0.0
    %2718 = vmatpush1.msra.mxu0 %v2536
    %2719 = vmatprep.subr.mxu0 0.0
    %2720 = vmatpush1.msra.mxu0 %v2537
    %2721 = vmatprep.subr.mxu0 0.0
    %2722 = vmatpush1.msra.mxu0 %v2538
    %2723 = vmatprep.subr.mxu0 0.0
    %2724 = vmatpush1.msra.mxu0 %v2539
    %2725 = vmatprep.subr.mxu0 0.0
    %2726 = vmatpush1.msra.mxu0 %v2540
    %2727 = vmatprep.subr.mxu0 0.0
    %2728 = vmatpush1.msra.mxu0 %v2541
    %2729 = vmatprep.subr.mxu0 0.0
    %2730 = vmatpush1.msra.mxu0 %v2542
    %2731 = vmatprep.subr.mxu0 0.0
    %2732 = vmatpush1.msra.mxu0 %v2543
    %2733 = vmatprep.subr.mxu0 0.0
    %2734 = vmatpush1.msra.mxu0 %v2544
    %2735 = vmatprep.subr.mxu0 0.0
    %2736 = vmatpush1.msra.mxu0 %v2545
    %2737 = vmatprep.subr.mxu0 0.0
    %2738 = vmatpush1.msra.mxu0 %v2546
    %2739 = vmatprep.subr.mxu0 0.0
    %2740 = vmatpush1.msra.mxu0 %v2547
    %2741 = vmatprep.subr.mxu0 0.0
    %2742 = vmatpush1.msra.mxu0 %v2548
    %2743 = vmatprep.subr.mxu0 0.0
    %2744 = vmatpush1.msra.mxu0 %v2549
    %2745 = vmatprep.subr.mxu0 0.0
    %2746 = vmatpush1.msra.mxu0 0.0
    %2747 = vmatprep.subr.mxu0 0.0
    %2748 = vmatpush1.msra.mxu0 0.0
    %2749 = vmatprep.subr.mxu0 0.0
    %2750 = vmatpush1.msra.mxu0 0.0
    %2751 = vmatprep.subr.mxu0 0.0
    %2752 = vmatpush1.msra.mxu0 0.0
    %2753 = vmatprep.subr.mxu0 0.0
    %2754 = vmatpush1.msra.mxu0 0.0
    %2755 = vmatprep.subr.mxu0 0.0
    %2756 = vmatpush1.msra.mxu0 0.0
    %2757 = vmatprep.subr.mxu0 0.0
    %2758 = vmatpush1.msra.mxu0 0.0
    %2759 = vmatprep.subr.mxu0 0.0
    %2760 = vmatpush1.msra.mxu0 0.0
    %2761 = vmatprep.subr.mxu0 0.0
    %2762 = vmatpush1.msra.mxu0 0.0
    %2763 = vmatprep.subr.mxu0 0.0
    %2764 = vmatpush1.msra.mxu0 0.0
    %2765 = vmatprep.subr.mxu0 0.0
    %2766 = vmatpush1.msra.mxu0 0.0
    %2767 = vmatprep.subr.mxu0 0.0
    %2768 = vmatpush1.msra.mxu0 0.0
    %2769 = vmatprep.subr.mxu0 0.0
    %2770 = vmatpush1.msra.mxu0 0.0
    %2771 = vmatprep.subr.mxu0 0.0
    %2772 = vmatpush1.msra.mxu0 0.0
    %2773 = vmatprep.subr.mxu0 0.0
    %2774 = vmatpush1.msra.mxu0 0.0
    %2775 = vmatprep.subr.mxu0 0.0
    %2776 = vmatpush1.msra.mxu0 0.0
    %2777 = vmatprep.mubr.f32.mxu0 0.0
    %2778 = vmatmul.mubr.f32.gmra.mrb[0].mxu0 %v2485
    %v2779 = vpop.f32.mrb[0].mxu0
    %v2780 = vadd.f32 %v2712, %v2779
    %v2781 = vpop.f32.mrb[0].mxu0
    %2782 = vmatprep.mubr.f32.mxu0 0.0
    %2783 = vmatmul.mubr.f32.gmra.mrb[0].mxu0 %v2486
    %v2784 = vpop.f32.mrb[0].mxu0
    %v2785 = vadd.f32 %v2712, %v2784
    %v2786 = vpop.f32.mrb[0].mxu0
    %2787 = vmatprep.mubr.f32.mxu0 0.0
    %2788 = vmatmul.mubr.f32.gmra.mrb[0].mxu0 %v2487
    %v2789 = vpop.f32.mrb[0].mxu0
    %v2790 = vadd.f32 %v2712, %v2789
    %v2791 = vpop.f32.mrb[0].mxu0
    %2792 = vmatprep.mubr.f32.mxu0 0.0
    %2793 = vmatmul.mubr.f32.gmra.mrb[0].mxu0 %v2488
    %v2794 = vpop.f32.mrb[0].mxu0
    %v2795 = vadd.f32 %v2712, %v2794
    %v2796 = vpop.f32.mrb[0].mxu0
    %2797 = vmatprep.mubr.f32.mxu0 0.0
    %2798 = vmatmul.mubr.f32.gmra.mrb[0].mxu0 %v2489
    %v2799 = vpop.f32.mrb[0].mxu0
    %v2800 = vadd.f32 %v2712, %v2799
    %v2801 = vpop.f32.mrb[0].mxu0
    %2802 = vmatprep.mubr.f32.mxu0 0.0
    %2803 = vmatmul.mubr.f32.gmra.mrb[0].mxu0 %v2490
    %v2804 = vpop.f32.mrb[0].mxu0
    %v2805 = vadd.f32 %v2712, %v2804
    %v2806 = vpop.f32.mrb[0].mxu0
    %2807 = vmatprep.mubr.f32.mxu0 0.0
    %2808 = vmatmul.mubr.f32.gmra.mrb[0].mxu0 %v2491
    %v2809 = vpop.f32.mrb[0].mxu0
    %v2810 = vadd.f32 %v2712, %v2809
    %v2811 = vpop.f32.mrb[0].mxu0
    %2812 = vmatprep.mubr.f32.mxu0 0.0
    %2813 = vmatmul.mubr.f32.gmra.mrb[0].mxu0 %v2492
    %v2814 = vpop.f32.mrb[0].mxu0
    %v2815 = vadd.f32 %v2712, %v2814
    %v2816 = vpop.f32.mrb[0].mxu0
    %2817 = vmatprep.mubr.f32.mxu0 0.0
    %2818 = vmatmul.mubr.f32.gmra.mrb[0].mxu0 %v2493
    %v2819 = vpop.f32.mrb[0].mxu0
    %v2820 = vadd.f32 %v2712, %v2819
    %v2821 = vpop.f32.mrb[0].mxu0
    %2822 = vmatprep.mubr.f32.mxu0 0.0
    %2823 = vmatmul.mubr.f32.gmra.mrb[0].mxu0 %v2494
    %v2824 = vpop.f32.mrb[0].mxu0
    %v2825 = vadd.f32 %v2712, %v2824
    %v2826 = vpop.f32.mrb[0].mxu0
    %2827 = vmatprep.mubr.f32.mxu0 0.0
    %2828 = vmatmul.mubr.f32.gmra.mrb[0].mxu0 %v2495
    %v2829 = vpop.f32.mrb[0].mxu0
    %v2830 = vadd.f32 %v2712, %v2829
    %v2831 = vpop.f32.mrb[0].mxu0
    %2832 = vmatprep.mubr.f32.mxu0 0.0
    %2833 = vmatmul.mubr.f32.gmra.mrb[0].mxu0 %v2496
    %v2834 = vpop.f32.mrb[0].mxu0
    %v2835 = vadd.f32 %v2712, %v2834
    %v2836 = vpop.f32.mrb[0].mxu0
    %2837 = vmatprep.mubr.f32.mxu0 0.0
    %2838 = vmatmul.mubr.f32.gmra.mrb[0].mxu0 %v2497
    %v2839 = vpop.f32.mrb[0].mxu0
    %v2840 = vadd.f32 %v2712, %v2839
    %v2841 = vpop.f32.mrb[0].mxu0
    %2842 = vmatprep.mubr.f32.mxu0 0.0
    %2843 = vmatmul.mubr.f32.gmra.mrb[0].mxu0 %v2498
    %v2844 = vpop.f32.mrb[0].mxu0
    %v2845 = vadd.f32 %v2712, %v2844
    %v2846 = vpop.f32.mrb[0].mxu0
    %2847 = vdwg.mxu0
    %v2848 = vlaneseq
    %v2849 = vshrl.u32 %v2848, 7
    %v2850 = vsub.s32 0, %v2849
    %v2851 = vrot.slane %v2568, %v2850
    %2852 = vmatprep.subr.mxu0 0.0
    %2853 = vmatpush1.msra.mxu0 %v2500
    %2854 = vmatprep.subr.mxu0 0.0
    %2855 = vmatpush1.msra.mxu0 %v2501
    %2856 = vmatprep.subr.mxu0 0.0
    %2857 = vmatpush1.msra.mxu0 %v2502
    %2858 = vmatprep.subr.mxu0 0.0
    %2859 = vmatpush1.msra.mxu0 %v2503
    %2860 = vmatprep.subr.mxu0 0.0
    %2861 = vmatpush1.msra.mxu0 %v2504
    %2862 = vmatprep.subr.mxu0 0.0
    %2863 = vmatpush1.msra.mxu0 %v2505
    %2864 = vmatprep.subr.mxu0 0.0
    %2865 = vmatpush1.msra.mxu0 %v2506
    %2866 = vmatprep.subr.mxu0 0.0
    %2867 = vmatpush1.msra.mxu0 %v2507
    %2868 = vmatprep.subr.mxu0 0.0
    %2869 = vmatpush1.msra.mxu0 %v2508
    %2870 = vmatprep.subr.mxu0 0.0
    %2871 = vmatpush1.msra.mxu0 %v2509
    %2872 = vmatprep.subr.mxu0 0.0
    %2873 = vmatpush1.msra.mxu0 %v2510
    %2874 = vmatprep.subr.mxu0 0.0
    %2875 = vmatpush1.msra.mxu0 %v2511
    %2876 = vmatprep.subr.mxu0 0.0
    %2877 = vmatpush1.msra.mxu0 %v2512
    %2878 = vmatprep.subr.mxu0 0.0
    %2879 = vmatpush1.msra.mxu0 %v2513
    %2880 = vmatprep.subr.mxu0 0.0
    %2881 = vmatpush1.msra.mxu0 %v2514
    %2882 = vmatprep.subr.mxu0 0.0
    %2883 = vmatpush1.msra.mxu0 %v2515
    %2884 = vmatprep.subr.mxu0 0.0
    %2885 = vmatpush1.msra.mxu0 0.0
    %2886 = vmatprep.subr.mxu0 0.0
    %2887 = vmatpush1.msra.mxu0 0.0
    %2888 = vmatprep.subr.mxu0 0.0
    %2889 = vmatpush1.msra.mxu0 0.0
    %2890 = vmatprep.subr.mxu0 0.0
    %2891 = vmatpush1.msra.mxu0 0.0
    %2892 = vmatprep.subr.mxu0 0.0
    %2893 = vmatpush1.msra.mxu0 0.0
    %2894 = vmatprep.subr.mxu0 0.0
    %2895 = vmatpush1.msra.mxu0 0.0
    %2896 = vmatprep.subr.mxu0 0.0
    %2897 = vmatpush1.msra.mxu0 0.0
    %2898 = vmatprep.subr.mxu0 0.0
    %2899 = vmatpush1.msra.mxu0 0.0
    %2900 = vmatprep.subr.mxu0 0.0
    %2901 = vmatpush1.msra.mxu0 0.0
    %2902 = vmatprep.subr.mxu0 0.0
    %2903 = vmatpush1.msra.mxu0 0.0
    %2904 = vmatprep.subr.mxu0 0.0
    %2905 = vmatpush1.msra.mxu0 0.0
    %2906 = vmatprep.subr.mxu0 0.0
    %2907 = vmatpush1.msra.mxu0 0.0
    %2908 = vmatprep.subr.mxu0 0.0
    %2909 = vmatpush1.msra.mxu0 0.0
    %2910 = vmatprep.subr.mxu0 0.0
    %2911 = vmatpush1.msra.mxu0 0.0
    %2912 = vmatprep.subr.mxu0 0.0
    %2913 = vmatpush1.msra.mxu0 0.0
    %2914 = vmatprep.subr.mxu0 0.0
    %2915 = vmatpush1.msra.mxu0 0.0
    %2916 = vmatprep.mubr.f32.mxu0 0.0
    %2917 = vmatmul.mubr.f32.gmra.mrb[0].mxu0 %v2485
    %v2918 = vpop.f32.mrb[0].mxu0
    %v2919 = vadd.f32 %v2851, %v2918
    %v2920 = vpop.f32.mrb[0].mxu0
    %2921 = vmatprep.mubr.f32.mxu0 0.0
    %2922 = vmatmul.mubr.f32.gmra.mrb[0].mxu0 %v2486
    %v2923 = vpop.f32.mrb[0].mxu0
    %v2924 = vadd.f32 %v2851, %v2923
    %v2925 = vpop.f32.mrb[0].mxu0
    %2926 = vmatprep.mubr.f32.mxu0 0.0
    %2927 = vmatmul.mubr.f32.gmra.mrb[0].mxu0 %v2487
    %v2928 = vpop.f32.mrb[0].mxu0
    %v2929 = vadd.f32 %v2851, %v2928
    %v2930 = vpop.f32.mrb[0].mxu0
    %2931 = vmatprep.mubr.f32.mxu0 0.0
    %2932 = vmatmul.mubr.f32.gmra.mrb[0].mxu0 %v2488
    %v2933 = vpop.f32.mrb[0].mxu0
    %v2934 = vadd.f32 %v2851, %v2933
    %v2935 = vpop.f32.mrb[0].mxu0
    %2936 = vmatprep.mubr.f32.mxu0 0.0
    %2937 = vmatmul.mubr.f32.gmra.mrb[0].mxu0 %v2489
    %v2938 = vpop.f32.mrb[0].mxu0
    %v2939 = vadd.f32 %v2851, %v2938
    %v2940 = vpop.f32.mrb[0].mxu0
    %2941 = vmatprep.mubr.f32.mxu0 0.0
    %2942 = vmatmul.mubr.f32.gmra.mrb[0].mxu0 %v2490
    %v2943 = vpop.f32.mrb[0].mxu0
    %v2944 = vadd.f32 %v2851, %v2943
    %v2945 = vpop.f32.mrb[0].mxu0
    %2946 = vmatprep.mubr.f32.mxu0 0.0
    %2947 = vmatmul.mubr.f32.gmra.mrb[0].mxu0 %v2491
    %v2948 = vpop.f32.mrb[0].mxu0
    %v2949 = vadd.f32 %v2851, %v2948
    %v2950 = vpop.f32.mrb[0].mxu0
    %2951 = vdwg.mxu0
    %v2952 = vmul.f32 %v2919, %v2641
    %v2953 = vmul.f32 %v2924, %v2646
    %v2954 = vmul.f32 %v2929, %v2651
    %v2955 = vmul.f32 %v2934, %v2656
    %v2956 = vmul.f32 %v2939, %v2661
    %v2957 = vmul.f32 %v2944, %v2666
    %v2958 = vmul.f32 %v2949, %v2671
    %2959 = vmatprep.subr.mxu0 0.0
    %2960 = vmatpush1.msra.mxu0 %v63
    %2961 = vmatprep.subr.mxu0 0.0
    %2962 = vmatpush1.msra.mxu0 %v64
    %2963 = vmatprep.subr.mxu0 0.0
    %2964 = vmatpush1.msra.mxu0 %v65
    %2965 = vmatprep.subr.mxu0 0.0
    %2966 = vmatpush1.msra.mxu0 %v66
    %2967 = vmatprep.subr.mxu0 0.0
    %2968 = vmatpush1.msra.mxu0 %v67
    %2969 = vmatprep.subr.mxu0 0.0
    %2970 = vmatpush1.msra.mxu0 %v68
    %2971 = vmatprep.subr.mxu0 0.0
    %2972 = vmatpush1.msra.mxu0 %v69
    %2973 = vmatprep.subr.mxu0 0.0
    %2974 = vmatpush1.msra.mxu0 %v70
    %2975 = vmatprep.subr.mxu0 0.0
    %2976 = vmatpush1.msra.mxu0 %v71
    %2977 = vmatprep.subr.mxu0 0.0
    %2978 = vmatpush1.msra.mxu0 %v72
    %2979 = vmatprep.subr.mxu0 0.0
    %2980 = vmatpush1.msra.mxu0 %v73
    %2981 = vmatprep.subr.mxu0 0.0
    %2982 = vmatpush1.msra.mxu0 %v74
    %2983 = vmatprep.subr.mxu0 0.0
    %2984 = vmatpush1.msra.mxu0 %v75
    %2985 = vmatprep.subr.mxu0 0.0
    %2986 = vmatpush1.msra.mxu0 %v76
    %2987 = vmatprep.subr.mxu0 0.0
    %2988 = vmatpush1.msra.mxu0 %v77
    %2989 = vmatprep.subr.mxu0 0.0
    %2990 = vmatpush1.msra.mxu0 %v78
    %2991 = vmatprep.subr.mxu0 0.0
    %2992 = vmatpush1.msra.mxu0 0.0
    %2993 = vmatprep.subr.mxu0 0.0
    %2994 = vmatpush1.msra.mxu0 0.0
    %2995 = vmatprep.subr.mxu0 0.0
    %2996 = vmatpush1.msra.mxu0 0.0
    %2997 = vmatprep.subr.mxu0 0.0
    %2998 = vmatpush1.msra.mxu0 0.0
    %2999 = vmatprep.subr.mxu0 0.0
    %3000 = vmatpush1.msra.mxu0 0.0
    %3001 = vmatprep.subr.mxu0 0.0
    %3002 = vmatpush1.msra.mxu0 0.0
    %3003 = vmatprep.subr.mxu0 0.0
    %3004 = vmatpush1.msra.mxu0 0.0
    %3005 = vmatprep.subr.mxu0 0.0
    %3006 = vmatpush1.msra.mxu0 0.0
    %3007 = vmatprep.subr.mxu0 0.0
    %3008 = vmatpush1.msra.mxu0 0.0
    %3009 = vmatprep.subr.mxu0 0.0
    %3010 = vmatpush1.msra.mxu0 0.0
    %3011 = vmatprep.subr.mxu0 0.0
    %3012 = vmatpush1.msra.mxu0 0.0
    %3013 = vmatprep.subr.mxu0 0.0
    %3014 = vmatpush1.msra.mxu0 0.0
    %3015 = vmatprep.subr.mxu0 0.0
    %3016 = vmatpush1.msra.mxu0 0.0
    %3017 = vmatprep.subr.mxu0 0.0
    %3018 = vmatpush1.msra.mxu0 0.0
    %3019 = vmatprep.subr.mxu0 0.0
    %3020 = vmatpush1.msra.mxu0 0.0
    %3021 = vmatprep.subr.mxu0 0.0
    %3022 = vmatpush1.msra.mxu0 0.0
    %3023 = vmatprep.mubr.f32.mxu0 0.0
    %3024 = vmatmul.mubr.f32.gmra.mrb[0].mxu0 %v2952
    %v3025 = vpop.f32.mrb[0].mxu0
    %v3026 = vadd.f32 0.0, %v3025
    %v3027 = vpop.f32.mrb[0].mxu0
    %3028 = vmatprep.mubr.f32.mxu0 0.0
    %3029 = vmatmul.mubr.f32.gmra.mrb[0].mxu0 %v2953
    %v3030 = vpop.f32.mrb[0].mxu0
    %v3031 = vadd.f32 0.0, %v3030
    %v3032 = vpop.f32.mrb[0].mxu0
    %3033 = vmatprep.mubr.f32.mxu0 0.0
    %3034 = vmatmul.mubr.f32.gmra.mrb[0].mxu0 %v2954
    %v3035 = vpop.f32.mrb[0].mxu0
    %v3036 = vadd.f32 0.0, %v3035
    %v3037 = vpop.f32.mrb[0].mxu0
    %3038 = vmatprep.mubr.f32.mxu0 0.0
    %3039 = vmatmul.mubr.f32.gmra.mrb[0].mxu0 %v2955
    %v3040 = vpop.f32.mrb[0].mxu0
    %v3041 = vadd.f32 0.0, %v3040
    %v3042 = vpop.f32.mrb[0].mxu0
    %3043 = vmatprep.mubr.f32.mxu0 0.0
    %3044 = vmatmul.mubr.f32.gmra.mrb[0].mxu0 %v2956
    %v3045 = vpop.f32.mrb[0].mxu0
    %v3046 = vadd.f32 0.0, %v3045
    %v3047 = vpop.f32.mrb[0].mxu0
    %3048 = vmatprep.mubr.f32.mxu0 0.0
    %3049 = vmatmul.mubr.f32.gmra.mrb[0].mxu0 %v2957
    %v3050 = vpop.f32.mrb[0].mxu0
    %v3051 = vadd.f32 0.0, %v3050
    %v3052 = vpop.f32.mrb[0].mxu0
    %3053 = vmatprep.mubr.f32.mxu0 0.0
    %3054 = vmatmul.mubr.f32.gmra.mrb[0].mxu0 %v2958
    %v3055 = vpop.f32.mrb[0].mxu0
    %v3056 = vadd.f32 0.0, %v3055
    %v3057 = vpop.f32.mrb[0].mxu0
    %3058 = vdwg.mxu0
    %v3059 = vmul.f32 %v2919, %v2676
    %v3060 = vmul.f32 %v2924, %v2681
    %v3061 = vmul.f32 %v2929, %v2686
    %v3062 = vmul.f32 %v2934, %v2691
    %v3063 = vmul.f32 %v2939, %v2696
    %v3064 = vmul.f32 %v2944, %v2701
    %v3065 = vmul.f32 %v2949, %v2706
    %3066 = vmatprep.subr.mxu0 0.0
    %3067 = vmatpush1.msra.mxu0 %v63
    %3068 = vmatprep.subr.mxu0 0.0
    %3069 = vmatpush1.msra.mxu0 %v64
    %3070 = vmatprep.subr.mxu0 0.0
    %3071 = vmatpush1.msra.mxu0 %v65
    %3072 = vmatprep.subr.mxu0 0.0
    %3073 = vmatpush1.msra.mxu0 %v66
    %3074 = vmatprep.subr.mxu0 0.0
    %3075 = vmatpush1.msra.mxu0 %v67
    %3076 = vmatprep.subr.mxu0 0.0
    %3077 = vmatpush1.msra.mxu0 %v68
    %3078 = vmatprep.subr.mxu0 0.0
    %3079 = vmatpush1.msra.mxu0 %v69
    %3080 = vmatprep.subr.mxu0 0.0
    %3081 = vmatpush1.msra.mxu0 %v70
    %3082 = vmatprep.subr.mxu0 0.0
    %3083 = vmatpush1.msra.mxu0 %v71
    %3084 = vmatprep.subr.mxu0 0.0
    %3085 = vmatpush1.msra.mxu0 %v72
    %3086 = vmatprep.subr.mxu0 0.0
    %3087 = vmatpush1.msra.mxu0 %v73
    %3088 = vmatprep.subr.mxu0 0.0
    %3089 = vmatpush1.msra.mxu0 %v74
    %3090 = vmatprep.subr.mxu0 0.0
    %3091 = vmatpush1.msra.mxu0 %v75
    %3092 = vmatprep.subr.mxu0 0.0
    %3093 = vmatpush1.msra.mxu0 %v76
    %3094 = vmatprep.subr.mxu0 0.0
    %3095 = vmatpush1.msra.mxu0 %v77
    %3096 = vmatprep.subr.mxu0 0.0
    %3097 = vmatpush1.msra.mxu0 %v78
    %3098 = vmatprep.subr.mxu0 0.0
    %3099 = vmatpush1.msra.mxu0 0.0
    %3100 = vmatprep.subr.mxu0 0.0
    %3101 = vmatpush1.msra.mxu0 0.0
    %3102 = vmatprep.subr.mxu0 0.0
    %3103 = vmatpush1.msra.mxu0 0.0
    %3104 = vmatprep.subr.mxu0 0.0
    %3105 = vmatpush1.msra.mxu0 0.0
    %3106 = vmatprep.subr.mxu0 0.0
    %3107 = vmatpush1.msra.mxu0 0.0
    %3108 = vmatprep.subr.mxu0 0.0
    %3109 = vmatpush1.msra.mxu0 0.0
    %3110 = vmatprep.subr.mxu0 0.0
    %3111 = vmatpush1.msra.mxu0 0.0
    %3112 = vmatprep.subr.mxu0 0.0
    %3113 = vmatpush1.msra.mxu0 0.0
    %3114 = vmatprep.subr.mxu0 0.0
    %3115 = vmatpush1.msra.mxu0 0.0
    %3116 = vmatprep.subr.mxu0 0.0
    %3117 = vmatpush1.msra.mxu0 0.0
    %3118 = vmatprep.subr.mxu0 0.0
    %3119 = vmatpush1.msra.mxu0 0.0
    %3120 = vmatprep.subr.mxu0 0.0
    %3121 = vmatpush1.msra.mxu0 0.0
    %3122 = vmatprep.subr.mxu0 0.0
    %3123 = vmatpush1.msra.mxu0 0.0
    %3124 = vmatprep.subr.mxu0 0.0
    %3125 = vmatpush1.msra.mxu0 0.0
    %3126 = vmatprep.subr.mxu0 0.0
    %3127 = vmatpush1.msra.mxu0 0.0
    %3128 = vmatprep.subr.mxu0 0.0
    %3129 = vmatpush1.msra.mxu0 0.0
    %3130 = vmatprep.mubr.f32.mxu0 0.0
    %3131 = vmatmul.mubr.f32.gmra.mrb[0].mxu0 %v3059
    %v3132 = vpop.f32.mrb[0].mxu0
    %v3133 = vadd.f32 0.0, %v3132
    %v3134 = vpop.f32.mrb[0].mxu0
    %3135 = vmatprep.mubr.f32.mxu0 0.0
    %3136 = vmatmul.mubr.f32.gmra.mrb[0].mxu0 %v3060
    %v3137 = vpop.f32.mrb[0].mxu0
    %v3138 = vadd.f32 0.0, %v3137
    %v3139 = vpop.f32.mrb[0].mxu0
    %3140 = vmatprep.mubr.f32.mxu0 0.0
    %3141 = vmatmul.mubr.f32.gmra.mrb[0].mxu0 %v3061
    %v3142 = vpop.f32.mrb[0].mxu0
    %v3143 = vadd.f32 0.0, %v3142
    %v3144 = vpop.f32.mrb[0].mxu0
    %3145 = vmatprep.mubr.f32.mxu0 0.0
    %3146 = vmatmul.mubr.f32.gmra.mrb[0].mxu0 %v3062
    %v3147 = vpop.f32.mrb[0].mxu0
    %v3148 = vadd.f32 0.0, %v3147
    %v3149 = vpop.f32.mrb[0].mxu0
    %3150 = vmatprep.mubr.f32.mxu0 0.0
    %3151 = vmatmul.mubr.f32.gmra.mrb[0].mxu0 %v3063
    %v3152 = vpop.f32.mrb[0].mxu0
    %v3153 = vadd.f32 0.0, %v3152
    %v3154 = vpop.f32.mrb[0].mxu0
    %3155 = vmatprep.mubr.f32.mxu0 0.0
    %3156 = vmatmul.mubr.f32.gmra.mrb[0].mxu0 %v3064
    %v3157 = vpop.f32.mrb[0].mxu0
    %v3158 = vadd.f32 0.0, %v3157
    %v3159 = vpop.f32.mrb[0].mxu0
    %3160 = vmatprep.mubr.f32.mxu0 0.0
    %3161 = vmatmul.mubr.f32.gmra.mrb[0].mxu0 %v3065
    %v3162 = vpop.f32.mrb[0].mxu0
    %v3163 = vadd.f32 0.0, %v3162
    %v3164 = vpop.f32.mrb[0].mxu0
    %3165 = vdwg.mxu0
    %v3166 = vsub.f32 %v3133, %v3026
    %v3167 = vsub.f32 %v3138, %v3031
    %v3168 = vsub.f32 %v3143, %v3036
    %v3169 = vsub.f32 %v3148, %v3041
    %v3170 = vsub.f32 %v3153, %v3046
    %v3171 = vsub.f32 %v3158, %v3051
    %v3172 = vsub.f32 %v3163, %v3056
    %v3173 = vmul.f32 %v3166, 1.442695
    %v3174 = vpow.pop %v3173
    %v3175 = vmul.f32 %v3167, 1.442695
    %v3176 = vpow.pop %v3175
    %v3177 = vmul.f32 %v3168, 1.442695
    %v3178 = vpow.pop %v3177
    %v3179 = vmul.f32 %v3169, 1.442695
    %v3180 = vpow.pop %v3179
    %v3181 = vmul.f32 %v3170, 1.442695
    %v3182 = vpow.pop %v3181
    %v3183 = vmul.f32 %v3171, 1.442695
    %v3184 = vpow.pop %v3183
    %v3185 = vmul.f32 %v3172, 1.442695
    %v3186 = vpow.pop %v3185
    %v3187 = vadd.f32 %v3174, 1.0
    %v3188 = vadd.f32 %v3176, 1.0
    %v3189 = vadd.f32 %v3178, 1.0
    %v3190 = vadd.f32 %v3180, 1.0
    %v3191 = vadd.f32 %v3182, 1.0
    %v3192 = vadd.f32 %v3184, 1.0
    %v3193 = vadd.f32 %v3186, 1.0
    %v3194 = vrcp.pop %v3187
    %v3195 = vrcp.pop %v3188
    %v3196 = vrcp.pop %v3189
    %v3197 = vrcp.pop %v3190
    %v3198 = vrcp.pop %v3191
    %v3199 = vrcp.pop %v3192
    %v3200 = vrcp.pop %v3193
    %v3201 = vsub.f32 %v2780, %v2815
    %v3202 = vsub.f32 %v2785, %v2820
    %v3203 = vsub.f32 %v2790, %v2825
    %v3204 = vsub.f32 %v2795, %v2830
    %v3205 = vsub.f32 %v2800, %v2835
    %v3206 = vsub.f32 %v2805, %v2840
    %v3207 = vsub.f32 %v2810, %v2845
    %v3208 = vmul.f32 %v3194, %v3201
    %v3209 = vmul.f32 %v3195, %v3202
    %v3210 = vmul.f32 %v3196, %v3203
    %v3211 = vmul.f32 %v3197, %v3204
    %v3212 = vmul.f32 %v3198, %v3205
    %v3213 = vmul.f32 %v3199, %v3206
    %v3214 = vmul.f32 %v3200, %v3207
    %v3215 = vadd.f32 %v2815, %v3208
    %v3216 = vadd.f32 %v2820, %v3209
    %v3217 = vadd.f32 %v2825, %v3210
    %v3218 = vadd.f32 %v2830, %v3211
    %v3219 = vadd.f32 %v2835, %v3212
    %v3220 = vadd.f32 %v2840, %v3213
    %v3221 = vadd.f32 %v2845, %v3214
    %3222 = vmatprep.subr.mxu0 0.0
    %3223 = vmatpush1.msra.mxu0 %v2500
    %3224 = vmatprep.subr.mxu0 0.0
    %3225 = vmatpush1.msra.mxu0 %v2501
    %3226 = vmatprep.subr.mxu0 0.0
    %3227 = vmatpush1.msra.mxu0 %v2502
    %3228 = vmatprep.subr.mxu0 0.0
    %3229 = vmatpush1.msra.mxu0 %v2503
    %3230 = vmatprep.subr.mxu0 0.0
    %3231 = vmatpush1.msra.mxu0 %v2504
    %3232 = vmatprep.subr.mxu0 0.0
    %3233 = vmatpush1.msra.mxu0 %v2505
    %3234 = vmatprep.subr.mxu0 0.0
    %3235 = vmatpush1.msra.mxu0 %v2506
    %3236 = vmatprep.subr.mxu0 0.0
    %3237 = vmatpush1.msra.mxu0 %v2507
    %3238 = vmatprep.subr.mxu0 0.0
    %3239 = vmatpush1.msra.mxu0 %v2508
    %3240 = vmatprep.subr.mxu0 0.0
    %3241 = vmatpush1.msra.mxu0 %v2509
    %3242 = vmatprep.subr.mxu0 0.0
    %3243 = vmatpush1.msra.mxu0 %v2510
    %3244 = vmatprep.subr.mxu0 0.0
    %3245 = vmatpush1.msra.mxu0 %v2511
    %3246 = vmatprep.subr.mxu0 0.0
    %3247 = vmatpush1.msra.mxu0 %v2512
    %3248 = vmatprep.subr.mxu0 0.0
    %3249 = vmatpush1.msra.mxu0 %v2513
    %3250 = vmatprep.subr.mxu0 0.0
    %3251 = vmatpush1.msra.mxu0 %v2514
    %3252 = vmatprep.subr.mxu0 0.0
    %3253 = vmatpush1.msra.mxu0 %v2515
    %3254 = vmatprep.subr.mxu0 0.0
    %3255 = vmatpush1.msra.mxu0 0.0
    %3256 = vmatprep.subr.mxu0 0.0
    %3257 = vmatpush1.msra.mxu0 0.0
    %3258 = vmatprep.subr.mxu0 0.0
    %3259 = vmatpush1.msra.mxu0 0.0
    %3260 = vmatprep.subr.mxu0 0.0
    %3261 = vmatpush1.msra.mxu0 0.0
    %3262 = vmatprep.subr.mxu0 0.0
    %3263 = vmatpush1.msra.mxu0 0.0
    %3264 = vmatprep.subr.mxu0 0.0
    %3265 = vmatpush1.msra.mxu0 0.0
    %3266 = vmatprep.subr.mxu0 0.0
    %3267 = vmatpush1.msra.mxu0 0.0
    %3268 = vmatprep.subr.mxu0 0.0
    %3269 = vmatpush1.msra.mxu0 0.0
    %3270 = vmatprep.subr.mxu0 0.0
    %3271 = vmatpush1.msra.mxu0 0.0
    %3272 = vmatprep.subr.mxu0 0.0
    %3273 = vmatpush1.msra.mxu0 0.0
    %3274 = vmatprep.subr.mxu0 0.0
    %3275 = vmatpush1.msra.mxu0 0.0
    %3276 = vmatprep.subr.mxu0 0.0
    %3277 = vmatpush1.msra.mxu0 0.0
    %3278 = vmatprep.subr.mxu0 0.0
    %3279 = vmatpush1.msra.mxu0 0.0
    %3280 = vmatprep.subr.mxu0 0.0
    %3281 = vmatpush1.msra.mxu0 0.0
    %3282 = vmatprep.subr.mxu0 0.0
    %3283 = vmatpush1.msra.mxu0 0.0
    %3284 = vmatprep.subr.mxu0 0.0
    %3285 = vmatpush1.msra.mxu0 0.0
    %3286 = vmatprep.mubr.f32.mxu0 0.0
    %3287 = vmatmul.mubr.f32.gmra.mrb[0].mxu0 %v2492
    %v3288 = vpop.f32.mrb[0].mxu0
    %v3289 = vadd.f32 %v2851, %v3288
    %v3290 = vpop.f32.mrb[0].mxu0
    %3291 = vmatprep.mubr.f32.mxu0 0.0
    %3292 = vmatmul.mubr.f32.gmra.mrb[0].mxu0 %v2493
    %v3293 = vpop.f32.mrb[0].mxu0
    %v3294 = vadd.f32 %v2851, %v3293
    %v3295 = vpop.f32.mrb[0].mxu0
    %3296 = vmatprep.mubr.f32.mxu0 0.0
    %3297 = vmatmul.mubr.f32.gmra.mrb[0].mxu0 %v2494
    %v3298 = vpop.f32.mrb[0].mxu0
    %v3299 = vadd.f32 %v2851, %v3298
    %v3300 = vpop.f32.mrb[0].mxu0
    %3301 = vmatprep.mubr.f32.mxu0 0.0
    %3302 = vmatmul.mubr.f32.gmra.mrb[0].mxu0 %v2495
    %v3303 = vpop.f32.mrb[0].mxu0
    %v3304 = vadd.f32 %v2851, %v3303
    %v3305 = vpop.f32.mrb[0].mxu0
    %3306 = vmatprep.mubr.f32.mxu0 0.0
    %3307 = vmatmul.mubr.f32.gmra.mrb[0].mxu0 %v2496
    %v3308 = vpop.f32.mrb[0].mxu0
    %v3309 = vadd.f32 %v2851, %v3308
    %v3310 = vpop.f32.mrb[0].mxu0
    %3311 = vmatprep.mubr.f32.mxu0 0.0
    %3312 = vmatmul.mubr.f32.gmra.mrb[0].mxu0 %v2497
    %v3313 = vpop.f32.mrb[0].mxu0
    %v3314 = vadd.f32 %v2851, %v3313
    %v3315 = vpop.f32.mrb[0].mxu0
    %3316 = vmatprep.mubr.f32.mxu0 0.0
    %3317 = vmatmul.mubr.f32.gmra.mrb[0].mxu0 %v2498
    %v3318 = vpop.f32.mrb[0].mxu0
    %v3319 = vadd.f32 %v2851, %v3318
    %v3320 = vpop.f32.mrb[0].mxu0
    %3321 = vdwg.mxu0
    %v3322 = vmul.f32 %v3289, %v2641
    %v3323 = vmul.f32 %v3294, %v2646
    %v3324 = vmul.f32 %v3299, %v2651
    %v3325 = vmul.f32 %v3304, %v2656
    %v3326 = vmul.f32 %v3309, %v2661
    %v3327 = vmul.f32 %v3314, %v2666
    %v3328 = vmul.f32 %v3319, %v2671
    %3329 = vmatprep.subr.mxu0 0.0
    %3330 = vmatpush1.msra.mxu0 %v63
    %3331 = vmatprep.subr.mxu0 0.0
    %3332 = vmatpush1.msra.mxu0 %v64
    %3333 = vmatprep.subr.mxu0 0.0
    %3334 = vmatpush1.msra.mxu0 %v65
    %3335 = vmatprep.subr.mxu0 0.0
    %3336 = vmatpush1.msra.mxu0 %v66
    %3337 = vmatprep.subr.mxu0 0.0
    %3338 = vmatpush1.msra.mxu0 %v67
    %3339 = vmatprep.subr.mxu0 0.0
    %3340 = vmatpush1.msra.mxu0 %v68
    %3341 = vmatprep.subr.mxu0 0.0
    %3342 = vmatpush1.msra.mxu0 %v69
    %3343 = vmatprep.subr.mxu0 0.0
    %3344 = vmatpush1.msra.mxu0 %v70
    %3345 = vmatprep.subr.mxu0 0.0
    %3346 = vmatpush1.msra.mxu0 %v71
    %3347 = vmatprep.subr.mxu0 0.0
    %3348 = vmatpush1.msra.mxu0 %v72
    %3349 = vmatprep.subr.mxu0 0.0
    %3350 = vmatpush1.msra.mxu0 %v73
    %3351 = vmatprep.subr.mxu0 0.0
    %3352 = vmatpush1.msra.mxu0 %v74
    %3353 = vmatprep.subr.mxu0 0.0
    %3354 = vmatpush1.msra.mxu0 %v75
    %3355 = vmatprep.subr.mxu0 0.0
    %3356 = vmatpush1.msra.mxu0 %v76
    %3357 = vmatprep.subr.mxu0 0.0
    %3358 = vmatpush1.msra.mxu0 %v77
    %3359 = vmatprep.subr.mxu0 0.0
    %3360 = vmatpush1.msra.mxu0 %v78
    %3361 = vmatprep.subr.mxu0 0.0
    %3362 = vmatpush1.msra.mxu0 0.0
    %3363 = vmatprep.subr.mxu0 0.0
    %3364 = vmatpush1.msra.mxu0 0.0
    %3365 = vmatprep.subr.mxu0 0.0
    %3366 = vmatpush1.msra.mxu0 0.0
    %3367 = vmatprep.subr.mxu0 0.0
    %3368 = vmatpush1.msra.mxu0 0.0
    %3369 = vmatprep.subr.mxu0 0.0
    %3370 = vmatpush1.msra.mxu0 0.0
    %3371 = vmatprep.subr.mxu0 0.0
    %3372 = vmatpush1.msra.mxu0 0.0
    %3373 = vmatprep.subr.mxu0 0.0
    %3374 = vmatpush1.msra.mxu0 0.0
    %3375 = vmatprep.subr.mxu0 0.0
    %3376 = vmatpush1.msra.mxu0 0.0
    %3377 = vmatprep.subr.mxu0 0.0
    %3378 = vmatpush1.msra.mxu0 0.0
    %3379 = vmatprep.subr.mxu0 0.0
    %3380 = vmatpush1.msra.mxu0 0.0
    %3381 = vmatprep.subr.mxu0 0.0
    %3382 = vmatpush1.msra.mxu0 0.0
    %3383 = vmatprep.subr.mxu0 0.0
    %3384 = vmatpush1.msra.mxu0 0.0
    %3385 = vmatprep.subr.mxu0 0.0
    %3386 = vmatpush1.msra.mxu0 0.0
    %3387 = vmatprep.subr.mxu0 0.0
    %3388 = vmatpush1.msra.mxu0 0.0
    %3389 = vmatprep.subr.mxu0 0.0
    %3390 = vmatpush1.msra.mxu0 0.0
    %3391 = vmatprep.subr.mxu0 0.0
    %3392 = vmatpush1.msra.mxu0 0.0
    %3393 = vmatprep.mubr.f32.mxu0 0.0
    %3394 = vmatmul.mubr.f32.gmra.mrb[0].mxu0 %v3322
    %v3395 = vpop.f32.mrb[0].mxu0
    %v3396 = vadd.f32 0.0, %v3395
    %v3397 = vpop.f32.mrb[0].mxu0
    %3398 = vmatprep.mubr.f32.mxu0 0.0
    %3399 = vmatmul.mubr.f32.gmra.mrb[0].mxu0 %v3323
    %v3400 = vpop.f32.mrb[0].mxu0
    %v3401 = vadd.f32 0.0, %v3400
    %v3402 = vpop.f32.mrb[0].mxu0
    %3403 = vmatprep.mubr.f32.mxu0 0.0
    %3404 = vmatmul.mubr.f32.gmra.mrb[0].mxu0 %v3324
    %v3405 = vpop.f32.mrb[0].mxu0
    %v3406 = vadd.f32 0.0, %v3405
    %v3407 = vpop.f32.mrb[0].mxu0
    %3408 = vmatprep.mubr.f32.mxu0 0.0
    %3409 = vmatmul.mubr.f32.gmra.mrb[0].mxu0 %v3325
    %v3410 = vpop.f32.mrb[0].mxu0
    %v3411 = vadd.f32 0.0, %v3410
    %v3412 = vpop.f32.mrb[0].mxu0
    %3413 = vmatprep.mubr.f32.mxu0 0.0
    %3414 = vmatmul.mubr.f32.gmra.mrb[0].mxu0 %v3326
    %v3415 = vpop.f32.mrb[0].mxu0
    %v3416 = vadd.f32 0.0, %v3415
    %v3417 = vpop.f32.mrb[0].mxu0
    %3418 = vmatprep.mubr.f32.mxu0 0.0
    %3419 = vmatmul.mubr.f32.gmra.mrb[0].mxu0 %v3327
    %v3420 = vpop.f32.mrb[0].mxu0
    %v3421 = vadd.f32 0.0, %v3420
    %v3422 = vpop.f32.mrb[0].mxu0
    %3423 = vmatprep.mubr.f32.mxu0 0.0
    %3424 = vmatmul.mubr.f32.gmra.mrb[0].mxu0 %v3328
    %v3425 = vpop.f32.mrb[0].mxu0
    %v3426 = vadd.f32 0.0, %v3425
    %v3427 = vpop.f32.mrb[0].mxu0
    %3428 = vdwg.mxu0
    %v3429 = vmul.f32 %v3289, %v2676
    %v3430 = vmul.f32 %v3294, %v2681
    %v3431 = vmul.f32 %v3299, %v2686
    %v3432 = vmul.f32 %v3304, %v2691
    %v3433 = vmul.f32 %v3309, %v2696
    %v3434 = vmul.f32 %v3314, %v2701
    %v3435 = vmul.f32 %v3319, %v2706
    %3436 = vmatprep.subr.mxu0 0.0
    %3437 = vmatpush1.msra.mxu0 %v63
    %3438 = vmatprep.subr.mxu0 0.0
    %3439 = vmatpush1.msra.mxu0 %v64
    %3440 = vmatprep.subr.mxu0 0.0
    %3441 = vmatpush1.msra.mxu0 %v65
    %3442 = vmatprep.subr.mxu0 0.0
    %3443 = vmatpush1.msra.mxu0 %v66
    %3444 = vmatprep.subr.mxu0 0.0
    %3445 = vmatpush1.msra.mxu0 %v67
    %3446 = vmatprep.subr.mxu0 0.0
    %3447 = vmatpush1.msra.mxu0 %v68
    %3448 = vmatprep.subr.mxu0 0.0
    %3449 = vmatpush1.msra.mxu0 %v69
    %3450 = vmatprep.subr.mxu0 0.0
    %3451 = vmatpush1.msra.mxu0 %v70
    %3452 = vmatprep.subr.mxu0 0.0
    %3453 = vmatpush1.msra.mxu0 %v71
    %3454 = vmatprep.subr.mxu0 0.0
    %3455 = vmatpush1.msra.mxu0 %v72
    %3456 = vmatprep.subr.mxu0 0.0
    %3457 = vmatpush1.msra.mxu0 %v73
    %3458 = vmatprep.subr.mxu0 0.0
    %3459 = vmatpush1.msra.mxu0 %v74
    %3460 = vmatprep.subr.mxu0 0.0
    %3461 = vmatpush1.msra.mxu0 %v75
    %3462 = vmatprep.subr.mxu0 0.0
    %3463 = vmatpush1.msra.mxu0 %v76
    %3464 = vmatprep.subr.mxu0 0.0
    %3465 = vmatpush1.msra.mxu0 %v77
    %3466 = vmatprep.subr.mxu0 0.0
    %3467 = vmatpush1.msra.mxu0 %v78
    %3468 = vmatprep.subr.mxu0 0.0
    %3469 = vmatpush1.msra.mxu0 0.0
    %3470 = vmatprep.subr.mxu0 0.0
    %3471 = vmatpush1.msra.mxu0 0.0
    %3472 = vmatprep.subr.mxu0 0.0
    %3473 = vmatpush1.msra.mxu0 0.0
    %3474 = vmatprep.subr.mxu0 0.0
    %3475 = vmatpush1.msra.mxu0 0.0
    %3476 = vmatprep.subr.mxu0 0.0
    %3477 = vmatpush1.msra.mxu0 0.0
    %3478 = vmatprep.subr.mxu0 0.0
    %3479 = vmatpush1.msra.mxu0 0.0
    %3480 = vmatprep.subr.mxu0 0.0
    %3481 = vmatpush1.msra.mxu0 0.0
    %3482 = vmatprep.subr.mxu0 0.0
    %3483 = vmatpush1.msra.mxu0 0.0
    %3484 = vmatprep.subr.mxu0 0.0
    %3485 = vmatpush1.msra.mxu0 0.0
    %3486 = vmatprep.subr.mxu0 0.0
    %3487 = vmatpush1.msra.mxu0 0.0
    %3488 = vmatprep.subr.mxu0 0.0
    %3489 = vmatpush1.msra.mxu0 0.0
    %3490 = vmatprep.subr.mxu0 0.0
    %3491 = vmatpush1.msra.mxu0 0.0
    %3492 = vmatprep.subr.mxu0 0.0
    %3493 = vmatpush1.msra.mxu0 0.0
    %3494 = vmatprep.subr.mxu0 0.0
    %3495 = vmatpush1.msra.mxu0 0.0
    %3496 = vmatprep.subr.mxu0 0.0
    %3497 = vmatpush1.msra.mxu0 0.0
    %3498 = vmatprep.subr.mxu0 0.0
    %3499 = vmatpush1.msra.mxu0 0.0
    %3500 = vmatprep.mubr.f32.mxu0 0.0
    %3501 = vmatmul.mubr.f32.gmra.mrb[0].mxu0 %v3429
    %v3502 = vpop.f32.mrb[0].mxu0
    %v3503 = vadd.f32 0.0, %v3502
    %v3504 = vpop.f32.mrb[0].mxu0
    %3505 = vmatprep.mubr.f32.mxu0 0.0
    %3506 = vmatmul.mubr.f32.gmra.mrb[0].mxu0 %v3430
    %v3507 = vpop.f32.mrb[0].mxu0
    %v3508 = vadd.f32 0.0, %v3507
    %v3509 = vpop.f32.mrb[0].mxu0
    %3510 = vmatprep.mubr.f32.mxu0 0.0
    %3511 = vmatmul.mubr.f32.gmra.mrb[0].mxu0 %v3431
    %v3512 = vpop.f32.mrb[0].mxu0
    %v3513 = vadd.f32 0.0, %v3512
    %v3514 = vpop.f32.mrb[0].mxu0
    %3515 = vmatprep.mubr.f32.mxu0 0.0
    %3516 = vmatmul.mubr.f32.gmra.mrb[0].mxu0 %v3432
    %v3517 = vpop.f32.mrb[0].mxu0
    %v3518 = vadd.f32 0.0, %v3517
    %v3519 = vpop.f32.mrb[0].mxu0
    %3520 = vmatprep.mubr.f32.mxu0 0.0
    %3521 = vmatmul.mubr.f32.gmra.mrb[0].mxu0 %v3433
    %v3522 = vpop.f32.mrb[0].mxu0
    %v3523 = vadd.f32 0.0, %v3522
    %v3524 = vpop.f32.mrb[0].mxu0
    %3525 = vmatprep.mubr.f32.mxu0 0.0
    %3526 = vmatmul.mubr.f32.gmra.mrb[0].mxu0 %v3434
    %v3527 = vpop.f32.mrb[0].mxu0
    %v3528 = vadd.f32 0.0, %v3527
    %v3529 = vpop.f32.mrb[0].mxu0
    %3530 = vmatprep.mubr.f32.mxu0 0.0
    %3531 = vmatmul.mubr.f32.gmra.mrb[0].mxu0 %v3435
    %v3532 = vpop.f32.mrb[0].mxu0
    %v3533 = vadd.f32 0.0, %v3532
    %v3534 = vpop.f32.mrb[0].mxu0
    %3535 = vdwg.mxu0
    %v3536 = vsub.f32 %v3503, %v3396
    %v3537 = vsub.f32 %v3508, %v3401
    %v3538 = vsub.f32 %v3513, %v3406
    %v3539 = vsub.f32 %v3518, %v3411
    %v3540 = vsub.f32 %v3523, %v3416
    %v3541 = vsub.f32 %v3528, %v3421
    %v3542 = vsub.f32 %v3533, %v3426
    %v3543 = vmul.f32 %v3536, 1.442695
    %v3544 = vpow.pop %v3543
    %v3545 = vmul.f32 %v3537, 1.442695
    %v3546 = vpow.pop %v3545
    %v3547 = vmul.f32 %v3538, 1.442695
    %v3548 = vpow.pop %v3547
    %v3549 = vmul.f32 %v3539, 1.442695
    %v3550 = vpow.pop %v3549
    %v3551 = vmul.f32 %v3540, 1.442695
    %v3552 = vpow.pop %v3551
    %v3553 = vmul.f32 %v3541, 1.442695
    %v3554 = vpow.pop %v3553
    %v3555 = vmul.f32 %v3542, 1.442695
    %v3556 = vpow.pop %v3555
    %v3557 = vadd.f32 %v3544, 1.0
    %v3558 = vadd.f32 %v3546, 1.0
    %v3559 = vadd.f32 %v3548, 1.0
    %v3560 = vadd.f32 %v3550, 1.0
    %v3561 = vadd.f32 %v3552, 1.0
    %v3562 = vadd.f32 %v3554, 1.0
    %v3563 = vadd.f32 %v3556, 1.0
    %v3564 = vrcp.pop %v3557
    %v3565 = vrcp.pop %v3558
    %v3566 = vrcp.pop %v3559
    %v3567 = vrcp.pop %v3560
    %v3568 = vrcp.pop %v3561
    %v3569 = vrcp.pop %v3562
    %v3570 = vrcp.pop %v3563
    %v3571 = vmul.f32 %v3564, %v3201
    %v3572 = vmul.f32 %v3565, %v3202
    %v3573 = vmul.f32 %v3566, %v3203
    %v3574 = vmul.f32 %v3567, %v3204
    %v3575 = vmul.f32 %v3568, %v3205
    %v3576 = vmul.f32 %v3569, %v3206
    %v3577 = vmul.f32 %v3570, %v3207
    %v3578 = vadd.f32 %v2815, %v3571
    %v3579 = vadd.f32 %v2820, %v3572
    %v3580 = vadd.f32 %v2825, %v3573
    %v3581 = vadd.f32 %v2830, %v3574
    %v3582 = vadd.f32 %v2835, %v3575
    %v3583 = vadd.f32 %v2840, %v3576
    %v3584 = vadd.f32 %v2845, %v3577
    %v3585 = vlaneseq
    %v3586 = vshrl.u32 %v3585, 7
    %v3587 = vsub.s32 3, %v3586
    %v3588 = vrot.slane %v2568, %v3587
    %3589 = vmatprep.subr.mxu0 0.0
    %3590 = vmatpush1.msra.mxu0 %v2551
    %3591 = vmatprep.subr.mxu0 0.0
    %3592 = vmatpush1.msra.mxu0 %v2552
    %3593 = vmatprep.subr.mxu0 0.0
    %3594 = vmatpush1.msra.mxu0 %v2553
    %3595 = vmatprep.subr.mxu0 0.0
    %3596 = vmatpush1.msra.mxu0 %v2554
    %3597 = vmatprep.subr.mxu0 0.0
    %3598 = vmatpush1.msra.mxu0 %v2555
    %3599 = vmatprep.subr.mxu0 0.0
    %3600 = vmatpush1.msra.mxu0 %v2556
    %3601 = vmatprep.subr.mxu0 0.0
    %3602 = vmatpush1.msra.mxu0 %v2557
    %3603 = vmatprep.subr.mxu0 0.0
    %3604 = vmatpush1.msra.mxu0 %v2558
    %3605 = vmatprep.subr.mxu0 0.0
    %3606 = vmatpush1.msra.mxu0 %v2559
    %3607 = vmatprep.subr.mxu0 0.0
    %3608 = vmatpush1.msra.mxu0 %v2560
    %3609 = vmatprep.subr.mxu0 0.0
    %3610 = vmatpush1.msra.mxu0 %v2561
    %3611 = vmatprep.subr.mxu0 0.0
    %3612 = vmatpush1.msra.mxu0 %v2562
    %3613 = vmatprep.subr.mxu0 0.0
    %3614 = vmatpush1.msra.mxu0 %v2563
    %3615 = vmatprep.subr.mxu0 0.0
    %3616 = vmatpush1.msra.mxu0 %v2564
    %3617 = vmatprep.subr.mxu0 0.0
    %3618 = vmatpush1.msra.mxu0 %v2565
    %3619 = vmatprep.subr.mxu0 0.0
    %3620 = vmatpush1.msra.mxu0 %v2566
    %3621 = vmatprep.subr.mxu0 0.0
    %3622 = vmatpush1.msra.mxu0 0.0
    %3623 = vmatprep.subr.mxu0 0.0
    %3624 = vmatpush1.msra.mxu0 0.0
    %3625 = vmatprep.subr.mxu0 0.0
    %3626 = vmatpush1.msra.mxu0 0.0
    %3627 = vmatprep.subr.mxu0 0.0
    %3628 = vmatpush1.msra.mxu0 0.0
    %3629 = vmatprep.subr.mxu0 0.0
    %3630 = vmatpush1.msra.mxu0 0.0
    %3631 = vmatprep.subr.mxu0 0.0
    %3632 = vmatpush1.msra.mxu0 0.0
    %3633 = vmatprep.subr.mxu0 0.0
    %3634 = vmatpush1.msra.mxu0 0.0
    %3635 = vmatprep.subr.mxu0 0.0
    %3636 = vmatpush1.msra.mxu0 0.0
    %3637 = vmatprep.subr.mxu0 0.0
    %3638 = vmatpush1.msra.mxu0 0.0
    %3639 = vmatprep.subr.mxu0 0.0
    %3640 = vmatpush1.msra.mxu0 0.0
    %3641 = vmatprep.subr.mxu0 0.0
    %3642 = vmatpush1.msra.mxu0 0.0
    %3643 = vmatprep.subr.mxu0 0.0
    %3644 = vmatpush1.msra.mxu0 0.0
    %3645 = vmatprep.subr.mxu0 0.0
    %3646 = vmatpush1.msra.mxu0 0.0
    %3647 = vmatprep.subr.mxu0 0.0
    %3648 = vmatpush1.msra.mxu0 0.0
    %3649 = vmatprep.subr.mxu0 0.0
    %3650 = vmatpush1.msra.mxu0 0.0
    %3651 = vmatprep.subr.mxu0 0.0
    %3652 = vmatpush1.msra.mxu0 0.0
    %3653 = vmatprep.mubr.f32.mxu0 0.0
    %3654 = vmatmul.mubr.f32.gmra.mrb[0].mxu0 %v3215
    %v3655 = vpop.f32.mrb[0].mxu0
    %v3656 = vadd.f32 %v3588, %v3655
    %v3657 = vpop.f32.mrb[0].mxu0
    %3658 = vmatprep.mubr.f32.mxu0 0.0
    %3659 = vmatmul.mubr.f32.gmra.mrb[0].mxu0 %v3216
    %v3660 = vpop.f32.mrb[0].mxu0
    %v3661 = vadd.f32 %v3588, %v3660
    %v3662 = vpop.f32.mrb[0].mxu0
    %3663 = vmatprep.mubr.f32.mxu0 0.0
    %3664 = vmatmul.mubr.f32.gmra.mrb[0].mxu0 %v3217
    %v3665 = vpop.f32.mrb[0].mxu0
    %v3666 = vadd.f32 %v3588, %v3665
    %v3667 = vpop.f32.mrb[0].mxu0
    %3668 = vmatprep.mubr.f32.mxu0 0.0
    %3669 = vmatmul.mubr.f32.gmra.mrb[0].mxu0 %v3218
    %v3670 = vpop.f32.mrb[0].mxu0
    %v3671 = vadd.f32 %v3588, %v3670
    %v3672 = vpop.f32.mrb[0].mxu0
    %3673 = vmatprep.mubr.f32.mxu0 0.0
    %3674 = vmatmul.mubr.f32.gmra.mrb[0].mxu0 %v3219
    %v3675 = vpop.f32.mrb[0].mxu0
    %v3676 = vadd.f32 %v3588, %v3675
    %v3677 = vpop.f32.mrb[0].mxu0
    %3678 = vmatprep.mubr.f32.mxu0 0.0
    %3679 = vmatmul.mubr.f32.gmra.mrb[0].mxu0 %v3220
    %v3680 = vpop.f32.mrb[0].mxu0
    %v3681 = vadd.f32 %v3588, %v3680
    %v3682 = vpop.f32.mrb[0].mxu0
    %3683 = vmatprep.mubr.f32.mxu0 0.0
    %3684 = vmatmul.mubr.f32.gmra.mrb[0].mxu0 %v3221
    %v3685 = vpop.f32.mrb[0].mxu0
    %v3686 = vadd.f32 %v3588, %v3685
    %v3687 = vpop.f32.mrb[0].mxu0
    %3688 = vmatprep.mubr.f32.mxu0 0.0
    %3689 = vmatmul.mubr.f32.gmra.mrb[0].mxu0 %v3578
    %v3690 = vpop.f32.mrb[0].mxu0
    %v3691 = vadd.f32 %v3588, %v3690
    %v3692 = vpop.f32.mrb[0].mxu0
    %3693 = vmatprep.mubr.f32.mxu0 0.0
    %3694 = vmatmul.mubr.f32.gmra.mrb[0].mxu0 %v3579
    %v3695 = vpop.f32.mrb[0].mxu0
    %v3696 = vadd.f32 %v3588, %v3695
    %v3697 = vpop.f32.mrb[0].mxu0
    %3698 = vmatprep.mubr.f32.mxu0 0.0
    %3699 = vmatmul.mubr.f32.gmra.mrb[0].mxu0 %v3580
    %v3700 = vpop.f32.mrb[0].mxu0
    %v3701 = vadd.f32 %v3588, %v3700
    %v3702 = vpop.f32.mrb[0].mxu0
    %3703 = vmatprep.mubr.f32.mxu0 0.0
    %3704 = vmatmul.mubr.f32.gmra.mrb[0].mxu0 %v3581
    %v3705 = vpop.f32.mrb[0].mxu0
    %v3706 = vadd.f32 %v3588, %v3705
    %v3707 = vpop.f32.mrb[0].mxu0
    %3708 = vmatprep.mubr.f32.mxu0 0.0
    %3709 = vmatmul.mubr.f32.gmra.mrb[0].mxu0 %v3582
    %v3710 = vpop.f32.mrb[0].mxu0
    %v3711 = vadd.f32 %v3588, %v3710
    %v3712 = vpop.f32.mrb[0].mxu0
    %3713 = vmatprep.mubr.f32.mxu0 0.0
    %3714 = vmatmul.mubr.f32.gmra.mrb[0].mxu0 %v3583
    %v3715 = vpop.f32.mrb[0].mxu0
    %v3716 = vadd.f32 %v3588, %v3715
    %v3717 = vpop.f32.mrb[0].mxu0
    %3718 = vmatprep.mubr.f32.mxu0 0.0
    %3719 = vmatmul.mubr.f32.gmra.mrb[0].mxu0 %v3584
    %v3720 = vpop.f32.mrb[0].mxu0
    %v3721 = vadd.f32 %v3588, %v3720
    %v3722 = vpop.f32.mrb[0].mxu0
    %3723 = vdwg.mxu0
    %v3724 = vadd.f32 %v2485, %v3656
    %v3725 = vadd.f32 %v2486, %v3661
    %v3726 = vadd.f32 %v2487, %v3666
    %v3727 = vadd.f32 %v2488, %v3671
    %v3728 = vadd.f32 %v2489, %v3676
    %v3729 = vadd.f32 %v2490, %v3681
    %v3730 = vadd.f32 %v2491, %v3686
    %v3731 = vadd.f32 %v2492, %v3691
    %v3732 = vadd.f32 %v2493, %v3696
    %v3733 = vadd.f32 %v2494, %v3701
    %v3734 = vadd.f32 %v2495, %v3706
    %v3735 = vadd.f32 %v2496, %v3711
    %v3736 = vadd.f32 %v2497, %v3716
    %v3737 = vadd.f32 %v2498, %v3721
    %3738 = vmatprep.subr.mxu0 0.0
    %3739 = vmatpush1.msra.mxu0 %v80
    %3740 = vmatprep.subr.mxu0 0.0
    %3741 = vmatpush1.msra.mxu0 %v81
    %3742 = vmatprep.subr.mxu0 0.0
    %3743 = vmatpush1.msra.mxu0 %v82
    %3744 = vmatprep.subr.mxu0 0.0
    %3745 = vmatpush1.msra.mxu0 %v83
    %3746 = vmatprep.subr.mxu0 0.0
    %3747 = vmatpush1.msra.mxu0 %v84
    %3748 = vmatprep.subr.mxu0 0.0
    %3749 = vmatpush1.msra.mxu0 %v85
    %3750 = vmatprep.subr.mxu0 0.0
    %3751 = vmatpush1.msra.mxu0 %v86
    %3752 = vmatprep.subr.mxu0 0.0
    %3753 = vmatpush1.msra.mxu0 %v87
    %3754 = vmatprep.subr.mxu0 0.0
    %3755 = vmatpush1.msra.mxu0 %v88
    %3756 = vmatprep.subr.mxu0 0.0
    %3757 = vmatpush1.msra.mxu0 %v89
    %3758 = vmatprep.subr.mxu0 0.0
    %3759 = vmatpush1.msra.mxu0 %v90
    %3760 = vmatprep.subr.mxu0 0.0
    %3761 = vmatpush1.msra.mxu0 %v91
    %3762 = vmatprep.subr.mxu0 0.0
    %3763 = vmatpush1.msra.mxu0 %v92
    %3764 = vmatprep.subr.mxu0 0.0
    %3765 = vmatpush1.msra.mxu0 %v93
    %3766 = vmatprep.subr.mxu0 0.0
    %3767 = vmatpush1.msra.mxu0 %v94
    %3768 = vmatprep.subr.mxu0 0.0
    %3769 = vmatpush1.msra.mxu0 %v95
    %3770 = vmatprep.subr.mxu0 0.0
    %3771 = vmatpush1.msra.mxu0 0.0
    %3772 = vmatprep.subr.mxu0 0.0
    %3773 = vmatpush1.msra.mxu0 0.0
    %3774 = vmatprep.subr.mxu0 0.0
    %3775 = vmatpush1.msra.mxu0 0.0
    %3776 = vmatprep.subr.mxu0 0.0
    %3777 = vmatpush1.msra.mxu0 0.0
    %3778 = vmatprep.subr.mxu0 0.0
    %3779 = vmatpush1.msra.mxu0 0.0
    %3780 = vmatprep.subr.mxu0 0.0
    %3781 = vmatpush1.msra.mxu0 0.0
    %3782 = vmatprep.subr.mxu0 0.0
    %3783 = vmatpush1.msra.mxu0 0.0
    %3784 = vmatprep.subr.mxu0 0.0
    %3785 = vmatpush1.msra.mxu0 0.0
    %3786 = vmatprep.subr.mxu0 0.0
    %3787 = vmatpush1.msra.mxu0 0.0
    %3788 = vmatprep.subr.mxu0 0.0
    %3789 = vmatpush1.msra.mxu0 0.0
    %3790 = vmatprep.subr.mxu0 0.0
    %3791 = vmatpush1.msra.mxu0 0.0
    %3792 = vmatprep.subr.mxu0 0.0
    %3793 = vmatpush1.msra.mxu0 0.0
    %3794 = vmatprep.subr.mxu0 0.0
    %3795 = vmatpush1.msra.mxu0 0.0
    %3796 = vmatprep.subr.mxu0 0.0
    %3797 = vmatpush1.msra.mxu0 0.0
    %3798 = vmatprep.subr.mxu0 0.0
    %3799 = vmatpush1.msra.mxu0 0.0
    %3800 = vmatprep.subr.mxu0 0.0
    %3801 = vmatpush1.msra.mxu0 0.0
    %3802 = vmatprep.mubr.f32.mxu0 0.0
    %3803 = vmatmul.mubr.f32.gmra.mrb[0].mxu0 %v3724
    %v3804 = vpop.f32.mrb[0].mxu0
    %v3805 = vadd.f32 0.0, %v3804
    %v3806 = vpop.f32.mrb[0].mxu0
    %3807 = vmatprep.mubr.f32.mxu0 0.0
    %3808 = vmatmul.mubr.f32.gmra.mrb[0].mxu0 %v3725
    %v3809 = vpop.f32.mrb[0].mxu0
    %v3810 = vadd.f32 0.0, %v3809
    %v3811 = vpop.f32.mrb[0].mxu0
    %3812 = vmatprep.mubr.f32.mxu0 0.0
    %3813 = vmatmul.mubr.f32.gmra.mrb[0].mxu0 %v3726
    %v3814 = vpop.f32.mrb[0].mxu0
    %v3815 = vadd.f32 0.0, %v3814
    %v3816 = vpop.f32.mrb[0].mxu0
    %3817 = vmatprep.mubr.f32.mxu0 0.0
    %3818 = vmatmul.mubr.f32.gmra.mrb[0].mxu0 %v3727
    %v3819 = vpop.f32.mrb[0].mxu0
    %v3820 = vadd.f32 0.0, %v3819
    %v3821 = vpop.f32.mrb[0].mxu0
    %3822 = vmatprep.mubr.f32.mxu0 0.0
    %3823 = vmatmul.mubr.f32.gmra.mrb[0].mxu0 %v3728
    %v3824 = vpop.f32.mrb[0].mxu0
    %v3825 = vadd.f32 0.0, %v3824
    %v3826 = vpop.f32.mrb[0].mxu0
    %3827 = vmatprep.mubr.f32.mxu0 0.0
    %3828 = vmatmul.mubr.f32.gmra.mrb[0].mxu0 %v3729
    %v3829 = vpop.f32.mrb[0].mxu0
    %v3830 = vadd.f32 0.0, %v3829
    %v3831 = vpop.f32.mrb[0].mxu0
    %3832 = vmatprep.mubr.f32.mxu0 0.0
    %3833 = vmatmul.mubr.f32.gmra.mrb[0].mxu0 %v3730
    %v3834 = vpop.f32.mrb[0].mxu0
    %v3835 = vadd.f32 0.0, %v3834
    %v3836 = vpop.f32.mrb[0].mxu0
    %3837 = vmatprep.mubr.f32.mxu0 0.0
    %3838 = vmatmul.mubr.f32.gmra.mrb[0].mxu0 %v3731
    %v3839 = vpop.f32.mrb[0].mxu0
    %v3840 = vadd.f32 0.0, %v3839
    %v3841 = vpop.f32.mrb[0].mxu0
    %3842 = vmatprep.mubr.f32.mxu0 0.0
    %3843 = vmatmul.mubr.f32.gmra.mrb[0].mxu0 %v3732
    %v3844 = vpop.f32.mrb[0].mxu0
    %v3845 = vadd.f32 0.0, %v3844
    %v3846 = vpop.f32.mrb[0].mxu0
    %3847 = vmatprep.mubr.f32.mxu0 0.0
    %3848 = vmatmul.mubr.f32.gmra.mrb[0].mxu0 %v3733
    %v3849 = vpop.f32.mrb[0].mxu0
    %v3850 = vadd.f32 0.0, %v3849
    %v3851 = vpop.f32.mrb[0].mxu0
    %3852 = vmatprep.mubr.f32.mxu0 0.0
    %3853 = vmatmul.mubr.f32.gmra.mrb[0].mxu0 %v3734
    %v3854 = vpop.f32.mrb[0].mxu0
    %v3855 = vadd.f32 0.0, %v3854
    %v3856 = vpop.f32.mrb[0].mxu0
    %3857 = vmatprep.mubr.f32.mxu0 0.0
    %3858 = vmatmul.mubr.f32.gmra.mrb[0].mxu0 %v3735
    %v3859 = vpop.f32.mrb[0].mxu0
    %v3860 = vadd.f32 0.0, %v3859
    %v3861 = vpop.f32.mrb[0].mxu0
    %3862 = vmatprep.mubr.f32.mxu0 0.0
    %3863 = vmatmul.mubr.f32.gmra.mrb[0].mxu0 %v3736
    %v3864 = vpop.f32.mrb[0].mxu0
    %v3865 = vadd.f32 0.0, %v3864
    %v3866 = vpop.f32.mrb[0].mxu0
    %3867 = vmatprep.mubr.f32.mxu0 0.0
    %3868 = vmatmul.mubr.f32.gmra.mrb[0].mxu0 %v3737
    %v3869 = vpop.f32.mrb[0].mxu0
    %v3870 = vadd.f32 0.0, %v3869
    %v3871 = vpop.f32.mrb[0].mxu0
    %3872 = vdwg.mxu0
    %v3873 = vsub.f32 %v3724, %v3805
    %v3874 = vsub.f32 %v3725, %v3810
    %v3875 = vsub.f32 %v3726, %v3815
    %v3876 = vsub.f32 %v3727, %v3820
    %v3877 = vsub.f32 %v3728, %v3825
    %v3878 = vsub.f32 %v3729, %v3830
    %v3879 = vsub.f32 %v3730, %v3835
    %v3880 = vsub.f32 %v3731, %v3840
    %v3881 = vsub.f32 %v3732, %v3845
    %v3882 = vsub.f32 %v3733, %v3850
    %v3883 = vsub.f32 %v3734, %v3855
    %v3884 = vsub.f32 %v3735, %v3860
    %v3885 = vsub.f32 %v3736, %v3865
    %v3886 = vsub.f32 %v3737, %v3870
    %v3887 = vmul.f32 %v3873, %v3873
    %v3888 = vmul.f32 %v3874, %v3874
    %v3889 = vmul.f32 %v3875, %v3875
    %v3890 = vmul.f32 %v3876, %v3876
    %v3891 = vmul.f32 %v3877, %v3877
    %v3892 = vmul.f32 %v3878, %v3878
    %v3893 = vmul.f32 %v3879, %v3879
    %v3894 = vmul.f32 %v3880, %v3880
    %v3895 = vmul.f32 %v3881, %v3881
    %v3896 = vmul.f32 %v3882, %v3882
    %v3897 = vmul.f32 %v3883, %v3883
    %v3898 = vmul.f32 %v3884, %v3884
    %v3899 = vmul.f32 %v3885, %v3885
    %v3900 = vmul.f32 %v3886, %v3886
    %3901 = vmatprep.subr.mxu0 0.0
    %3902 = vmatpush1.msra.mxu0 %v80
    %3903 = vmatprep.subr.mxu0 0.0
    %3904 = vmatpush1.msra.mxu0 %v81
    %3905 = vmatprep.subr.mxu0 0.0
    %3906 = vmatpush1.msra.mxu0 %v82
    %3907 = vmatprep.subr.mxu0 0.0
    %3908 = vmatpush1.msra.mxu0 %v83
    %3909 = vmatprep.subr.mxu0 0.0
    %3910 = vmatpush1.msra.mxu0 %v84
    %3911 = vmatprep.subr.mxu0 0.0
    %3912 = vmatpush1.msra.mxu0 %v85
    %3913 = vmatprep.subr.mxu0 0.0
    %3914 = vmatpush1.msra.mxu0 %v86
    %3915 = vmatprep.subr.mxu0 0.0
    %3916 = vmatpush1.msra.mxu0 %v87
    %3917 = vmatprep.subr.mxu0 0.0
    %3918 = vmatpush1.msra.mxu0 %v88
    %3919 = vmatprep.subr.mxu0 0.0
    %3920 = vmatpush1.msra.mxu0 %v89
    %3921 = vmatprep.subr.mxu0 0.0
    %3922 = vmatpush1.msra.mxu0 %v90
    %3923 = vmatprep.subr.mxu0 0.0
    %3924 = vmatpush1.msra.mxu0 %v91
    %3925 = vmatprep.subr.mxu0 0.0
    %3926 = vmatpush1.msra.mxu0 %v92
    %3927 = vmatprep.subr.mxu0 0.0
    %3928 = vmatpush1.msra.mxu0 %v93
    %3929 = vmatprep.subr.mxu0 0.0
    %3930 = vmatpush1.msra.mxu0 %v94
    %3931 = vmatprep.subr.mxu0 0.0
    %3932 = vmatpush1.msra.mxu0 %v95
    %3933 = vmatprep.subr.mxu0 0.0
    %3934 = vmatpush1.msra.mxu0 0.0
    %3935 = vmatprep.subr.mxu0 0.0
    %3936 = vmatpush1.msra.mxu0 0.0
    %3937 = vmatprep.subr.mxu0 0.0
    %3938 = vmatpush1.msra.mxu0 0.0
    %3939 = vmatprep.subr.mxu0 0.0
    %3940 = vmatpush1.msra.mxu0 0.0
    %3941 = vmatprep.subr.mxu0 0.0
    %3942 = vmatpush1.msra.mxu0 0.0
    %3943 = vmatprep.subr.mxu0 0.0
    %3944 = vmatpush1.msra.mxu0 0.0
    %3945 = vmatprep.subr.mxu0 0.0
    %3946 = vmatpush1.msra.mxu0 0.0
    %3947 = vmatprep.subr.mxu0 0.0
    %3948 = vmatpush1.msra.mxu0 0.0
    %3949 = vmatprep.subr.mxu0 0.0
    %3950 = vmatpush1.msra.mxu0 0.0
    %3951 = vmatprep.subr.mxu0 0.0
    %3952 = vmatpush1.msra.mxu0 0.0
    %3953 = vmatprep.subr.mxu0 0.0
    %3954 = vmatpush1.msra.mxu0 0.0
    %3955 = vmatprep.subr.mxu0 0.0
    %3956 = vmatpush1.msra.mxu0 0.0
    %3957 = vmatprep.subr.mxu0 0.0
    %3958 = vmatpush1.msra.mxu0 0.0
    %3959 = vmatprep.subr.mxu0 0.0
    %3960 = vmatpush1.msra.mxu0 0.0
    %3961 = vmatprep.subr.mxu0 0.0
    %3962 = vmatpush1.msra.mxu0 0.0
    %3963 = vmatprep.subr.mxu0 0.0
    %3964 = vmatpush1.msra.mxu0 0.0
    %3965 = vmatprep.mubr.f32.mxu0 0.0
    %3966 = vmatmul.mubr.f32.gmra.mrb[0].mxu0 %v3887
    %v3967 = vpop.f32.mrb[0].mxu0
    %v3968 = vadd.f32 1e-05, %v3967
    %v3969 = vpop.f32.mrb[0].mxu0
    %3970 = vmatprep.mubr.f32.mxu0 0.0
    %3971 = vmatmul.mubr.f32.gmra.mrb[0].mxu0 %v3888
    %v3972 = vpop.f32.mrb[0].mxu0
    %v3973 = vadd.f32 1e-05, %v3972
    %v3974 = vpop.f32.mrb[0].mxu0
    %3975 = vmatprep.mubr.f32.mxu0 0.0
    %3976 = vmatmul.mubr.f32.gmra.mrb[0].mxu0 %v3889
    %v3977 = vpop.f32.mrb[0].mxu0
    %v3978 = vadd.f32 1e-05, %v3977
    %v3979 = vpop.f32.mrb[0].mxu0
    %3980 = vmatprep.mubr.f32.mxu0 0.0
    %3981 = vmatmul.mubr.f32.gmra.mrb[0].mxu0 %v3890
    %v3982 = vpop.f32.mrb[0].mxu0
    %v3983 = vadd.f32 1e-05, %v3982
    %v3984 = vpop.f32.mrb[0].mxu0
    %3985 = vmatprep.mubr.f32.mxu0 0.0
    %3986 = vmatmul.mubr.f32.gmra.mrb[0].mxu0 %v3891
    %v3987 = vpop.f32.mrb[0].mxu0
    %v3988 = vadd.f32 1e-05, %v3987
    %v3989 = vpop.f32.mrb[0].mxu0
    %3990 = vmatprep.mubr.f32.mxu0 0.0
    %3991 = vmatmul.mubr.f32.gmra.mrb[0].mxu0 %v3892
    %v3992 = vpop.f32.mrb[0].mxu0
    %v3993 = vadd.f32 1e-05, %v3992
    %v3994 = vpop.f32.mrb[0].mxu0
    %3995 = vmatprep.mubr.f32.mxu0 0.0
    %3996 = vmatmul.mubr.f32.gmra.mrb[0].mxu0 %v3893
    %v3997 = vpop.f32.mrb[0].mxu0
    %v3998 = vadd.f32 1e-05, %v3997
    %v3999 = vpop.f32.mrb[0].mxu0
    %4000 = vmatprep.mubr.f32.mxu0 0.0
    %4001 = vmatmul.mubr.f32.gmra.mrb[0].mxu0 %v3894
    %v4002 = vpop.f32.mrb[0].mxu0
    %v4003 = vadd.f32 1e-05, %v4002
    %v4004 = vpop.f32.mrb[0].mxu0
    %4005 = vmatprep.mubr.f32.mxu0 0.0
    %4006 = vmatmul.mubr.f32.gmra.mrb[0].mxu0 %v3895
    %v4007 = vpop.f32.mrb[0].mxu0
    %v4008 = vadd.f32 1e-05, %v4007
    %v4009 = vpop.f32.mrb[0].mxu0
    %4010 = vmatprep.mubr.f32.mxu0 0.0
    %4011 = vmatmul.mubr.f32.gmra.mrb[0].mxu0 %v3896
    %v4012 = vpop.f32.mrb[0].mxu0
    %v4013 = vadd.f32 1e-05, %v4012
    %v4014 = vpop.f32.mrb[0].mxu0
    %4015 = vmatprep.mubr.f32.mxu0 0.0
    %4016 = vmatmul.mubr.f32.gmra.mrb[0].mxu0 %v3897
    %v4017 = vpop.f32.mrb[0].mxu0
    %v4018 = vadd.f32 1e-05, %v4017
    %v4019 = vpop.f32.mrb[0].mxu0
    %4020 = vmatprep.mubr.f32.mxu0 0.0
    %4021 = vmatmul.mubr.f32.gmra.mrb[0].mxu0 %v3898
    %v4022 = vpop.f32.mrb[0].mxu0
    %v4023 = vadd.f32 1e-05, %v4022
    %v4024 = vpop.f32.mrb[0].mxu0
    %4025 = vmatprep.mubr.f32.mxu0 0.0
    %4026 = vmatmul.mubr.f32.gmra.mrb[0].mxu0 %v3899
    %v4027 = vpop.f32.mrb[0].mxu0
    %v4028 = vadd.f32 1e-05, %v4027
    %v4029 = vpop.f32.mrb[0].mxu0
    %4030 = vmatprep.mubr.f32.mxu0 0.0
    %4031 = vmatmul.mubr.f32.gmra.mrb[0].mxu0 %v3900
    %v4032 = vpop.f32.mrb[0].mxu0
    %v4033 = vadd.f32 1e-05, %v4032
    %v4034 = vpop.f32.mrb[0].mxu0
    %4035 = vdwg.mxu0
    %v4036 = vrsqrt.pop %v3968
    %v4037 = vrsqrt.pop %v3973
    %v4038 = vrsqrt.pop %v3978
    %v4039 = vrsqrt.pop %v3983
    %v4040 = vrsqrt.pop %v3988
    %v4041 = vrsqrt.pop %v3993
    %v4042 = vrsqrt.pop %v3998
    %v4043 = vrsqrt.pop %v4003
    %v4044 = vrsqrt.pop %v4008
    %v4045 = vrsqrt.pop %v4013
    %v4046 = vrsqrt.pop %v4018
    %v4047 = vrsqrt.pop %v4023
    %v4048 = vrsqrt.pop %v4028
    %v4049 = vrsqrt.pop %v4033
    %v4050 = vmul.f32 %v3873, %v4036
    %v4051 = vmul.f32 %v3874, %v4037
    %v4052 = vmul.f32 %v3875, %v4038
    %v4053 = vmul.f32 %v3876, %v4039
    %v4054 = vmul.f32 %v3877, %v4040
    %v4055 = vmul.f32 %v3878, %v4041
    %v4056 = vmul.f32 %v3879, %v4042
    %v4057 = vmul.f32 %v3880, %v4043
    %v4058 = vmul.f32 %v3881, %v4044
    %v4059 = vmul.f32 %v3882, %v4045
    %v4060 = vmul.f32 %v3883, %v4046
    %v4061 = vmul.f32 %v3884, %v4047
    %v4062 = vmul.f32 %v3885, %v4048
    %v4063 = vmul.f32 %v3886, %v4049
    %v4064 = vlaneseq
    %v4065 = vshrl.u32 %v4064, 7
    %v4066 = vsub.s32 4, %v4065
    %v4067 = vrot.slane %v2568, %v4066
    %v4068 = vmul.f32 %v4050, %v4067
    %v4069 = vmul.f32 %v4051, %v4067
    %v4070 = vmul.f32 %v4052, %v4067
    %v4071 = vmul.f32 %v4053, %v4067
    %v4072 = vmul.f32 %v4054, %v4067
    %v4073 = vmul.f32 %v4055, %v4067
    %v4074 = vmul.f32 %v4056, %v4067
    %v4075 = vmul.f32 %v4057, %v4067
    %v4076 = vmul.f32 %v4058, %v4067
    %v4077 = vmul.f32 %v4059, %v4067
    %v4078 = vmul.f32 %v4060, %v4067
    %v4079 = vmul.f32 %v4061, %v4067
    %v4080 = vmul.f32 %v4062, %v4067
    %v4081 = vmul.f32 %v4063, %v4067
    %v4082 = vlaneseq
    %v4083 = vshrl.u32 %v4082, 7
    %v4084 = vsub.s32 5, %v4083
    %v4085 = vrot.slane %v2568, %v4084
    %v4086 = vadd.f32 %v4068, %v4085
    %v4087 = vadd.f32 %v4069, %v4085
    %v4088 = vadd.f32 %v4070, %v4085
    %v4089 = vadd.f32 %v4071, %v4085
    %v4090 = vadd.f32 %v4072, %v4085
    %v4091 = vadd.f32 %v4073, %v4085
    %v4092 = vadd.f32 %v4074, %v4085
    %v4093 = vadd.f32 %v4075, %v4085
    %v4094 = vadd.f32 %v4076, %v4085
    %v4095 = vadd.f32 %v4077, %v4085
    %v4096 = vadd.f32 %v4078, %v4085
    %v4097 = vadd.f32 %v4079, %v4085
    %v4098 = vadd.f32 %v4080, %v4085
    %v4099 = vadd.f32 %v4081, %v4085
    %s4100 = scalar_lea.vmem %s4, 256
    %v4101 = vld [vmem:[%s4100] sm:$0xff]
    %v4102 = vld [vmem:[%s4100 + $0x8] sm:$0xff]
    %v4103 = vld [vmem:[%s4100 + $0x10] sm:$0xff]
    %v4104 = vld [vmem:[%s4100 + $0x18] sm:$0xff]
    %v4105 = vld [vmem:[%s4100 + $0x20] sm:$0xff]
    %v4106 = vld [vmem:[%s4100 + $0x28] sm:$0xff]
    %v4107 = vld [vmem:[%s4100 + $0x30] sm:$0xff]
    %v4108 = vld [vmem:[%s4100 + $0x38] sm:$0xff]
    %v4109 = vld [vmem:[%s4100 + $0x40] sm:$0xff]
    %v4110 = vld [vmem:[%s4100 + $0x48] sm:$0xff]
    %v4111 = vld [vmem:[%s4100 + $0x50] sm:$0xff]
    %v4112 = vld [vmem:[%s4100 + $0x58] sm:$0xff]
    %v4113 = vld [vmem:[%s4100 + $0x60] sm:$0xff]
    %v4114 = vld [vmem:[%s4100 + $0x68] sm:$0xff]
    %v4115 = vld [vmem:[%s4100 + $0x70] sm:$0xff]
    %v4116 = vld [vmem:[%s4100 + $0x78] sm:$0xff]
    %v4117 = vld [vmem:[%s4100 + $0x80] sm:$0xff]
    %v4118 = vld [vmem:[%s4100 + $0x88] sm:$0xff]
    %v4119 = vld [vmem:[%s4100 + $0x90] sm:$0xff]
    %v4120 = vld [vmem:[%s4100 + $0x98] sm:$0xff]
    %v4121 = vld [vmem:[%s4100 + $0xa0] sm:$0xff]
    %v4122 = vld [vmem:[%s4100 + $0xa8] sm:$0xff]
    %v4123 = vld [vmem:[%s4100 + $0xb0] sm:$0xff]
    %v4124 = vld [vmem:[%s4100 + $0xb8] sm:$0xff]
    %v4125 = vld [vmem:[%s4100 + $0xc0] sm:$0xff]
    %v4126 = vld [vmem:[%s4100 + $0xc8] sm:$0xff]
    %v4127 = vld [vmem:[%s4100 + $0xd0] sm:$0xff]
    %v4128 = vld [vmem:[%s4100 + $0xd8] sm:$0xff]
    %v4129 = vld [vmem:[%s4100 + $0xe0] sm:$0xff]
    %v4130 = vld [vmem:[%s4100 + $0xe8] sm:$0xff]
    %v4131 = vld [vmem:[%s4100 + $0xf0] sm:$0xff]
    %v4132 = vld [vmem:[%s4100 + $0xf8] sm:$0xff]
    %s4133 = scalar_lea.vmem %s5, 2
    %v4134 = vld [vmem:[%s4133] sm:$0x3]
    %v4136 = vlaneseq
    %v4137 = vshrl.u32 %v4136, 7
    %v4138 = vsub.s32 0, %v4137
    %v4139 = vrot.slane %v4134, %v4138
    %v4140 = vlaneseq
    %v4141 = vshrl.u32 %v4140, 7
    %v4142 = vsub.s32 1, %v4141
    %v4143 = vrot.slane %v4134, %v4142
    %4146 = vmatprep.subr.mxu0 %v4102
    %4147 = vmatpush1.msra.mxu0 %v4101
    %4148 = vmatprep.subr.mxu0 %v4104
    %4149 = vmatpush1.msra.mxu0 %v4103
    %4150 = vmatprep.subr.mxu0 %v4106
    %4151 = vmatpush1.msra.mxu0 %v4105
    %4152 = vmatprep.subr.mxu0 %v4108
    %4153 = vmatpush1.msra.mxu0 %v4107
    %4154 = vmatprep.subr.mxu0 %v4110
    %4155 = vmatpush1.msra.mxu0 %v4109
    %4156 = vmatprep.subr.mxu0 %v4112
    %4157 = vmatpush1.msra.mxu0 %v4111
    %4158 = vmatprep.subr.mxu0 %v4114
    %4159 = vmatpush1.msra.mxu0 %v4113
    %4160 = vmatprep.subr.mxu0 %v4116
    %4161 = vmatpush1.msra.mxu0 %v4115
    %4162 = vmatprep.subr.mxu0 %v4118
    %4163 = vmatpush1.msra.mxu0 %v4117
    %4164 = vmatprep.subr.mxu0 %v4120
    %4165 = vmatpush1.msra.mxu0 %v4119
    %4166 = vmatprep.subr.mxu0 %v4122
    %4167 = vmatpush1.msra.mxu0 %v4121
    %4168 = vmatprep.subr.mxu0 %v4124
    %4169 = vmatpush1.msra.mxu0 %v4123
    %4170 = vmatprep.subr.mxu0 %v4126
    %4171 = vmatpush1.msra.mxu0 %v4125
    %4172 = vmatprep.subr.mxu0 %v4128
    %4173 = vmatpush1.msra.mxu0 %v4127
    %4174 = vmatprep.subr.mxu0 %v4130
    %4175 = vmatpush1.msra.mxu0 %v4129
    %4176 = vmatprep.subr.mxu0 %v4132
    %4177 = vmatpush1.msra.mxu0 %v4131
    %4178 = vmatprep.subr.mxu0 0.0
    %4179 = vmatpush1.msra.mxu0 0.0
    %4180 = vmatprep.subr.mxu0 0.0
    %4181 = vmatpush1.msra.mxu0 0.0
    %4182 = vmatprep.subr.mxu0 0.0
    %4183 = vmatpush1.msra.mxu0 0.0
    %4184 = vmatprep.subr.mxu0 0.0
    %4185 = vmatpush1.msra.mxu0 0.0
    %4186 = vmatprep.subr.mxu0 0.0
    %4187 = vmatpush1.msra.mxu0 0.0
    %4188 = vmatprep.subr.mxu0 0.0
    %4189 = vmatpush1.msra.mxu0 0.0
    %4190 = vmatprep.subr.mxu0 0.0
    %4191 = vmatpush1.msra.mxu0 0.0
    %4192 = vmatprep.subr.mxu0 0.0
    %4193 = vmatpush1.msra.mxu0 0.0
    %4194 = vmatprep.subr.mxu0 0.0
    %4195 = vmatpush1.msra.mxu0 0.0
    %4196 = vmatprep.subr.mxu0 0.0
    %4197 = vmatpush1.msra.mxu0 0.0
    %4198 = vmatprep.subr.mxu0 0.0
    %4199 = vmatpush1.msra.mxu0 0.0
    %4200 = vmatprep.subr.mxu0 0.0
    %4201 = vmatpush1.msra.mxu0 0.0
    %4202 = vmatprep.subr.mxu0 0.0
    %4203 = vmatpush1.msra.mxu0 0.0
    %4204 = vmatprep.subr.mxu0 0.0
    %4205 = vmatpush1.msra.mxu0 0.0
    %4206 = vmatprep.subr.mxu0 0.0
    %4207 = vmatpush1.msra.mxu0 0.0
    %4208 = vmatprep.subr.mxu0 0.0
    %4209 = vmatpush1.msra.mxu0 0.0
    %4210 = vmatprep.mubr.f32.mxu0 0.0
    %4211 = vmatmul.mubr.f32.gmra.mrb[0].mxu0 %v4086
    %v4212 = vpop.f32.mrb[0].mxu0
    %v4213 = vadd.f32 %v4139, %v4212
    %v4214 = vpop.f32.mrb[0].mxu0
    %v4215 = vadd.f32 %v4143, %v4214
    %4216 = vmatprep.mubr.f32.mxu0 0.0
    %4217 = vmatmul.mubr.f32.gmra.mrb[0].mxu0 %v4087
    %v4218 = vpop.f32.mrb[0].mxu0
    %v4219 = vadd.f32 %v4139, %v4218
    %v4220 = vpop.f32.mrb[0].mxu0
    %v4221 = vadd.f32 %v4143, %v4220
    %4222 = vmatprep.mubr.f32.mxu0 0.0
    %4223 = vmatmul.mubr.f32.gmra.mrb[0].mxu0 %v4088
    %v4224 = vpop.f32.mrb[0].mxu0
    %v4225 = vadd.f32 %v4139, %v4224
    %v4226 = vpop.f32.mrb[0].mxu0
    %v4227 = vadd.f32 %v4143, %v4226
    %4228 = vmatprep.mubr.f32.mxu0 0.0
    %4229 = vmatmul.mubr.f32.gmra.mrb[0].mxu0 %v4089
    %v4230 = vpop.f32.mrb[0].mxu0
    %v4231 = vadd.f32 %v4139, %v4230
    %v4232 = vpop.f32.mrb[0].mxu0
    %v4233 = vadd.f32 %v4143, %v4232
    %4234 = vmatprep.mubr.f32.mxu0 0.0
    %4235 = vmatmul.mubr.f32.gmra.mrb[0].mxu0 %v4090
    %v4236 = vpop.f32.mrb[0].mxu0
    %v4237 = vadd.f32 %v4139, %v4236
    %v4238 = vpop.f32.mrb[0].mxu0
    %v4239 = vadd.f32 %v4143, %v4238
    %4240 = vmatprep.mubr.f32.mxu0 0.0
    %4241 = vmatmul.mubr.f32.gmra.mrb[0].mxu0 %v4091
    %v4242 = vpop.f32.mrb[0].mxu0
    %v4243 = vadd.f32 %v4139, %v4242
    %v4244 = vpop.f32.mrb[0].mxu0
    %v4245 = vadd.f32 %v4143, %v4244
    %4246 = vmatprep.mubr.f32.mxu0 0.0
    %4247 = vmatmul.mubr.f32.gmra.mrb[0].mxu0 %v4092
    %v4248 = vpop.f32.mrb[0].mxu0
    %v4249 = vadd.f32 %v4139, %v4248
    %v4250 = vpop.f32.mrb[0].mxu0
    %v4251 = vadd.f32 %v4143, %v4250
    %4252 = vmatprep.mubr.f32.mxu0 0.0
    %4253 = vmatmul.mubr.f32.gmra.mrb[0].mxu0 %v4093
    %v4254 = vpop.f32.mrb[0].mxu0
    %v4255 = vadd.f32 %v4139, %v4254
    %v4256 = vpop.f32.mrb[0].mxu0
    %v4257 = vadd.f32 %v4143, %v4256
    %4258 = vmatprep.mubr.f32.mxu0 0.0
    %4259 = vmatmul.mubr.f32.gmra.mrb[0].mxu0 %v4094
    %v4260 = vpop.f32.mrb[0].mxu0
    %v4261 = vadd.f32 %v4139, %v4260
    %v4262 = vpop.f32.mrb[0].mxu0
    %v4263 = vadd.f32 %v4143, %v4262
    %4264 = vmatprep.mubr.f32.mxu0 0.0
    %4265 = vmatmul.mubr.f32.gmra.mrb[0].mxu0 %v4095
    %v4266 = vpop.f32.mrb[0].mxu0
    %v4267 = vadd.f32 %v4139, %v4266
    %v4268 = vpop.f32.mrb[0].mxu0
    %v4269 = vadd.f32 %v4143, %v4268
    %4270 = vmatprep.mubr.f32.mxu0 0.0
    %4271 = vmatmul.mubr.f32.gmra.mrb[0].mxu0 %v4096
    %v4272 = vpop.f32.mrb[0].mxu0
    %v4273 = vadd.f32 %v4139, %v4272
    %v4274 = vpop.f32.mrb[0].mxu0
    %v4275 = vadd.f32 %v4143, %v4274
    %4276 = vmatprep.mubr.f32.mxu0 0.0
    %4277 = vmatmul.mubr.f32.gmra.mrb[0].mxu0 %v4097
    %v4278 = vpop.f32.mrb[0].mxu0
    %v4279 = vadd.f32 %v4139, %v4278
    %v4280 = vpop.f32.mrb[0].mxu0
    %v4281 = vadd.f32 %v4143, %v4280
    %4282 = vmatprep.mubr.f32.mxu0 0.0
    %4283 = vmatmul.mubr.f32.gmra.mrb[0].mxu0 %v4098
    %v4284 = vpop.f32.mrb[0].mxu0
    %v4285 = vadd.f32 %v4139, %v4284
    %v4286 = vpop.f32.mrb[0].mxu0
    %v4287 = vadd.f32 %v4143, %v4286
    %4288 = vmatprep.mubr.f32.mxu0 0.0
    %4289 = vmatmul.mubr.f32.gmra.mrb[0].mxu0 %v4099
    %v4290 = vpop.f32.mrb[0].mxu0
    %v4291 = vadd.f32 %v4139, %v4290
    %v4292 = vpop.f32.mrb[0].mxu0
    %v4293 = vadd.f32 %v4143, %v4292
    %4294 = vdwg.mxu0
    %v4295 = vmax.f32 %v4213, 0.0
    %v4296 = vmax.f32 %v4215, 0.0
    %v4297 = vmax.f32 %v4219, 0.0
    %v4298 = vmax.f32 %v4221, 0.0
    %v4299 = vmax.f32 %v4225, 0.0
    %v4300 = vmax.f32 %v4227, 0.0
    %v4301 = vmax.f32 %v4231, 0.0
    %v4302 = vmax.f32 %v4233, 0.0
    %v4303 = vmax.f32 %v4237, 0.0
    %v4304 = vmax.f32 %v4239, 0.0
    %v4305 = vmax.f32 %v4243, 0.0
    %v4306 = vmax.f32 %v4245, 0.0
    %v4307 = vmax.f32 %v4249, 0.0
    %v4308 = vmax.f32 %v4251, 0.0
    %v4309 = vmax.f32 %v4255, 0.0
    %v4310 = vmax.f32 %v4257, 0.0
    %v4311 = vmax.f32 %v4261, 0.0
    %v4312 = vmax.f32 %v4263, 0.0
    %v4313 = vmax.f32 %v4267, 0.0
    %v4314 = vmax.f32 %v4269, 0.0
    %v4315 = vmax.f32 %v4273, 0.0
    %v4316 = vmax.f32 %v4275, 0.0
    %v4317 = vmax.f32 %v4279, 0.0
    %v4318 = vmax.f32 %v4281, 0.0
    %v4319 = vmax.f32 %v4285, 0.0
    %v4320 = vmax.f32 %v4287, 0.0
    %v4321 = vmax.f32 %v4291, 0.0
    %v4322 = vmax.f32 %v4293, 0.0
    %s4323 = scalar_lea.vmem %s6, 256
    %v4324 = vld [vmem:[%s4323] sm:$0xff]
    %v4325 = vld [vmem:[%s4323 + $0x8] sm:$0xff]
    %v4326 = vld [vmem:[%s4323 + $0x10] sm:$0xff]
    %v4327 = vld [vmem:[%s4323 + $0x18] sm:$0xff]
    %v4328 = vld [vmem:[%s4323 + $0x20] sm:$0xff]
    %v4329 = vld [vmem:[%s4323 + $0x28] sm:$0xff]
    %v4330 = vld [vmem:[%s4323 + $0x30] sm:$0xff]
    %v4331 = vld [vmem:[%s4323 + $0x38] sm:$0xff]
    %v4332 = vld [vmem:[%s4323 + $0x40] sm:$0xff]
    %v4333 = vld [vmem:[%s4323 + $0x48] sm:$0xff]
    %v4334 = vld [vmem:[%s4323 + $0x50] sm:$0xff]
    %v4335 = vld [vmem:[%s4323 + $0x58] sm:$0xff]
    %v4336 = vld [vmem:[%s4323 + $0x60] sm:$0xff]
    %v4337 = vld [vmem:[%s4323 + $0x68] sm:$0xff]
    %v4338 = vld [vmem:[%s4323 + $0x70] sm:$0xff]
    %v4339 = vld [vmem:[%s4323 + $0x78] sm:$0xff]
    %v4340 = vld [vmem:[%s4323 + $0x80] sm:$0xff]
    %v4341 = vld [vmem:[%s4323 + $0x88] sm:$0xff]
    %v4342 = vld [vmem:[%s4323 + $0x90] sm:$0xff]
    %v4343 = vld [vmem:[%s4323 + $0x98] sm:$0xff]
    %v4344 = vld [vmem:[%s4323 + $0xa0] sm:$0xff]
    %v4345 = vld [vmem:[%s4323 + $0xa8] sm:$0xff]
    %v4346 = vld [vmem:[%s4323 + $0xb0] sm:$0xff]
    %v4347 = vld [vmem:[%s4323 + $0xb8] sm:$0xff]
    %v4348 = vld [vmem:[%s4323 + $0xc0] sm:$0xff]
    %v4349 = vld [vmem:[%s4323 + $0xc8] sm:$0xff]
    %v4350 = vld [vmem:[%s4323 + $0xd0] sm:$0xff]
    %v4351 = vld [vmem:[%s4323 + $0xd8] sm:$0xff]
    %v4352 = vld [vmem:[%s4323 + $0xe0] sm:$0xff]
    %v4353 = vld [vmem:[%s4323 + $0xe8] sm:$0xff]
    %v4354 = vld [vmem:[%s4323 + $0xf0] sm:$0xff]
    %v4355 = vld [vmem:[%s4323 + $0xf8] sm:$0xff]
    %v4356 = vlaneseq
    %v4357 = vshrl.u32 %v4356, 7
    %v4358 = vsub.s32 6, %v4357
    %v4359 = vrot.slane %v2568, %v4358
    %4360 = vmatprep.subr.mxu0 0.0
    %4361 = vmatpush1.msra.mxu0 %v4324
    %4362 = vmatprep.subr.mxu0 0.0
    %4363 = vmatpush1.msra.mxu0 %v4325
    %4364 = vmatprep.subr.mxu0 0.0
    %4365 = vmatpush1.msra.mxu0 %v4326
    %4366 = vmatprep.subr.mxu0 0.0
    %4367 = vmatpush1.msra.mxu0 %v4327
    %4368 = vmatprep.subr.mxu0 0.0
    %4369 = vmatpush1.msra.mxu0 %v4328
    %4370 = vmatprep.subr.mxu0 0.0
    %4371 = vmatpush1.msra.mxu0 %v4329
    %4372 = vmatprep.subr.mxu0 0.0
    %4373 = vmatpush1.msra.mxu0 %v4330
    %4374 = vmatprep.subr.mxu0 0.0
    %4375 = vmatpush1.msra.mxu0 %v4331
    %4376 = vmatprep.subr.mxu0 0.0
    %4377 = vmatpush1.msra.mxu0 %v4332
    %4378 = vmatprep.subr.mxu0 0.0
    %4379 = vmatpush1.msra.mxu0 %v4333
    %4380 = vmatprep.subr.mxu0 0.0
    %4381 = vmatpush1.msra.mxu0 %v4334
    %4382 = vmatprep.subr.mxu0 0.0
    %4383 = vmatpush1.msra.mxu0 %v4335
    %4384 = vmatprep.subr.mxu0 0.0
    %4385 = vmatpush1.msra.mxu0 %v4336
    %4386 = vmatprep.subr.mxu0 0.0
    %4387 = vmatpush1.msra.mxu0 %v4337
    %4388 = vmatprep.subr.mxu0 0.0
    %4389 = vmatpush1.msra.mxu0 %v4338
    %4390 = vmatprep.subr.mxu0 0.0
    %4391 = vmatpush1.msra.mxu0 %v4339
    %4392 = vmatprep.subr.mxu0 0.0
    %4393 = vmatpush1.msra.mxu0 %v4340
    %4394 = vmatprep.subr.mxu0 0.0
    %4395 = vmatpush1.msra.mxu0 %v4341
    %4396 = vmatprep.subr.mxu0 0.0
    %4397 = vmatpush1.msra.mxu0 %v4342
    %4398 = vmatprep.subr.mxu0 0.0
    %4399 = vmatpush1.msra.mxu0 %v4343
    %4400 = vmatprep.subr.mxu0 0.0
    %4401 = vmatpush1.msra.mxu0 %v4344
    %4402 = vmatprep.subr.mxu0 0.0
    %4403 = vmatpush1.msra.mxu0 %v4345
    %4404 = vmatprep.subr.mxu0 0.0
    %4405 = vmatpush1.msra.mxu0 %v4346
    %4406 = vmatprep.subr.mxu0 0.0
    %4407 = vmatpush1.msra.mxu0 %v4347
    %4408 = vmatprep.subr.mxu0 0.0
    %4409 = vmatpush1.msra.mxu0 %v4348
    %4410 = vmatprep.subr.mxu0 0.0
    %4411 = vmatpush1.msra.mxu0 %v4349
    %4412 = vmatprep.subr.mxu0 0.0
    %4413 = vmatpush1.msra.mxu0 %v4350
    %4414 = vmatprep.subr.mxu0 0.0
    %4415 = vmatpush1.msra.mxu0 %v4351
    %4416 = vmatprep.subr.mxu0 0.0
    %4417 = vmatpush1.msra.mxu0 %v4352
    %4418 = vmatprep.subr.mxu0 0.0
    %4419 = vmatpush1.msra.mxu0 %v4353
    %4420 = vmatprep.subr.mxu0 0.0
    %4421 = vmatpush1.msra.mxu0 %v4354
    %4422 = vmatprep.subr.mxu0 0.0
    %4423 = vmatpush1.msra.mxu0 %v4355
    %4424 = vmatprep.mubr.f32.mxu0 %v4296
    %4425 = vmatmul.mubr.f32.gmra.mrb[0].mxu0 %v4295
    %v4426 = vpop.f32.mrb[0].mxu0
    %v4427 = vadd.f32 %v4359, %v4426
    %v4428 = vpop.f32.mrb[0].mxu0
    %4429 = vmatprep.mubr.f32.mxu0 %v4298
    %4430 = vmatmul.mubr.f32.gmra.mrb[0].mxu0 %v4297
    %v4431 = vpop.f32.mrb[0].mxu0
    %v4432 = vadd.f32 %v4359, %v4431
    %v4433 = vpop.f32.mrb[0].mxu0
    %4434 = vmatprep.mubr.f32.mxu0 %v4300
    %4435 = vmatmul.mubr.f32.gmra.mrb[0].mxu0 %v4299
    %v4436 = vpop.f32.mrb[0].mxu0
    %v4437 = vadd.f32 %v4359, %v4436
    %v4438 = vpop.f32.mrb[0].mxu0
    %4439 = vmatprep.mubr.f32.mxu0 %v4302
    %4440 = vmatmul.mubr.f32.gmra.mrb[0].mxu0 %v4301
    %v4441 = vpop.f32.mrb[0].mxu0
    %v4442 = vadd.f32 %v4359, %v4441
    %v4443 = vpop.f32.mrb[0].mxu0
    %4444 = vmatprep.mubr.f32.mxu0 %v4304
    %4445 = vmatmul.mubr.f32.gmra.mrb[0].mxu0 %v4303
    %v4446 = vpop.f32.mrb[0].mxu0
    %v4447 = vadd.f32 %v4359, %v4446
    %v4448 = vpop.f32.mrb[0].mxu0
    %4449 = vmatprep.mubr.f32.mxu0 %v4306
    %4450 = vmatmul.mubr.f32.gmra.mrb[0].mxu0 %v4305
    %v4451 = vpop.f32.mrb[0].mxu0
    %v4452 = vadd.f32 %v4359, %v4451
    %v4453 = vpop.f32.mrb[0].mxu0
    %4454 = vmatprep.mubr.f32.mxu0 %v4308
    %4455 = vmatmul.mubr.f32.gmra.mrb[0].mxu0 %v4307
    %v4456 = vpop.f32.mrb[0].mxu0
    %v4457 = vadd.f32 %v4359, %v4456
    %v4458 = vpop.f32.mrb[0].mxu0
    %4459 = vmatprep.mubr.f32.mxu0 %v4310
    %4460 = vmatmul.mubr.f32.gmra.mrb[0].mxu0 %v4309
    %v4461 = vpop.f32.mrb[0].mxu0
    %v4462 = vadd.f32 %v4359, %v4461
    %v4463 = vpop.f32.mrb[0].mxu0
    %4464 = vmatprep.mubr.f32.mxu0 %v4312
    %4465 = vmatmul.mubr.f32.gmra.mrb[0].mxu0 %v4311
    %v4466 = vpop.f32.mrb[0].mxu0
    %v4467 = vadd.f32 %v4359, %v4466
    %v4468 = vpop.f32.mrb[0].mxu0
    %4469 = vmatprep.mubr.f32.mxu0 %v4314
    %4470 = vmatmul.mubr.f32.gmra.mrb[0].mxu0 %v4313
    %v4471 = vpop.f32.mrb[0].mxu0
    %v4472 = vadd.f32 %v4359, %v4471
    %v4473 = vpop.f32.mrb[0].mxu0
    %4474 = vmatprep.mubr.f32.mxu0 %v4316
    %4475 = vmatmul.mubr.f32.gmra.mrb[0].mxu0 %v4315
    %v4476 = vpop.f32.mrb[0].mxu0
    %v4477 = vadd.f32 %v4359, %v4476
    %v4478 = vpop.f32.mrb[0].mxu0
    %4479 = vmatprep.mubr.f32.mxu0 %v4318
    %4480 = vmatmul.mubr.f32.gmra.mrb[0].mxu0 %v4317
    %v4481 = vpop.f32.mrb[0].mxu0
    %v4482 = vadd.f32 %v4359, %v4481
    %v4483 = vpop.f32.mrb[0].mxu0
    %4484 = vmatprep.mubr.f32.mxu0 %v4320
    %4485 = vmatmul.mubr.f32.gmra.mrb[0].mxu0 %v4319
    %v4486 = vpop.f32.mrb[0].mxu0
    %v4487 = vadd.f32 %v4359, %v4486
    %v4488 = vpop.f32.mrb[0].mxu0
    %4489 = vmatprep.mubr.f32.mxu0 %v4322
    %4490 = vmatmul.mubr.f32.gmra.mrb[0].mxu0 %v4321
    %v4491 = vpop.f32.mrb[0].mxu0
    %v4492 = vadd.f32 %v4359, %v4491
    %v4493 = vpop.f32.mrb[0].mxu0
    %4494 = vdwg.mxu0
    %v4495 = vadd.f32 %v4086, %v4427
    %v4496 = vadd.f32 %v4087, %v4432
    %v4497 = vadd.f32 %v4088, %v4437
    %v4498 = vadd.f32 %v4089, %v4442
    %v4499 = vadd.f32 %v4090, %v4447
    %v4500 = vadd.f32 %v4091, %v4452
    %v4501 = vadd.f32 %v4092, %v4457
    %v4502 = vadd.f32 %v4093, %v4462
    %v4503 = vadd.f32 %v4094, %v4467
    %v4504 = vadd.f32 %v4095, %v4472
    %v4505 = vadd.f32 %v4096, %v4477
    %v4506 = vadd.f32 %v4097, %v4482
    %v4507 = vadd.f32 %v4098, %v4487
    %v4508 = vadd.f32 %v4099, %v4492
    %4509 = vmatprep.subr.mxu0 0.0
    %4510 = vmatpush1.msra.mxu0 %v80
    %4511 = vmatprep.subr.mxu0 0.0
    %4512 = vmatpush1.msra.mxu0 %v81
    %4513 = vmatprep.subr.mxu0 0.0
    %4514 = vmatpush1.msra.mxu0 %v82
    %4515 = vmatprep.subr.mxu0 0.0
    %4516 = vmatpush1.msra.mxu0 %v83
    %4517 = vmatprep.subr.mxu0 0.0
    %4518 = vmatpush1.msra.mxu0 %v84
    %4519 = vmatprep.subr.mxu0 0.0
    %4520 = vmatpush1.msra.mxu0 %v85
    %4521 = vmatprep.subr.mxu0 0.0
    %4522 = vmatpush1.msra.mxu0 %v86
    %4523 = vmatprep.subr.mxu0 0.0
    %4524 = vmatpush1.msra.mxu0 %v87
    %4525 = vmatprep.subr.mxu0 0.0
    %4526 = vmatpush1.msra.mxu0 %v88
    %4527 = vmatprep.subr.mxu0 0.0
    %4528 = vmatpush1.msra.mxu0 %v89
    %4529 = vmatprep.subr.mxu0 0.0
    %4530 = vmatpush1.msra.mxu0 %v90
    %4531 = vmatprep.subr.mxu0 0.0
    %4532 = vmatpush1.msra.mxu0 %v91
    %4533 = vmatprep.subr.mxu0 0.0
    %4534 = vmatpush1.msra.mxu0 %v92
    %4535 = vmatprep.subr.mxu0 0.0
    %4536 = vmatpush1.msra.mxu0 %v93
    %4537 = vmatprep.subr.mxu0 0.0
    %4538 = vmatpush1.msra.mxu0 %v94
    %4539 = vmatprep.subr.mxu0 0.0
    %4540 = vmatpush1.msra.mxu0 %v95
    %4541 = vmatprep.subr.mxu0 0.0
    %4542 = vmatpush1.msra.mxu0 0.0
    %4543 = vmatprep.subr.mxu0 0.0
    %4544 = vmatpush1.msra.mxu0 0.0
    %4545 = vmatprep.subr.mxu0 0.0
    %4546 = vmatpush1.msra.mxu0 0.0
    %4547 = vmatprep.subr.mxu0 0.0
    %4548 = vmatpush1.msra.mxu0 0.0
    %4549 = vmatprep.subr.mxu0 0.0
    %4550 = vmatpush1.msra.mxu0 0.0
    %4551 = vmatprep.subr.mxu0 0.0
    %4552 = vmatpush1.msra.mxu0 0.0
    %4553 = vmatprep.subr.mxu0 0.0
    %4554 = vmatpush1.msra.mxu0 0.0
    %4555 = vmatprep.subr.mxu0 0.0
    %4556 = vmatpush1.msra.mxu0 0.0
    %4557 = vmatprep.subr.mxu0 0.0
    %4558 = vmatpush1.msra.mxu0 0.0
    %4559 = vmatprep.subr.mxu0 0.0
    %4560 = vmatpush1.msra.mxu0 0.0
    %4561 = vmatprep.subr.mxu0 0.0
    %4562 = vmatpush1.msra.mxu0 0.0
    %4563 = vmatprep.subr.mxu0 0.0
    %4564 = vmatpush1.msra.mxu0 0.0
    %4565 = vmatprep.subr.mxu0 0.0
    %4566 = vmatpush1.msra.mxu0 0.0
    %4567 = vmatprep.subr.mxu0 0.0
    %4568 = vmatpush1.msra.mxu0 0.0
    %4569 = vmatprep.subr.mxu0 0.0
    %4570 = vmatpush1.msra.mxu0 0.0
    %4571 = vmatprep.subr.mxu0 0.0
    %4572 = vmatpush1.msra.mxu0 0.0
    %4573 = vmatprep.mubr.f32.mxu0 0.0
    %4574 = vmatmul.mubr.f32.gmra.mrb[0].mxu0 %v4495
    %v4575 = vpop.f32.mrb[0].mxu0
    %v4576 = vadd.f32 0.0, %v4575
    %v4577 = vpop.f32.mrb[0].mxu0
    %4578 = vmatprep.mubr.f32.mxu0 0.0
    %4579 = vmatmul.mubr.f32.gmra.mrb[0].mxu0 %v4496
    %v4580 = vpop.f32.mrb[0].mxu0
    %v4581 = vadd.f32 0.0, %v4580
    %v4582 = vpop.f32.mrb[0].mxu0
    %4583 = vmatprep.mubr.f32.mxu0 0.0
    %4584 = vmatmul.mubr.f32.gmra.mrb[0].mxu0 %v4497
    %v4585 = vpop.f32.mrb[0].mxu0
    %v4586 = vadd.f32 0.0, %v4585
    %v4587 = vpop.f32.mrb[0].mxu0
    %4588 = vmatprep.mubr.f32.mxu0 0.0
    %4589 = vmatmul.mubr.f32.gmra.mrb[0].mxu0 %v4498
    %v4590 = vpop.f32.mrb[0].mxu0
    %v4591 = vadd.f32 0.0, %v4590
    %v4592 = vpop.f32.mrb[0].mxu0
    %4593 = vmatprep.mubr.f32.mxu0 0.0
    %4594 = vmatmul.mubr.f32.gmra.mrb[0].mxu0 %v4499
    %v4595 = vpop.f32.mrb[0].mxu0
    %v4596 = vadd.f32 0.0, %v4595
    %v4597 = vpop.f32.mrb[0].mxu0
    %4598 = vmatprep.mubr.f32.mxu0 0.0
    %4599 = vmatmul.mubr.f32.gmra.mrb[0].mxu0 %v4500
    %v4600 = vpop.f32.mrb[0].mxu0
    %v4601 = vadd.f32 0.0, %v4600
    %v4602 = vpop.f32.mrb[0].mxu0
    %4603 = vmatprep.mubr.f32.mxu0 0.0
    %4604 = vmatmul.mubr.f32.gmra.mrb[0].mxu0 %v4501
    %v4605 = vpop.f32.mrb[0].mxu0
    %v4606 = vadd.f32 0.0, %v4605
    %v4607 = vpop.f32.mrb[0].mxu0
    %4608 = vmatprep.mubr.f32.mxu0 0.0
    %4609 = vmatmul.mubr.f32.gmra.mrb[0].mxu0 %v4502
    %v4610 = vpop.f32.mrb[0].mxu0
    %v4611 = vadd.f32 0.0, %v4610
    %v4612 = vpop.f32.mrb[0].mxu0
    %4613 = vmatprep.mubr.f32.mxu0 0.0
    %4614 = vmatmul.mubr.f32.gmra.mrb[0].mxu0 %v4503
    %v4615 = vpop.f32.mrb[0].mxu0
    %v4616 = vadd.f32 0.0, %v4615
    %v4617 = vpop.f32.mrb[0].mxu0
    %4618 = vmatprep.mubr.f32.mxu0 0.0
    %4619 = vmatmul.mubr.f32.gmra.mrb[0].mxu0 %v4504
    %v4620 = vpop.f32.mrb[0].mxu0
    %v4621 = vadd.f32 0.0, %v4620
    %v4622 = vpop.f32.mrb[0].mxu0
    %4623 = vmatprep.mubr.f32.mxu0 0.0
    %4624 = vmatmul.mubr.f32.gmra.mrb[0].mxu0 %v4505
    %v4625 = vpop.f32.mrb[0].mxu0
    %v4626 = vadd.f32 0.0, %v4625
    %v4627 = vpop.f32.mrb[0].mxu0
    %4628 = vmatprep.mubr.f32.mxu0 0.0
    %4629 = vmatmul.mubr.f32.gmra.mrb[0].mxu0 %v4506
    %v4630 = vpop.f32.mrb[0].mxu0
    %v4631 = vadd.f32 0.0, %v4630
    %v4632 = vpop.f32.mrb[0].mxu0
    %4633 = vmatprep.mubr.f32.mxu0 0.0
    %4634 = vmatmul.mubr.f32.gmra.mrb[0].mxu0 %v4507
    %v4635 = vpop.f32.mrb[0].mxu0
    %v4636 = vadd.f32 0.0, %v4635
    %v4637 = vpop.f32.mrb[0].mxu0
    %4638 = vmatprep.mubr.f32.mxu0 0.0
    %4639 = vmatmul.mubr.f32.gmra.mrb[0].mxu0 %v4508
    %v4640 = vpop.f32.mrb[0].mxu0
    %v4641 = vadd.f32 0.0, %v4640
    %v4642 = vpop.f32.mrb[0].mxu0
    %4643 = vdwg.mxu0
    %v4644 = vsub.f32 %v4495, %v4576
    %v4645 = vsub.f32 %v4496, %v4581
    %v4646 = vsub.f32 %v4497, %v4586
    %v4647 = vsub.f32 %v4498, %v4591
    %v4648 = vsub.f32 %v4499, %v4596
    %v4649 = vsub.f32 %v4500, %v4601
    %v4650 = vsub.f32 %v4501, %v4606
    %v4651 = vsub.f32 %v4502, %v4611
    %v4652 = vsub.f32 %v4503, %v4616
    %v4653 = vsub.f32 %v4504, %v4621
    %v4654 = vsub.f32 %v4505, %v4626
    %v4655 = vsub.f32 %v4506, %v4631
    %v4656 = vsub.f32 %v4507, %v4636
    %v4657 = vsub.f32 %v4508, %v4641
    %v4658 = vmul.f32 %v4644, %v4644
    %v4659 = vmul.f32 %v4645, %v4645
    %v4660 = vmul.f32 %v4646, %v4646
    %v4661 = vmul.f32 %v4647, %v4647
    %v4662 = vmul.f32 %v4648, %v4648
    %v4663 = vmul.f32 %v4649, %v4649
    %v4664 = vmul.f32 %v4650, %v4650
    %v4665 = vmul.f32 %v4651, %v4651
    %v4666 = vmul.f32 %v4652, %v4652
    %v4667 = vmul.f32 %v4653, %v4653
    %v4668 = vmul.f32 %v4654, %v4654
    %v4669 = vmul.f32 %v4655, %v4655
    %v4670 = vmul.f32 %v4656, %v4656
    %v4671 = vmul.f32 %v4657, %v4657
    %4672 = vmatprep.subr.mxu0 0.0
    %4673 = vmatpush1.msra.mxu0 %v80
    %4674 = vmatprep.subr.mxu0 0.0
    %4675 = vmatpush1.msra.mxu0 %v81
    %4676 = vmatprep.subr.mxu0 0.0
    %4677 = vmatpush1.msra.mxu0 %v82
    %4678 = vmatprep.subr.mxu0 0.0
    %4679 = vmatpush1.msra.mxu0 %v83
    %4680 = vmatprep.subr.mxu0 0.0
    %4681 = vmatpush1.msra.mxu0 %v84
    %4682 = vmatprep.subr.mxu0 0.0
    %4683 = vmatpush1.msra.mxu0 %v85
    %4684 = vmatprep.subr.mxu0 0.0
    %4685 = vmatpush1.msra.mxu0 %v86
    %4686 = vmatprep.subr.mxu0 0.0
    %4687 = vmatpush1.msra.mxu0 %v87
    %4688 = vmatprep.subr.mxu0 0.0
    %4689 = vmatpush1.msra.mxu0 %v88
    %4690 = vmatprep.subr.mxu0 0.0
    %4691 = vmatpush1.msra.mxu0 %v89
    %4692 = vmatprep.subr.mxu0 0.0
    %4693 = vmatpush1.msra.mxu0 %v90
    %4694 = vmatprep.subr.mxu0 0.0
    %4695 = vmatpush1.msra.mxu0 %v91
    %4696 = vmatprep.subr.mxu0 0.0
    %4697 = vmatpush1.msra.mxu0 %v92
    %4698 = vmatprep.subr.mxu0 0.0
    %4699 = vmatpush1.msra.mxu0 %v93
    %4700 = vmatprep.subr.mxu0 0.0
    %4701 = vmatpush1.msra.mxu0 %v94
    %4702 = vmatprep.subr.mxu0 0.0
    %4703 = vmatpush1.msra.mxu0 %v95
    %4704 = vmatprep.subr.mxu0 0.0
    %4705 = vmatpush1.msra.mxu0 0.0
    %4706 = vmatprep.subr.mxu0 0.0
    %4707 = vmatpush1.msra.mxu0 0.0
    %4708 = vmatprep.subr.mxu0 0.0
    %4709 = vmatpush1.msra.mxu0 0.0
    %4710 = vmatprep.subr.mxu0 0.0
    %4711 = vmatpush1.msra.mxu0 0.0
    %4712 = vmatprep.subr.mxu0 0.0
    %4713 = vmatpush1.msra.mxu0 0.0
    %4714 = vmatprep.subr.mxu0 0.0
    %4715 = vmatpush1.msra.mxu0 0.0
    %4716 = vmatprep.subr.mxu0 0.0
    %4717 = vmatpush1.msra.mxu0 0.0
    %4718 = vmatprep.subr.mxu0 0.0
    %4719 = vmatpush1.msra.mxu0 0.0
    %4720 = vmatprep.subr.mxu0 0.0
    %4721 = vmatpush1.msra.mxu0 0.0
    %4722 = vmatprep.subr.mxu0 0.0
    %4723 = vmatpush1.msra.mxu0 0.0
    %4724 = vmatprep.subr.mxu0 0.0
    %4725 = vmatpush1.msra.mxu0 0.0
    %4726 = vmatprep.subr.mxu0 0.0
    %4727 = vmatpush1.msra.mxu0 0.0
    %4728 = vmatprep.subr.mxu0 0.0
    %4729 = vmatpush1.msra.mxu0 0.0
    %4730 = vmatprep.subr.mxu0 0.0
    %4731 = vmatpush1.msra.mxu0 0.0
    %4732 = vmatprep.subr.mxu0 0.0
    %4733 = vmatpush1.msra.mxu0 0.0
    %4734 = vmatprep.subr.mxu0 0.0
    %4735 = vmatpush1.msra.mxu0 0.0
    %4736 = vmatprep.mubr.f32.mxu0 0.0
    %4737 = vmatmul.mubr.f32.gmra.mrb[0].mxu0 %v4658
    %v4738 = vpop.f32.mrb[0].mxu0
    %v4739 = vadd.f32 1e-05, %v4738
    %v4740 = vpop.f32.mrb[0].mxu0
    %4741 = vmatprep.mubr.f32.mxu0 0.0
    %4742 = vmatmul.mubr.f32.gmra.mrb[0].mxu0 %v4659
    %v4743 = vpop.f32.mrb[0].mxu0
    %v4744 = vadd.f32 1e-05, %v4743
    %v4745 = vpop.f32.mrb[0].mxu0
    %4746 = vmatprep.mubr.f32.mxu0 0.0
    %4747 = vmatmul.mubr.f32.gmra.mrb[0].mxu0 %v4660
    %v4748 = vpop.f32.mrb[0].mxu0
    %v4749 = vadd.f32 1e-05, %v4748
    %v4750 = vpop.f32.mrb[0].mxu0
    %4751 = vmatprep.mubr.f32.mxu0 0.0
    %4752 = vmatmul.mubr.f32.gmra.mrb[0].mxu0 %v4661
    %v4753 = vpop.f32.mrb[0].mxu0
    %v4754 = vadd.f32 1e-05, %v4753
    %v4755 = vpop.f32.mrb[0].mxu0
    %4756 = vmatprep.mubr.f32.mxu0 0.0
    %4757 = vmatmul.mubr.f32.gmra.mrb[0].mxu0 %v4662
    %v4758 = vpop.f32.mrb[0].mxu0
    %v4759 = vadd.f32 1e-05, %v4758
    %v4760 = vpop.f32.mrb[0].mxu0
    %4761 = vmatprep.mubr.f32.mxu0 0.0
    %4762 = vmatmul.mubr.f32.gmra.mrb[0].mxu0 %v4663
    %v4763 = vpop.f32.mrb[0].mxu0
    %v4764 = vadd.f32 1e-05, %v4763
    %v4765 = vpop.f32.mrb[0].mxu0
    %4766 = vmatprep.mubr.f32.mxu0 0.0
    %4767 = vmatmul.mubr.f32.gmra.mrb[0].mxu0 %v4664
    %v4768 = vpop.f32.mrb[0].mxu0
    %v4769 = vadd.f32 1e-05, %v4768
    %v4770 = vpop.f32.mrb[0].mxu0
    %4771 = vmatprep.mubr.f32.mxu0 0.0
    %4772 = vmatmul.mubr.f32.gmra.mrb[0].mxu0 %v4665
    %v4773 = vpop.f32.mrb[0].mxu0
    %v4774 = vadd.f32 1e-05, %v4773
    %v4775 = vpop.f32.mrb[0].mxu0
    %4776 = vmatprep.mubr.f32.mxu0 0.0
    %4777 = vmatmul.mubr.f32.gmra.mrb[0].mxu0 %v4666
    %v4778 = vpop.f32.mrb[0].mxu0
    %v4779 = vadd.f32 1e-05, %v4778
    %v4780 = vpop.f32.mrb[0].mxu0
    %4781 = vmatprep.mubr.f32.mxu0 0.0
    %4782 = vmatmul.mubr.f32.gmra.mrb[0].mxu0 %v4667
    %v4783 = vpop.f32.mrb[0].mxu0
    %v4784 = vadd.f32 1e-05, %v4783
    %v4785 = vpop.f32.mrb[0].mxu0
    %4786 = vmatprep.mubr.f32.mxu0 0.0
    %4787 = vmatmul.mubr.f32.gmra.mrb[0].mxu0 %v4668
    %v4788 = vpop.f32.mrb[0].mxu0
    %v4789 = vadd.f32 1e-05, %v4788
    %v4790 = vpop.f32.mrb[0].mxu0
    %4791 = vmatprep.mubr.f32.mxu0 0.0
    %4792 = vmatmul.mubr.f32.gmra.mrb[0].mxu0 %v4669
    %v4793 = vpop.f32.mrb[0].mxu0
    %v4794 = vadd.f32 1e-05, %v4793
    %v4795 = vpop.f32.mrb[0].mxu0
    %4796 = vmatprep.mubr.f32.mxu0 0.0
    %4797 = vmatmul.mubr.f32.gmra.mrb[0].mxu0 %v4670
    %v4798 = vpop.f32.mrb[0].mxu0
    %v4799 = vadd.f32 1e-05, %v4798
    %v4800 = vpop.f32.mrb[0].mxu0
    %4801 = vmatprep.mubr.f32.mxu0 0.0
    %4802 = vmatmul.mubr.f32.gmra.mrb[0].mxu0 %v4671
    %v4803 = vpop.f32.mrb[0].mxu0
    %v4804 = vadd.f32 1e-05, %v4803
    %v4805 = vpop.f32.mrb[0].mxu0
    %4806 = vdwg.mxu0
    %v4807 = vrsqrt.pop %v4739
    %v4808 = vrsqrt.pop %v4744
    %v4809 = vrsqrt.pop %v4749
    %v4810 = vrsqrt.pop %v4754
    %v4811 = vrsqrt.pop %v4759
    %v4812 = vrsqrt.pop %v4764
    %v4813 = vrsqrt.pop %v4769
    %v4814 = vrsqrt.pop %v4774
    %v4815 = vrsqrt.pop %v4779
    %v4816 = vrsqrt.pop %v4784
    %v4817 = vrsqrt.pop %v4789
    %v4818 = vrsqrt.pop %v4794
    %v4819 = vrsqrt.pop %v4799
    %v4820 = vrsqrt.pop %v4804
    %v4821 = vmul.f32 %v4644, %v4807
    %v4822 = vmul.f32 %v4645, %v4808
    %v4823 = vmul.f32 %v4646, %v4809
    %v4824 = vmul.f32 %v4647, %v4810
    %v4825 = vmul.f32 %v4648, %v4811
    %v4826 = vmul.f32 %v4649, %v4812
    %v4827 = vmul.f32 %v4650, %v4813
    %v4828 = vmul.f32 %v4651, %v4814
    %v4829 = vmul.f32 %v4652, %v4815
    %v4830 = vmul.f32 %v4653, %v4816
    %v4831 = vmul.f32 %v4654, %v4817
    %v4832 = vmul.f32 %v4655, %v4818
    %v4833 = vmul.f32 %v4656, %v4819
    %v4834 = vmul.f32 %v4657, %v4820
    %v4835 = vlaneseq
    %v4836 = vshrl.u32 %v4835, 7
    %v4837 = vsub.s32 7, %v4836
    %v4838 = vrot.slane %v2568, %v4837
    %v4839 = vmul.f32 %v4821, %v4838
    %v4840 = vmul.f32 %v4822, %v4838
    %v4841 = vmul.f32 %v4823, %v4838
    %v4842 = vmul.f32 %v4824, %v4838
    %v4843 = vmul.f32 %v4825, %v4838
    %v4844 = vmul.f32 %v4826, %v4838
    %v4845 = vmul.f32 %v4827, %v4838
    %v4846 = vmul.f32 %v4828, %v4838
    %v4847 = vmul.f32 %v4829, %v4838
    %v4848 = vmul.f32 %v4830, %v4838
    %v4849 = vmul.f32 %v4831, %v4838
    %v4850 = vmul.f32 %v4832, %v4838
    %v4851 = vmul.f32 %v4833, %v4838
    %v4852 = vmul.f32 %v4834, %v4838
    %v4853 = vlaneseq
    %v4854 = vshrl.u32 %v4853, 7
    %v4855 = vsub.s32 0, %v4854
    %v4856 = vrot.slane %v2569, %v4855
    %v4857 = vadd.f32 %v4839, %v4856
    %v4858 = vadd.f32 %v4840, %v4856
    %v4859 = vadd.f32 %v4841, %v4856
    %v4860 = vadd.f32 %v4842, %v4856
    %v4861 = vadd.f32 %v4843, %v4856
    %v4862 = vadd.f32 %v4844, %v4856
    %v4863 = vadd.f32 %v4845, %v4856
    %v4864 = vadd.f32 %v4846, %v4856
    %v4865 = vadd.f32 %v4847, %v4856
    %v4866 = vadd.f32 %v4848, %v4856
    %v4867 = vadd.f32 %v4849, %v4856
    %v4868 = vadd.f32 %v4850, %v4856
    %v4869 = vadd.f32 %v4851, %v4856
    %v4870 = vadd.f32 %v4852, %v4856
    %v4871 = vld [vmem:[%s8] sm:$0xff]
    %v4872 = vld [vmem:[%s8 + $0x8] sm:$0xff]
    %v4873 = vld [vmem:[%s8 + $0x10] sm:$0xff]
    %v4874 = vld [vmem:[%s8 + $0x18] sm:$0xff]
    %v4875 = vld [vmem:[%s8 + $0x20] sm:$0xff]
    %v4876 = vld [vmem:[%s8 + $0x28] sm:$0xff]
    %v4877 = vld [vmem:[%s8 + $0x30] sm:$0xff]
    %v4878 = vld [vmem:[%s8 + $0x38] sm:$0xff]
    %v4879 = vld [vmem:[%s8 + $0x40] sm:$0xff]
    %v4880 = vld [vmem:[%s8 + $0x48] sm:$0xff]
    %v4881 = vld [vmem:[%s8 + $0x50] sm:$0xff]
    %v4882 = vld [vmem:[%s8 + $0x58] sm:$0xff]
    %v4883 = vld [vmem:[%s8 + $0x60] sm:$0xff]
    %v4884 = vld [vmem:[%s8 + $0x68] sm:$0xff]
    %v4885 = vld [vmem:[%s8 + $0x70] sm:$0xff]
    %v4886 = vld [vmem:[%s8 + $0x78] sm:$0xff]
    %v4887 = vld [vmem:[%s9] sm:$0x1]
    %v4889 = vlaneseq
    %v4890 = vshrl.u32 %v4889, 7
    %v4891 = vsub.s32 0, %v4890
    %v4892 = vrot.slane %v4887, %v4891
    %4894 = vmatprep.subr.mxu0 0.0
    %4895 = vmatpush1.msra.mxu0 %v4871
    %4896 = vmatprep.subr.mxu0 0.0
    %4897 = vmatpush1.msra.mxu0 %v4872
    %4898 = vmatprep.subr.mxu0 0.0
    %4899 = vmatpush1.msra.mxu0 %v4873
    %4900 = vmatprep.subr.mxu0 0.0
    %4901 = vmatpush1.msra.mxu0 %v4874
    %4902 = vmatprep.subr.mxu0 0.0
    %4903 = vmatpush1.msra.mxu0 %v4875
    %4904 = vmatprep.subr.mxu0 0.0
    %4905 = vmatpush1.msra.mxu0 %v4876
    %4906 = vmatprep.subr.mxu0 0.0
    %4907 = vmatpush1.msra.mxu0 %v4877
    %4908 = vmatprep.subr.mxu0 0.0
    %4909 = vmatpush1.msra.mxu0 %v4878
    %4910 = vmatprep.subr.mxu0 0.0
    %4911 = vmatpush1.msra.mxu0 %v4879
    %4912 = vmatprep.subr.mxu0 0.0
    %4913 = vmatpush1.msra.mxu0 %v4880
    %4914 = vmatprep.subr.mxu0 0.0
    %4915 = vmatpush1.msra.mxu0 %v4881
    %4916 = vmatprep.subr.mxu0 0.0
    %4917 = vmatpush1.msra.mxu0 %v4882
    %4918 = vmatprep.subr.mxu0 0.0
    %4919 = vmatpush1.msra.mxu0 %v4883
    %4920 = vmatprep.subr.mxu0 0.0
    %4921 = vmatpush1.msra.mxu0 %v4884
    %4922 = vmatprep.subr.mxu0 0.0
    %4923 = vmatpush1.msra.mxu0 %v4885
    %4924 = vmatprep.subr.mxu0 0.0
    %4925 = vmatpush1.msra.mxu0 %v4886
    %4926 = vmatprep.subr.mxu0 0.0
    %4927 = vmatpush1.msra.mxu0 0.0
    %4928 = vmatprep.subr.mxu0 0.0
    %4929 = vmatpush1.msra.mxu0 0.0
    %4930 = vmatprep.subr.mxu0 0.0
    %4931 = vmatpush1.msra.mxu0 0.0
    %4932 = vmatprep.subr.mxu0 0.0
    %4933 = vmatpush1.msra.mxu0 0.0
    %4934 = vmatprep.subr.mxu0 0.0
    %4935 = vmatpush1.msra.mxu0 0.0
    %4936 = vmatprep.subr.mxu0 0.0
    %4937 = vmatpush1.msra.mxu0 0.0
    %4938 = vmatprep.subr.mxu0 0.0
    %4939 = vmatpush1.msra.mxu0 0.0
    %4940 = vmatprep.subr.mxu0 0.0
    %4941 = vmatpush1.msra.mxu0 0.0
    %4942 = vmatprep.subr.mxu0 0.0
    %4943 = vmatpush1.msra.mxu0 0.0
    %4944 = vmatprep.subr.mxu0 0.0
    %4945 = vmatpush1.msra.mxu0 0.0
    %4946 = vmatprep.subr.mxu0 0.0
    %4947 = vmatpush1.msra.mxu0 0.0
    %4948 = vmatprep.subr.mxu0 0.0
    %4949 = vmatpush1.msra.mxu0 0.0
    %4950 = vmatprep.subr.mxu0 0.0
    %4951 = vmatpush1.msra.mxu0 0.0
    %4952 = vmatprep.subr.mxu0 0.0
    %4953 = vmatpush1.msra.mxu0 0.0
    %4954 = vmatprep.subr.mxu0 0.0
    %4955 = vmatpush1.msra.mxu0 0.0
    %4956 = vmatprep.subr.mxu0 0.0
    %4957 = vmatpush1.msra.mxu0 0.0
    %4958 = vmatprep.mubr.f32.mxu0 0.0
    %4959 = vmatmul.mubr.f32.gmra.mrb[0].mxu0 %v4857
    %v4960 = vpop.f32.mrb[0].mxu0
    %v4961 = vadd.f32 %v4892, %v4960
    %v4962 = vpop.f32.mrb[0].mxu0
    %4963 = vmatprep.mubr.f32.mxu0 0.0
    %4964 = vmatmul.mubr.f32.gmra.mrb[0].mxu0 %v4858
    %v4965 = vpop.f32.mrb[0].mxu0
    %v4966 = vadd.f32 %v4892, %v4965
    %v4967 = vpop.f32.mrb[0].mxu0
    %4968 = vmatprep.mubr.f32.mxu0 0.0
    %4969 = vmatmul.mubr.f32.gmra.mrb[0].mxu0 %v4859
    %v4970 = vpop.f32.mrb[0].mxu0
    %v4971 = vadd.f32 %v4892, %v4970
    %v4972 = vpop.f32.mrb[0].mxu0
    %4973 = vmatprep.mubr.f32.mxu0 0.0
    %4974 = vmatmul.mubr.f32.gmra.mrb[0].mxu0 %v4860
    %v4975 = vpop.f32.mrb[0].mxu0
    %v4976 = vadd.f32 %v4892, %v4975
    %v4977 = vpop.f32.mrb[0].mxu0
    %4978 = vmatprep.mubr.f32.mxu0 0.0
    %4979 = vmatmul.mubr.f32.gmra.mrb[0].mxu0 %v4861
    %v4980 = vpop.f32.mrb[0].mxu0
    %v4981 = vadd.f32 %v4892, %v4980
    %v4982 = vpop.f32.mrb[0].mxu0
    %4983 = vmatprep.mubr.f32.mxu0 0.0
    %4984 = vmatmul.mubr.f32.gmra.mrb[0].mxu0 %v4862
    %v4985 = vpop.f32.mrb[0].mxu0
    %v4986 = vadd.f32 %v4892, %v4985
    %v4987 = vpop.f32.mrb[0].mxu0
    %4988 = vmatprep.mubr.f32.mxu0 0.0
    %4989 = vmatmul.mubr.f32.gmra.mrb[0].mxu0 %v4863
    %v4990 = vpop.f32.mrb[0].mxu0
    %v4991 = vadd.f32 %v4892, %v4990
    %v4992 = vpop.f32.mrb[0].mxu0
    %4993 = vmatprep.mubr.f32.mxu0 0.0
    %4994 = vmatmul.mubr.f32.gmra.mrb[0].mxu0 %v4864
    %v4995 = vpop.f32.mrb[0].mxu0
    %v4996 = vadd.f32 %v4892, %v4995
    %v4997 = vpop.f32.mrb[0].mxu0
    %4998 = vmatprep.mubr.f32.mxu0 0.0
    %4999 = vmatmul.mubr.f32.gmra.mrb[0].mxu0 %v4865
    %v5000 = vpop.f32.mrb[0].mxu0
    %v5001 = vadd.f32 %v4892, %v5000
    %v5002 = vpop.f32.mrb[0].mxu0
    %5003 = vmatprep.mubr.f32.mxu0 0.0
    %5004 = vmatmul.mubr.f32.gmra.mrb[0].mxu0 %v4866
    %v5005 = vpop.f32.mrb[0].mxu0
    %v5006 = vadd.f32 %v4892, %v5005
    %v5007 = vpop.f32.mrb[0].mxu0
    %5008 = vmatprep.mubr.f32.mxu0 0.0
    %5009 = vmatmul.mubr.f32.gmra.mrb[0].mxu0 %v4867
    %v5010 = vpop.f32.mrb[0].mxu0
    %v5011 = vadd.f32 %v4892, %v5010
    %v5012 = vpop.f32.mrb[0].mxu0
    %5013 = vmatprep.mubr.f32.mxu0 0.0
    %5014 = vmatmul.mubr.f32.gmra.mrb[0].mxu0 %v4868
    %v5015 = vpop.f32.mrb[0].mxu0
    %v5016 = vadd.f32 %v4892, %v5015
    %v5017 = vpop.f32.mrb[0].mxu0
    %5018 = vmatprep.mubr.f32.mxu0 0.0
    %5019 = vmatmul.mubr.f32.gmra.mrb[0].mxu0 %v4869
    %v5020 = vpop.f32.mrb[0].mxu0
    %v5021 = vadd.f32 %v4892, %v5020
    %v5022 = vpop.f32.mrb[0].mxu0
    %5023 = vmatprep.mubr.f32.mxu0 0.0
    %5024 = vmatmul.mubr.f32.gmra.mrb[0].mxu0 %v4870
    %v5025 = vpop.f32.mrb[0].mxu0
    %v5026 = vadd.f32 %v4892, %v5025
    %v5027 = vpop.f32.mrb[0].mxu0
    %5028 = vdwg.mxu0
    %v5029 = vsub.f32 0.0, %v4961
    %v5030 = vsub.f32 0.0, %v4966
    %v5031 = vsub.f32 0.0, %v4971
    %v5032 = vsub.f32 0.0, %v4976
    %v5033 = vsub.f32 0.0, %v4981
    %v5034 = vsub.f32 0.0, %v4986
    %v5035 = vsub.f32 0.0, %v4991
    %v5036 = vsub.f32 0.0, %v4996
    %v5037 = vsub.f32 0.0, %v5001
    %v5038 = vsub.f32 0.0, %v5006
    %v5039 = vsub.f32 0.0, %v5011
    %v5040 = vsub.f32 0.0, %v5016
    %v5041 = vsub.f32 0.0, %v5021
    %v5042 = vsub.f32 0.0, %v5026
    %v5043 = vmul.f32 %v5029, 1.442695
    %v5044 = vpow.pop %v5043
    %v5045 = vmul.f32 %v5030, 1.442695
    %v5046 = vpow.pop %v5045
    %v5047 = vmul.f32 %v5031, 1.442695
    %v5048 = vpow.pop %v5047
    %v5049 = vmul.f32 %v5032, 1.442695
    %v5050 = vpow.pop %v5049
    %v5051 = vmul.f32 %v5033, 1.442695
    %v5052 = vpow.pop %v5051
    %v5053 = vmul.f32 %v5034, 1.442695
    %v5054 = vpow.pop %v5053
    %v5055 = vmul.f32 %v5035, 1.442695
    %v5056 = vpow.pop %v5055
    %v5057 = vmul.f32 %v5036, 1.442695
    %v5058 = vpow.pop %v5057
    %v5059 = vmul.f32 %v5037, 1.442695
    %v5060 = vpow.pop %v5059
    %v5061 = vmul.f32 %v5038, 1.442695
    %v5062 = vpow.pop %v5061
    %v5063 = vmul.f32 %v5039, 1.442695
    %v5064 = vpow.pop %v5063
    %v5065 = vmul.f32 %v5040, 1.442695
    %v5066 = vpow.pop %v5065
    %v5067 = vmul.f32 %v5041, 1.442695
    %v5068 = vpow.pop %v5067
    %v5069 = vmul.f32 %v5042, 1.442695
    %v5070 = vpow.pop %v5069
    %v5071 = vadd.f32 %v5044, 1.0
    %v5072 = vadd.f32 %v5046, 1.0
    %v5073 = vadd.f32 %v5048, 1.0
    %v5074 = vadd.f32 %v5050, 1.0
    %v5075 = vadd.f32 %v5052, 1.0
    %v5076 = vadd.f32 %v5054, 1.0
    %v5077 = vadd.f32 %v5056, 1.0
    %v5078 = vadd.f32 %v5058, 1.0
    %v5079 = vadd.f32 %v5060, 1.0
    %v5080 = vadd.f32 %v5062, 1.0
    %v5081 = vadd.f32 %v5064, 1.0
    %v5082 = vadd.f32 %v5066, 1.0
    %v5083 = vadd.f32 %v5068, 1.0
    %v5084 = vadd.f32 %v5070, 1.0
    %v5085 = vrcp.pop %v5071
    %v5086 = vmul.f32 1.0, %v5085
    %v5087 = vrcp.pop %v5072
    %v5088 = vmul.f32 1.0, %v5087
    %v5089 = vrcp.pop %v5073
    %v5090 = vmul.f32 1.0, %v5089
    %v5091 = vrcp.pop %v5074
    %v5092 = vmul.f32 1.0, %v5091
    %v5093 = vrcp.pop %v5075
    %v5094 = vmul.f32 1.0, %v5093
    %v5095 = vrcp.pop %v5076
    %v5096 = vmul.f32 1.0, %v5095
    %v5097 = vrcp.pop %v5077
    %v5098 = vmul.f32 1.0, %v5097
    %v5099 = vrcp.pop %v5078
    %v5100 = vmul.f32 1.0, %v5099
    %v5101 = vrcp.pop %v5079
    %v5102 = vmul.f32 1.0, %v5101
    %v5103 = vrcp.pop %v5080
    %v5104 = vmul.f32 1.0, %v5103
    %v5105 = vrcp.pop %v5081
    %v5106 = vmul.f32 1.0, %v5105
    %v5107 = vrcp.pop %v5082
    %v5108 = vmul.f32 1.0, %v5107
    %v5109 = vrcp.pop %v5083
    %v5110 = vmul.f32 1.0, %v5109
    %v5111 = vrcp.pop %v5084
    %v5112 = vmul.f32 1.0, %v5111
    %vm5113 = vcmask 261120
    %5114 = vst.msk [vmem:[%s10] sm:$0xff] %vm5113, %v5086
    %5115 = vst.msk [vmem:[%s10 + $0x8] sm:$0xff] %vm5113, %v5088
    %5116 = vst.msk [vmem:[%s10 + $0x10] sm:$0xff] %vm5113, %v5090
    %5117 = vst.msk [vmem:[%s10 + $0x18] sm:$0xff] %vm5113, %v5092
    %5118 = vst.msk [vmem:[%s10 + $0x20] sm:$0xff] %vm5113, %v5094
    %5119 = vst.msk [vmem:[%s10 + $0x28] sm:$0xff] %vm5113, %v5096
    %5120 = vst.msk [vmem:[%s10 + $0x30] sm:$0xff] %vm5113, %v5098
    %s5121 = scalar_lea.vmem %s10, 56
    %5122 = vst.msk [vmem:[%s5121] sm:$0xff] %vm5113, %v5100
    %5123 = vst.msk [vmem:[%s5121 + $0x8] sm:$0xff] %vm5113, %v5102
    %5124 = vst.msk [vmem:[%s5121 + $0x10] sm:$0xff] %vm5113, %v5104
    %5125 = vst.msk [vmem:[%s5121 + $0x18] sm:$0xff] %vm5113, %v5106
    %5126 = vst.msk [vmem:[%s5121 + $0x20] sm:$0xff] %vm5113, %v5108
    %5127 = vst.msk [vmem:[%s5121 + $0x28] sm:$0xff] %vm5113, %v5110
    %5128 = vst.msk [vmem:[%s5121 + $0x30] sm:$0xff] %vm5113, %v5112
    // Predicated region
    $region50: #{forward.1} parent=1 // pred_check
      _
    $region51: #{forward.1} parent=1 // pred_check_branch
      %5130 = sbr.rel (0) target = $region53
    $region52: #{forward.1} parent=1 // pred_region
      _
    $region53: #{forward.1} parent=1 // pred_fallthru
      _
    // Predicated region
    $region54: #{forward.1} parent=1 // pred_check
      _
    $region55: #{forward.1} parent=1 // pred_check_branch
      %5132 = sbr.rel (0) target = $region57
    $region56: #{forward.1} parent=1 // pred_region
      _
    $region57: #{forward.1} parent=1 // pred_fallthru
      _
    %5133 = vsyncpa [#allocation3], 1
    %5134 = vsyncpa [#allocation5], 1

</llo_original>
